<compile_context>
chip_gen: v6e
topology: v6e:2x2x1
jax: 0.10.0
libtpu: 0.0.40
codegen_flags: <defaults>
</compile_context>

<pallas_src>
import numpy as np
import jax
import jax.numpy as jnp
from jax.experimental import pallas as pl
from jax.experimental.pallas import tpu as pltpu

NEG_SLOPE = 0.2                       # nn.LeakyReLU(0.2)


def _leaky(x):
    return jnp.maximum(x, NEG_SLOPE * x)


def _conv3_leaky(x, w_ref, b_ref):
    """Valid Conv1d(k=3) + bias + LeakyReLU on an (L, Cin) value -> (L-2, Cout)."""
    L, cin = x.shape
    lout = L - 2
    b = b_ref[...]                                        # (1, Cout) f32
    if cin == 1:
        cout = w_ref.shape[2]
        # One hoisted lane-broadcast; shifted taps via sublane rolls (XLU), all f32 VPU.
        xb = jnp.broadcast_to(x, (L, cout))
        acc = xb * w_ref[0]
        for d in (1, 2):
            acc = acc + pltpu.roll(xb, L - d, axis=0) * w_ref[d]
    else:
        # TODO(synk): single im2col dot (K=3*Cin) would cut MXU passes 3x for small Cin;
        # kept as 3 dots (bf16 operands, f32 accumulate) + result rolls for robustness.
        xm = x.astype(w_ref.dtype)
        acc = jnp.dot(xm, w_ref[0], preferred_element_type=jnp.float32)
        for d in (1, 2):
            t = jnp.dot(xm, w_ref[d], preferred_element_type=jnp.float32)
            acc = acc + pltpu.roll(t, L - d, axis=0)      # roll(-d) == roll(L-d)
    # Aligned slice (starts at row 0) — no sublane-misaligned relayout.
    return _leaky(acc[0:lout, :] + b)


def make_encoder_kernel(nblocks):
    """Fused kernel: whole encoder for one batch sample; features -> out refs (NLC)."""
    def kernel(*refs):
        x_ref = refs[0]
        params = refs[1:1 + 4 * nblocks]
        outs = refs[1 + 4 * nblocks:1 + 5 * nblocks]
        pool_scr = refs[1 + 5 * nblocks:]                 # nblocks-1 VMEM scratches
        cur = x_ref[...]                                  # (L, 1) f32
        for i in range(nblocks):
            w1, b1, w2, b2 = params[4 * i:4 * (i + 1)]
            h = _conv3_leaky(cur, w1, b1)
            h = _conv3_leaky(h, w2, b2)
            outs[i][...] = h                              # pure write of feature i (NLC)
            if i + 1 < nblocks:
                l2 = h.shape[0]
                lp = l2 // 2
                # MaxPool1d(2): pairwise max on the in-register value, one scratch
                # round-trip, single stride-2 sublane read (no output-ref re-read).
                hmax = jnp.maximum(h, pltpu.roll(h, l2 - 1, axis=0))
                pool_scr[i][...] = hmax
                cur = pool_scr[i][pl.ds(0, lp, stride=2), :]
    return kernel


_W_MAP = lambda b: (0, 0, 0)
_B_MAP = lambda b: (0, 0)


def _pick_vmem_limit(est_bytes):
    """Generation-aware scoped-VMEM limit: derived from block shapes, clamped to HW."""
    try:
        cap = int(pltpu.get_tpu_info().vmem_capacity_bytes)
    except Exception:
        cap = 64 * 1024 * 1024        # conservative default (v7x physical per-TC VMEM)
    ceiling = int(cap * 0.85)
    return int(min(max(est_bytes, 32 * 1024 * 1024), ceiling))


def _run_encoder(x_nlc, params, single_buffer_weights):
    B, L, _ = x_nlc.shape
    nblocks = len(params)
    flat_inputs = [x_nlc]
    in_specs = [pl.BlockSpec((None, L, 1), lambda b: (b, 0, 0))]
    out_shapes, out_specs, scratch_shapes = [], [], []
    flops = 0
    bytes_accessed = x_nlc.size * 4
    weight_bytes = out_block_bytes = scratch_bytes = max_act_bytes = 0
    cur_l = L
    for bi, (w1, b1, w2, b2) in enumerate(params):
        cin, cout = w1.shape[1], w1.shape[2]
        l1, l2 = cur_l - 2, cur_l - 4
        flat_inputs += [w1, b1, w2, b2]
        for t in (w1, b1, w2, b2):
            imap = _W_MAP if t.ndim == 3 else _B_MAP
            if single_buffer_weights:
                # Constant block index -> second pipeline buffer is dead VMEM.
                spec = pl.BlockSpec(t.shape, imap, pipeline_mode=pl.Buffered(1))
            else:
                spec = pl.BlockSpec(t.shape, imap)
            in_specs.append(spec)
            nbuf = 1 if single_buffer_weights else 2
            weight_bytes += nbuf * t.size * t.dtype.itemsize
            bytes_accessed += t.size * t.dtype.itemsize
        out_shapes.append(jax.ShapeDtypeStruct((B, l2, cout), jnp.float32))
        out_specs.append(pl.BlockSpec((None, l2, cout), lambda b: (b, 0, 0)))
        out_block_bytes += l2 * cout * 4
        if bi + 1 < nblocks:
            scratch_shapes.append(pltpu.VMEM((l2, cout), jnp.float32))
            scratch_bytes += l2 * cout * 4
        flops += B * 2 * l1 * 3 * cin * cout + B * 2 * l2 * 3 * cout * cout
        bytes_accessed += 4 * B * l2 * cout
        max_act_bytes = max(max_act_bytes, cur_l * cout * 4)
        cur_l = l2 // 2                                   # MaxPool1d(2), floor

    vmem_est = (2 * L * 4 + weight_bytes + 2 * out_block_bytes + scratch_bytes
                + 8 * max_act_bytes + (4 << 20))
    vmem_limit = _pick_vmem_limit(vmem_est)

    return pl.pallas_call(
        make_encoder_kernel(nblocks),
        out_shape=tuple(out_shapes),
        grid=(B,),
        in_specs=in_specs,
        out_specs=tuple(out_specs),
        scratch_shapes=scratch_shapes,
        compiler_params=pltpu.CompilerParams(
            dimension_semantics=("parallel",),
            vmem_limit_bytes=int(vmem_limit)),
        cost_estimate=pl.CostEstimate(flops=int(flops), transcendentals=0,
                                      bytes_accessed=int(bytes_accessed)),
    )(*flat_inputs)


def encoder_forward(x_ncl, params):
    """x_ncl: (B, 1, L) float32 (PyTorch NCL layout). Returns list of NCL features."""
    B, cin0, L = x_ncl.shape
    assert cin0 == 1
    # NCL -> NLC is a degenerate-dim transpose (metadata-only) since Cin == 1.
    x_nlc = jnp.transpose(x_ncl, (0, 2, 1)).astype(jnp.float32)
    try:
        feats_nlc = jax.block_until_ready(_run_encoder(x_nlc, params, True))
    except Exception:
        # Compatibility guard: if single-buffered weight specs (pl.Buffered(1)) are
        # rejected by this Mosaic build, fall back to default double buffering.
        feats_nlc = jax.block_until_ready(_run_encoder(x_nlc, params, False))
    # NLC -> NCL boundary glue so outputs match the PyTorch module's layout.
    return [jnp.transpose(f, (0, 2, 1)) for f in feats_nlc]


# --------------------------- parameters (synthetic) ----------------------------

def init_params(key, ch):
    """raw: PyTorch-layout (Cout, Cin, K) f32; folded: kernel layout (K, Cin, Cout)
    (bf16 for MXU-path convs, f32 for the Cin==1 VPU-path conv), bias (1, Cout) f32."""
    nblocks = len(ch) - 1
    keys = iter(jax.random.split(key, 4 * nblocks))
    raw, folded = [], []
    for i in range(nblocks):
        cin, cout = ch[i], ch[i + 1]
        blk_raw, blk_fold = [], []
        for c_in in (cin, cout):                          # conv1 then conv2
            bound = 1.0 / np.sqrt(c_in * 3)               # PyTorch Conv1d default init
            w = jax.random.uniform(next(keys), (cout, c_in, 3), jnp.float32, -bound, bound)
            b = jax.random.uniform(next(keys), (cout,), jnp.float32, -bound, bound)
            wf = jnp.transpose(w, (2, 1, 0))
            wf = wf.astype(jnp.float32 if c_in == 1 else jnp.bfloat16)
            blk_raw += [w, b]
            blk_fold += [wf, b.reshape(1, -1).astype(jnp.float32)]
        raw.append(tuple(blk_raw))
        folded.append(tuple(blk_fold))
    return raw, folded


# ------------------------------ pure-JAX reference -----------------------------

def encoder_ref(x_ncl, raw):
    feats = []
    cur = x_ncl
    for (w1, b1, w2, b2) in raw:
        h = jax.lax.conv_general_dilated(
            cur, w1, window_strides=(1,), padding=[(0, 0)],
            dimension_numbers=('NCH', 'OIH', 'NCH'),
            precision=jax.lax.Precision.HIGHEST) + b1[None, :, None]
        h = _leaky(h)
        h = jax.lax.conv_general_dilated(
            h, w2, window_strides=(1,), padding=[(0, 0)],
            dimension_numbers=('NCH', 'OIH', 'NCH'),
            precision=jax.lax.Precision.HIGHEST) + b2[None, :, None]
        h = _leaky(h)
        feats.append(h)
        lp = h.shape[-1] // 2
        cur = jnp.max(h[..., :2 * lp].reshape(h.shape[0], h.shape[1], lp, 2), axis=-1)
    return feats


# ------------------------------------ main --------------------------------------

if __name__ == "__main__":
    B, L = 2, 64            # B even so both v7x TensorCores are fed
    ch = (1, 16, 32, 64)    # small-shape stand-in for the module default (1, 64, ..., 1024)
    key = jax.random.PRNGKey(0)
    kp, kx = jax.random.split(key)
    raw, folded = init_params(kp, ch)
    x = jax.random.normal(kx, (B, 1, L), jnp.float32)     # PyTorch layout (N, C=1, L)

    feats = encoder_forward(x, folded)
    feats = jax.block_until_ready(feats)

    ref_feats = encoder_ref(x, raw)
    assert len(feats) == len(ref_feats)
    for f, r in zip(feats, ref_feats):
        assert f.shape == r.shape, (f.shape, r.shape)
        # Tolerance accounts for bf16 MXU operands (same datapath precision as the
        # previous version's default-precision dots) vs the HIGHEST-precision reference.
        np.testing.assert_allclose(np.asarray(f), np.asarray(r), rtol=2e-2, atol=2e-2)
    print("KERNEL_OK")
</pallas_src>

<mosaic_0001>
module attributes {stable_mosaic.version = 11 : i64} {
  func.func @kernel(%arg0: i32, %arg1: memref<1x64x1xf32, #tpu.memory_space<vmem>>, %arg2: memref<3x1x16xf32, #tpu.memory_space<vmem>>, %arg3: memref<1x16xf32, #tpu.memory_space<vmem>>, %arg4: memref<3x16x16xbf16, #tpu.memory_space<vmem>>, %arg5: memref<1x16xf32, #tpu.memory_space<vmem>>, %arg6: memref<3x16x32xbf16, #tpu.memory_space<vmem>>, %arg7: memref<1x32xf32, #tpu.memory_space<vmem>>, %arg8: memref<3x32x32xbf16, #tpu.memory_space<vmem>>, %arg9: memref<1x32xf32, #tpu.memory_space<vmem>>, %arg10: memref<3x32x64xbf16, #tpu.memory_space<vmem>>, %arg11: memref<1x64xf32, #tpu.memory_space<vmem>>, %arg12: memref<3x64x64xbf16, #tpu.memory_space<vmem>>, %arg13: memref<1x64xf32, #tpu.memory_space<vmem>>, %arg14: memref<1x60x16xf32, #tpu.memory_space<vmem>>, %arg15: memref<1x26x32xf32, #tpu.memory_space<vmem>>, %arg16: memref<1x9x64xf32, #tpu.memory_space<vmem>>, %arg17: memref<60x16xf32, #tpu.memory_space<vmem>>, %arg18: memref<26x32xf32, #tpu.memory_space<vmem>>) attributes {dimension_semantics = [#tpu.dimension_semantics<parallel>], iteration_bounds = array<i64: 2>, scalar_prefetch = 0 : i64, scratch_operands = 2 : i64, tpu.core_type = #tpu.core_type<tc>, window_params = [{transform_indices = @transform_0, window_bounds = array<i64: 1, 64, 1>}, {pipeline_mode = #tpu.pipeline_mode<synchronous>, transform_indices = @transform_1, window_bounds = array<i64: 3, 1, 16>}, {pipeline_mode = #tpu.pipeline_mode<synchronous>, transform_indices = @transform_2, window_bounds = array<i64: 1, 16>}, {pipeline_mode = #tpu.pipeline_mode<synchronous>, transform_indices = @transform_3, window_bounds = array<i64: 3, 16, 16>}, {pipeline_mode = #tpu.pipeline_mode<synchronous>, transform_indices = @transform_4, window_bounds = array<i64: 1, 16>}, {pipeline_mode = #tpu.pipeline_mode<synchronous>, transform_indices = @transform_5, window_bounds = array<i64: 3, 16, 32>}, {pipeline_mode = #tpu.pipeline_mode<synchronous>, transform_indices = @transform_6, window_bounds = array<i64: 1, 32>}, {pipeline_mode = #tpu.pipeline_mode<synchronous>, transform_indices = @transform_7, window_bounds = array<i64: 3, 32, 32>}, {pipeline_mode = #tpu.pipeline_mode<synchronous>, transform_indices = @transform_8, window_bounds = array<i64: 1, 32>}, {pipeline_mode = #tpu.pipeline_mode<synchronous>, transform_indices = @transform_9, window_bounds = array<i64: 3, 32, 64>}, {pipeline_mode = #tpu.pipeline_mode<synchronous>, transform_indices = @transform_10, window_bounds = array<i64: 1, 64>}, {pipeline_mode = #tpu.pipeline_mode<synchronous>, transform_indices = @transform_11, window_bounds = array<i64: 3, 64, 64>}, {pipeline_mode = #tpu.pipeline_mode<synchronous>, transform_indices = @transform_12, window_bounds = array<i64: 1, 64>}, {transform_indices = @transform_13, window_bounds = array<i64: 1, 60, 16>}, {transform_indices = @transform_14, window_bounds = array<i64: 1, 26, 32>}, {transform_indices = @transform_15, window_bounds = array<i64: 1, 9, 64>}]} {
    %c0 = arith.constant 0 : index
    %c0_0 = arith.constant 0 : index
    %c0_1 = arith.constant 0 : index
    %0 = vector.load %arg1[%c0, %c0_0, %c0_1] : memref<1x64x1xf32, #tpu.memory_space<vmem>>, vector<1x64x1xf32>
    %1 = vector.shape_cast %0 : vector<1x64x1xf32> to vector<64x1xf32>
    %c0_2 = arith.constant 0 : index
    %c0_3 = arith.constant 0 : index
    %2 = vector.load %arg3[%c0_2, %c0_3] : memref<1x16xf32, #tpu.memory_space<vmem>>, vector<1x16xf32>
    %3 = vector.shape_cast %1 : vector<64x1xf32> to vector<64x1xf32>
    %4 = vector.broadcast %3 : vector<64x1xf32> to vector<64x16xf32>
    %c0_4 = arith.constant 0 : index
    %c0_5 = arith.constant 0 : index
    %c0_6 = arith.constant 0 : index
    %5 = vector.load %arg2[%c0_4, %c0_5, %c0_6] : memref<3x1x16xf32, #tpu.memory_space<vmem>>, vector<1x1x16xf32>
    %6 = vector.shape_cast %5 : vector<1x1x16xf32> to vector<1x16xf32>
    %7 = vector.broadcast %6 : vector<1x16xf32> to vector<64x16xf32>
    %8 = arith.mulf %4, %7 : vector<64x16xf32>
    %c63_i32 = arith.constant 63 : i32
    %9 = tpu.dynamic_rotate %4 by %c63_i32 dim 0 : vector<64x16xf32>, i32 -> vector<64x16xf32>
    %c1 = arith.constant 1 : index
    %c0_7 = arith.constant 0 : index
    %c0_8 = arith.constant 0 : index
    %10 = vector.load %arg2[%c1, %c0_7, %c0_8] : memref<3x1x16xf32, #tpu.memory_space<vmem>>, vector<1x1x16xf32>
    %11 = vector.shape_cast %10 : vector<1x1x16xf32> to vector<1x16xf32>
    %12 = vector.broadcast %11 : vector<1x16xf32> to vector<64x16xf32>
    %13 = arith.mulf %9, %12 : vector<64x16xf32>
    %14 = arith.addf %8, %13 : vector<64x16xf32>
    %c62_i32 = arith.constant 62 : i32
    %15 = tpu.dynamic_rotate %4 by %c62_i32 dim 0 : vector<64x16xf32>, i32 -> vector<64x16xf32>
    %c2 = arith.constant 2 : index
    %c0_9 = arith.constant 0 : index
    %c0_10 = arith.constant 0 : index
    %16 = vector.load %arg2[%c2, %c0_9, %c0_10] : memref<3x1x16xf32, #tpu.memory_space<vmem>>, vector<1x1x16xf32>
    %17 = vector.shape_cast %16 : vector<1x1x16xf32> to vector<1x16xf32>
    %18 = vector.broadcast %17 : vector<1x16xf32> to vector<64x16xf32>
    %19 = arith.mulf %15, %18 : vector<64x16xf32>
    %20 = arith.addf %14, %19 : vector<64x16xf32>
    %21 = vector.extract_strided_slice %20 {offsets = [0, 0], sizes = [62, 16], strides = [1, 1]} : vector<64x16xf32> to vector<62x16xf32>
    %22 = vector.broadcast %2 : vector<1x16xf32> to vector<62x16xf32>
    %23 = arith.addf %21, %22 : vector<62x16xf32>
    %cst = arith.constant 2.000000e-01 : f32
    %24 = vector.broadcast %cst : f32 to vector<62x16xf32>
    %25 = arith.mulf %24, %23 : vector<62x16xf32>
    %26 = arith.maximumf %23, %25 : vector<62x16xf32>
    %c0_11 = arith.constant 0 : index
    %c0_12 = arith.constant 0 : index
    %27 = vector.load %arg5[%c0_11, %c0_12] : memref<1x16xf32, #tpu.memory_space<vmem>>, vector<1x16xf32>
    %28 = arith.truncf %26 : vector<62x16xf32> to vector<62x16xbf16>
    %c0_13 = arith.constant 0 : index
    %c0_14 = arith.constant 0 : index
    %c0_15 = arith.constant 0 : index
    %29 = vector.load %arg4[%c0_13, %c0_14, %c0_15] : memref<3x16x16xbf16, #tpu.memory_space<vmem>>, vector<1x16x16xbf16>
    %30 = vector.shape_cast %29 : vector<1x16x16xbf16> to vector<16x16xbf16>
    %cst_16 = arith.constant dense<0.000000e+00> : vector<62x16xf32>
    %31 = tpu.matmul %28, %30, %cst_16 {dimension_numbers = #tpu.dot_dimension_numbers<[1], [0], [0], [1], [0, 0, 1, 1], [], []>} : vector<62x16xbf16>, vector<16x16xbf16>, vector<62x16xf32> -> vector<62x16xf32>
    %c1_17 = arith.constant 1 : index
    %c0_18 = arith.constant 0 : index
    %c0_19 = arith.constant 0 : index
    %32 = vector.load %arg4[%c1_17, %c0_18, %c0_19] : memref<3x16x16xbf16, #tpu.memory_space<vmem>>, vector<1x16x16xbf16>
    %33 = vector.shape_cast %32 : vector<1x16x16xbf16> to vector<16x16xbf16>
    %cst_20 = arith.constant dense<0.000000e+00> : vector<62x16xf32>
    %34 = tpu.matmul %28, %33, %cst_20 {dimension_numbers = #tpu.dot_dimension_numbers<[1], [0], [0], [1], [0, 0, 1, 1], [], []>} : vector<62x16xbf16>, vector<16x16xbf16>, vector<62x16xf32> -> vector<62x16xf32>
    %c61_i32 = arith.constant 61 : i32
    %35 = tpu.dynamic_rotate %34 by %c61_i32 dim 0 : vector<62x16xf32>, i32 -> vector<62x16xf32>
    %36 = arith.addf %31, %35 : vector<62x16xf32>
    %c2_21 = arith.constant 2 : index
    %c0_22 = arith.constant 0 : index
    %c0_23 = arith.constant 0 : index
    %37 = vector.load %arg4[%c2_21, %c0_22, %c0_23] : memref<3x16x16xbf16, #tpu.memory_space<vmem>>, vector<1x16x16xbf16>
    %38 = vector.shape_cast %37 : vector<1x16x16xbf16> to vector<16x16xbf16>
    %cst_24 = arith.constant dense<0.000000e+00> : vector<62x16xf32>
    %39 = tpu.matmul %28, %38, %cst_24 {dimension_numbers = #tpu.dot_dimension_numbers<[1], [0], [0], [1], [0, 0, 1, 1], [], []>} : vector<62x16xbf16>, vector<16x16xbf16>, vector<62x16xf32> -> vector<62x16xf32>
    %c60_i32 = arith.constant 60 : i32
    %40 = tpu.dynamic_rotate %39 by %c60_i32 dim 0 : vector<62x16xf32>, i32 -> vector<62x16xf32>
    %41 = arith.addf %36, %40 : vector<62x16xf32>
    %42 = vector.extract_strided_slice %41 {offsets = [0, 0], sizes = [60, 16], strides = [1, 1]} : vector<62x16xf32> to vector<60x16xf32>
    %43 = vector.broadcast %27 : vector<1x16xf32> to vector<60x16xf32>
    %44 = arith.addf %42, %43 : vector<60x16xf32>
    %cst_25 = arith.constant 2.000000e-01 : f32
    %45 = vector.broadcast %cst_25 : f32 to vector<60x16xf32>
    %46 = arith.mulf %45, %44 : vector<60x16xf32>
    %47 = arith.maximumf %44, %46 : vector<60x16xf32>
    %c0_26 = arith.constant 0 : index
    %c0_27 = arith.constant 0 : index
    %c0_28 = arith.constant 0 : index
    %48 = vector.load %arg14[%c0_26, %c0_27, %c0_28] : memref<1x60x16xf32, #tpu.memory_space<vmem>>, vector<1x60x16xf32>
    %49 = vector.shape_cast %48 : vector<1x60x16xf32> to vector<60x16xf32>
    %50 = vector.shape_cast %47 : vector<60x16xf32> to vector<1x60x16xf32>
    tpu.vector_store %arg14[%c0_26, %c0_27, %c0_28], %50 {strides = array<i32>} : memref<1x60x16xf32, #tpu.memory_space<vmem>>, vector<1x60x16xf32>,
    %c59_i32 = arith.constant 59 : i32
    %51 = tpu.dynamic_rotate %47 by %c59_i32 dim 0 : vector<60x16xf32>, i32 -> vector<60x16xf32>
    %52 = arith.maximumf %47, %51 : vector<60x16xf32>
    %c0_29 = arith.constant 0 : index
    %c0_30 = arith.constant 0 : index
    %53 = vector.load %arg17[%c0_29, %c0_30] : memref<60x16xf32, #tpu.memory_space<vmem>>, vector<60x16xf32>
    tpu.vector_store %arg17[%c0_29, %c0_30], %52 {strides = array<i32>} : memref<60x16xf32, #tpu.memory_space<vmem>>, vector<60x16xf32>,
    %c0_31 = arith.constant 0 : index
    %c0_32 = arith.constant 0 : index
    %54 = tpu.strided_load %arg17[%c0_31, %c0_32] {strides = array<i32: 2, 1>} : memref<60x16xf32, #tpu.memory_space<vmem>>, vector<30x16xf32>
    %c0_33 = arith.constant 0 : index
    %c0_34 = arith.constant 0 : index
    %55 = vector.load %arg7[%c0_33, %c0_34] : memref<1x32xf32, #tpu.memory_space<vmem>>, vector<1x32xf32>
    %56 = arith.truncf %54 : vector<30x16xf32> to vector<30x16xbf16>
    %c0_35 = arith.constant 0 : index
    %c0_36 = arith.constant 0 : index
    %c0_37 = arith.constant 0 : index
    %57 = vector.load %arg6[%c0_35, %c0_36, %c0_37] : memref<3x16x32xbf16, #tpu.memory_space<vmem>>, vector<1x16x32xbf16>
    %58 = vector.shape_cast %57 : vector<1x16x32xbf16> to vector<16x32xbf16>
    %cst_38 = arith.constant dense<0.000000e+00> : vector<30x32xf32>
    %59 = tpu.matmul %56, %58, %cst_38 {dimension_numbers = #tpu.dot_dimension_numbers<[1], [0], [0], [1], [0, 0, 1, 1], [], []>} : vector<30x16xbf16>, vector<16x32xbf16>, vector<30x32xf32> -> vector<30x32xf32>
    %c1_39 = arith.constant 1 : index
    %c0_40 = arith.constant 0 : index
    %c0_41 = arith.constant 0 : index
    %60 = vector.load %arg6[%c1_39, %c0_40, %c0_41] : memref<3x16x32xbf16, #tpu.memory_space<vmem>>, vector<1x16x32xbf16>
    %61 = vector.shape_cast %60 : vector<1x16x32xbf16> to vector<16x32xbf16>
    %cst_42 = arith.constant dense<0.000000e+00> : vector<30x32xf32>
    %62 = tpu.matmul %56, %61, %cst_42 {dimension_numbers = #tpu.dot_dimension_numbers<[1], [0], [0], [1], [0, 0, 1, 1], [], []>} : vector<30x16xbf16>, vector<16x32xbf16>, vector<30x32xf32> -> vector<30x32xf32>
    %c29_i32 = arith.constant 29 : i32
    %63 = tpu.dynamic_rotate %62 by %c29_i32 dim 0 : vector<30x32xf32>, i32 -> vector<30x32xf32>
    %64 = arith.addf %59, %63 : vector<30x32xf32>
    %c2_43 = arith.constant 2 : index
    %c0_44 = arith.constant 0 : index
    %c0_45 = arith.constant 0 : index
    %65 = vector.load %arg6[%c2_43, %c0_44, %c0_45] : memref<3x16x32xbf16, #tpu.memory_space<vmem>>, vector<1x16x32xbf16>
    %66 = vector.shape_cast %65 : vector<1x16x32xbf16> to vector<16x32xbf16>
    %cst_46 = arith.constant dense<0.000000e+00> : vector<30x32xf32>
    %67 = tpu.matmul %56, %66, %cst_46 {dimension_numbers = #tpu.dot_dimension_numbers<[1], [0], [0], [1], [0, 0, 1, 1], [], []>} : vector<30x16xbf16>, vector<16x32xbf16>, vector<30x32xf32> -> vector<30x32xf32>
    %c28_i32 = arith.constant 28 : i32
    %68 = tpu.dynamic_rotate %67 by %c28_i32 dim 0 : vector<30x32xf32>, i32 -> vector<30x32xf32>
    %69 = arith.addf %64, %68 : vector<30x32xf32>
    %70 = vector.extract_strided_slice %69 {offsets = [0, 0], sizes = [28, 32], strides = [1, 1]} : vector<30x32xf32> to vector<28x32xf32>
    %71 = vector.broadcast %55 : vector<1x32xf32> to vector<28x32xf32>
    %72 = arith.addf %70, %71 : vector<28x32xf32>
    %cst_47 = arith.constant 2.000000e-01 : f32
    %73 = vector.broadcast %cst_47 : f32 to vector<28x32xf32>
    %74 = arith.mulf %73, %72 : vector<28x32xf32>
    %75 = arith.maximumf %72, %74 : vector<28x32xf32>
    %c0_48 = arith.constant 0 : index
    %c0_49 = arith.constant 0 : index
    %76 = vector.load %arg9[%c0_48, %c0_49] : memref<1x32xf32, #tpu.memory_space<vmem>>, vector<1x32xf32>
    %77 = arith.truncf %75 : vector<28x32xf32> to vector<28x32xbf16>
    %c0_50 = arith.constant 0 : index
    %c0_51 = arith.constant 0 : index
    %c0_52 = arith.constant 0 : index
    %78 = vector.load %arg8[%c0_50, %c0_51, %c0_52] : memref<3x32x32xbf16, #tpu.memory_space<vmem>>, vector<1x32x32xbf16>
    %79 = vector.shape_cast %78 : vector<1x32x32xbf16> to vector<32x32xbf16>
    %cst_53 = arith.constant dense<0.000000e+00> : vector<28x32xf32>
    %80 = tpu.matmul %77, %79, %cst_53 {dimension_numbers = #tpu.dot_dimension_numbers<[1], [0], [0], [1], [0, 0, 1, 1], [], []>} : vector<28x32xbf16>, vector<32x32xbf16>, vector<28x32xf32> -> vector<28x32xf32>
    %c1_54 = arith.constant 1 : index
    %c0_55 = arith.constant 0 : index
    %c0_56 = arith.constant 0 : index
    %81 = vector.load %arg8[%c1_54, %c0_55, %c0_56] : memref<3x32x32xbf16, #tpu.memory_space<vmem>>, vector<1x32x32xbf16>
    %82 = vector.shape_cast %81 : vector<1x32x32xbf16> to vector<32x32xbf16>
    %cst_57 = arith.constant dense<0.000000e+00> : vector<28x32xf32>
    %83 = tpu.matmul %77, %82, %cst_57 {dimension_numbers = #tpu.dot_dimension_numbers<[1], [0], [0], [1], [0, 0, 1, 1], [], []>} : vector<28x32xbf16>, vector<32x32xbf16>, vector<28x32xf32> -> vector<28x32xf32>
    %c27_i32 = arith.constant 27 : i32
    %84 = tpu.dynamic_rotate %83 by %c27_i32 dim 0 : vector<28x32xf32>, i32 -> vector<28x32xf32>
    %85 = arith.addf %80, %84 : vector<28x32xf32>
    %c2_58 = arith.constant 2 : index
    %c0_59 = arith.constant 0 : index
    %c0_60 = arith.constant 0 : index
    %86 = vector.load %arg8[%c2_58, %c0_59, %c0_60] : memref<3x32x32xbf16, #tpu.memory_space<vmem>>, vector<1x32x32xbf16>
    %87 = vector.shape_cast %86 : vector<1x32x32xbf16> to vector<32x32xbf16>
    %cst_61 = arith.constant dense<0.000000e+00> : vector<28x32xf32>
    %88 = tpu.matmul %77, %87, %cst_61 {dimension_numbers = #tpu.dot_dimension_numbers<[1], [0], [0], [1], [0, 0, 1, 1], [], []>} : vector<28x32xbf16>, vector<32x32xbf16>, vector<28x32xf32> -> vector<28x32xf32>
    %c26_i32 = arith.constant 26 : i32
    %89 = tpu.dynamic_rotate %88 by %c26_i32 dim 0 : vector<28x32xf32>, i32 -> vector<28x32xf32>
    %90 = arith.addf %85, %89 : vector<28x32xf32>
    %91 = vector.extract_strided_slice %90 {offsets = [0, 0], sizes = [26, 32], strides = [1, 1]} : vector<28x32xf32> to vector<26x32xf32>
    %92 = vector.broadcast %76 : vector<1x32xf32> to vector<26x32xf32>
    %93 = arith.addf %91, %92 : vector<26x32xf32>
    %cst_62 = arith.constant 2.000000e-01 : f32
    %94 = vector.broadcast %cst_62 : f32 to vector<26x32xf32>
    %95 = arith.mulf %94, %93 : vector<26x32xf32>
    %96 = arith.maximumf %93, %95 : vector<26x32xf32>
    %c0_63 = arith.constant 0 : index
    %c0_64 = arith.constant 0 : index
    %c0_65 = arith.constant 0 : index
    %97 = vector.load %arg15[%c0_63, %c0_64, %c0_65] : memref<1x26x32xf32, #tpu.memory_space<vmem>>, vector<1x26x32xf32>
    %98 = vector.shape_cast %97 : vector<1x26x32xf32> to vector<26x32xf32>
    %99 = vector.shape_cast %96 : vector<26x32xf32> to vector<1x26x32xf32>
    tpu.vector_store %arg15[%c0_63, %c0_64, %c0_65], %99 {strides = array<i32>} : memref<1x26x32xf32, #tpu.memory_space<vmem>>, vector<1x26x32xf32>,
    %c25_i32 = arith.constant 25 : i32
    %100 = tpu.dynamic_rotate %96 by %c25_i32 dim 0 : vector<26x32xf32>, i32 -> vector<26x32xf32>
    %101 = arith.maximumf %96, %100 : vector<26x32xf32>
    %c0_66 = arith.constant 0 : index
    %c0_67 = arith.constant 0 : index
    %102 = vector.load %arg18[%c0_66, %c0_67] : memref<26x32xf32, #tpu.memory_space<vmem>>, vector<26x32xf32>
    tpu.vector_store %arg18[%c0_66, %c0_67], %101 {strides = array<i32>} : memref<26x32xf32, #tpu.memory_space<vmem>>, vector<26x32xf32>,
    %c0_68 = arith.constant 0 : index
    %c0_69 = arith.constant 0 : index
    %103 = tpu.strided_load %arg18[%c0_68, %c0_69] {strides = array<i32: 2, 1>} : memref<26x32xf32, #tpu.memory_space<vmem>>, vector<13x32xf32>
    %c0_70 = arith.constant 0 : index
    %c0_71 = arith.constant 0 : index
    %104 = vector.load %arg11[%c0_70, %c0_71] : memref<1x64xf32, #tpu.memory_space<vmem>>, vector<1x64xf32>
    %105 = arith.truncf %103 : vector<13x32xf32> to vector<13x32xbf16>
    %c0_72 = arith.constant 0 : index
    %c0_73 = arith.constant 0 : index
    %c0_74 = arith.constant 0 : index
    %106 = vector.load %arg10[%c0_72, %c0_73, %c0_74] : memref<3x32x64xbf16, #tpu.memory_space<vmem>>, vector<1x32x64xbf16>
    %107 = vector.shape_cast %106 : vector<1x32x64xbf16> to vector<32x64xbf16>
    %cst_75 = arith.constant dense<0.000000e+00> : vector<13x64xf32>
    %108 = tpu.matmul %105, %107, %cst_75 {dimension_numbers = #tpu.dot_dimension_numbers<[1], [0], [0], [1], [0, 0, 1, 1], [], []>} : vector<13x32xbf16>, vector<32x64xbf16>, vector<13x64xf32> -> vector<13x64xf32>
    %c1_76 = arith.constant 1 : index
    %c0_77 = arith.constant 0 : index
    %c0_78 = arith.constant 0 : index
    %109 = vector.load %arg10[%c1_76, %c0_77, %c0_78] : memref<3x32x64xbf16, #tpu.memory_space<vmem>>, vector<1x32x64xbf16>
    %110 = vector.shape_cast %109 : vector<1x32x64xbf16> to vector<32x64xbf16>
    %cst_79 = arith.constant dense<0.000000e+00> : vector<13x64xf32>
    %111 = tpu.matmul %105, %110, %cst_79 {dimension_numbers = #tpu.dot_dimension_numbers<[1], [0], [0], [1], [0, 0, 1, 1], [], []>} : vector<13x32xbf16>, vector<32x64xbf16>, vector<13x64xf32> -> vector<13x64xf32>
    %c12_i32 = arith.constant 12 : i32
    %112 = tpu.dynamic_rotate %111 by %c12_i32 dim 0 : vector<13x64xf32>, i32 -> vector<13x64xf32>
    %113 = arith.addf %108, %112 : vector<13x64xf32>
    %c2_80 = arith.constant 2 : index
    %c0_81 = arith.constant 0 : index
    %c0_82 = arith.constant 0 : index
    %114 = vector.load %arg10[%c2_80, %c0_81, %c0_82] : memref<3x32x64xbf16, #tpu.memory_space<vmem>>, vector<1x32x64xbf16>
    %115 = vector.shape_cast %114 : vector<1x32x64xbf16> to vector<32x64xbf16>
    %cst_83 = arith.constant dense<0.000000e+00> : vector<13x64xf32>
    %116 = tpu.matmul %105, %115, %cst_83 {dimension_numbers = #tpu.dot_dimension_numbers<[1], [0], [0], [1], [0, 0, 1, 1], [], []>} : vector<13x32xbf16>, vector<32x64xbf16>, vector<13x64xf32> -> vector<13x64xf32>
    %c11_i32 = arith.constant 11 : i32
    %117 = tpu.dynamic_rotate %116 by %c11_i32 dim 0 : vector<13x64xf32>, i32 -> vector<13x64xf32>
    %118 = arith.addf %113, %117 : vector<13x64xf32>
    %119 = vector.extract_strided_slice %118 {offsets = [0, 0], sizes = [11, 64], strides = [1, 1]} : vector<13x64xf32> to vector<11x64xf32>
    %120 = vector.broadcast %104 : vector<1x64xf32> to vector<11x64xf32>
    %121 = arith.addf %119, %120 : vector<11x64xf32>
    %cst_84 = arith.constant 2.000000e-01 : f32
    %122 = vector.broadcast %cst_84 : f32 to vector<11x64xf32>
    %123 = arith.mulf %122, %121 : vector<11x64xf32>
    %124 = arith.maximumf %121, %123 : vector<11x64xf32>
    %c0_85 = arith.constant 0 : index
    %c0_86 = arith.constant 0 : index
    %125 = vector.load %arg13[%c0_85, %c0_86] : memref<1x64xf32, #tpu.memory_space<vmem>>, vector<1x64xf32>
    %126 = arith.truncf %124 : vector<11x64xf32> to vector<11x64xbf16>
    %c0_87 = arith.constant 0 : index
    %c0_88 = arith.constant 0 : index
    %c0_89 = arith.constant 0 : index
    %127 = vector.load %arg12[%c0_87, %c0_88, %c0_89] : memref<3x64x64xbf16, #tpu.memory_space<vmem>>, vector<1x64x64xbf16>
    %128 = vector.shape_cast %127 : vector<1x64x64xbf16> to vector<64x64xbf16>
    %cst_90 = arith.constant dense<0.000000e+00> : vector<11x64xf32>
    %129 = tpu.matmul %126, %128, %cst_90 {dimension_numbers = #tpu.dot_dimension_numbers<[1], [0], [0], [1], [0, 0, 1, 1], [], []>} : vector<11x64xbf16>, vector<64x64xbf16>, vector<11x64xf32> -> vector<11x64xf32>
    %c1_91 = arith.constant 1 : index
    %c0_92 = arith.constant 0 : index
    %c0_93 = arith.constant 0 : index
    %130 = vector.load %arg12[%c1_91, %c0_92, %c0_93] : memref<3x64x64xbf16, #tpu.memory_space<vmem>>, vector<1x64x64xbf16>
    %131 = vector.shape_cast %130 : vector<1x64x64xbf16> to vector<64x64xbf16>
    %cst_94 = arith.constant dense<0.000000e+00> : vector<11x64xf32>
    %132 = tpu.matmul %126, %131, %cst_94 {dimension_numbers = #tpu.dot_dimension_numbers<[1], [0], [0], [1], [0, 0, 1, 1], [], []>} : vector<11x64xbf16>, vector<64x64xbf16>, vector<11x64xf32> -> vector<11x64xf32>
    %c10_i32 = arith.constant 10 : i32
    %133 = tpu.dynamic_rotate %132 by %c10_i32 dim 0 : vector<11x64xf32>, i32 -> vector<11x64xf32>
    %134 = arith.addf %129, %133 : vector<11x64xf32>
    %c2_95 = arith.constant 2 : index
    %c0_96 = arith.constant 0 : index
    %c0_97 = arith.constant 0 : index
    %135 = vector.load %arg12[%c2_95, %c0_96, %c0_97] : memref<3x64x64xbf16, #tpu.memory_space<vmem>>, vector<1x64x64xbf16>
    %136 = vector.shape_cast %135 : vector<1x64x64xbf16> to vector<64x64xbf16>
    %cst_98 = arith.constant dense<0.000000e+00> : vector<11x64xf32>
    %137 = tpu.matmul %126, %136, %cst_98 {dimension_numbers = #tpu.dot_dimension_numbers<[1], [0], [0], [1], [0, 0, 1, 1], [], []>} : vector<11x64xbf16>, vector<64x64xbf16>, vector<11x64xf32> -> vector<11x64xf32>
    %c9_i32 = arith.constant 9 : i32
    %138 = tpu.dynamic_rotate %137 by %c9_i32 dim 0 : vector<11x64xf32>, i32 -> vector<11x64xf32>
    %139 = arith.addf %134, %138 : vector<11x64xf32>
    %140 = vector.extract_strided_slice %139 {offsets = [0, 0], sizes = [9, 64], strides = [1, 1]} : vector<11x64xf32> to vector<9x64xf32>
    %141 = vector.broadcast %125 : vector<1x64xf32> to vector<9x64xf32>
    %142 = arith.addf %140, %141 : vector<9x64xf32>
    %cst_99 = arith.constant 2.000000e-01 : f32
    %143 = vector.broadcast %cst_99 : f32 to vector<9x64xf32>
    %144 = arith.mulf %143, %142 : vector<9x64xf32>
    %145 = arith.maximumf %142, %144 : vector<9x64xf32>
    %c0_100 = arith.constant 0 : index
    %c0_101 = arith.constant 0 : index
    %c0_102 = arith.constant 0 : index
    %146 = vector.load %arg16[%c0_100, %c0_101, %c0_102] : memref<1x9x64xf32, #tpu.memory_space<vmem>>, vector<1x9x64xf32>
    %147 = vector.shape_cast %146 : vector<1x9x64xf32> to vector<9x64xf32>
    %148 = vector.shape_cast %145 : vector<9x64xf32> to vector<1x9x64xf32>
    tpu.vector_store %arg16[%c0_100, %c0_101, %c0_102], %148 {strides = array<i32>} : memref<1x9x64xf32, #tpu.memory_space<vmem>>, vector<1x9x64xf32>,
    return
  }
  func.func @transform_0(%arg0: i32) -> (i32, i32, i32) {
    %c0_i32 = arith.constant 0 : i32
    %c0_i32_0 = arith.constant 0 : i32
    %c0_i32_1 = arith.constant 0 : i32
    return %arg0, %c0_i32, %c0_i32_0 : i32, i32, i32
  }
  func.func @transform_1(%arg0: i32) -> (i32, i32, i32) {
    %c0_i32 = arith.constant 0 : i32
    %c0_i32_0 = arith.constant 0 : i32
    %c0_i32_1 = arith.constant 0 : i32
    %c0_i32_2 = arith.constant 0 : i32
    return %c0_i32, %c0_i32_0, %c0_i32_1 : i32, i32, i32
  }
  func.func @transform_2(%arg0: i32) -> (i32, i32) {
    %c0_i32 = arith.constant 0 : i32
    %c0_i32_0 = arith.constant 0 : i32
    %c0_i32_1 = arith.constant 0 : i32
    return %c0_i32, %c0_i32_0 : i32, i32
  }
  func.func @transform_3(%arg0: i32) -> (i32, i32, i32) {
    %c0_i32 = arith.constant 0 : i32
    %c0_i32_0 = arith.constant 0 : i32
    %c0_i32_1 = arith.constant 0 : i32
    %c0_i32_2 = arith.constant 0 : i32
    return %c0_i32, %c0_i32_0, %c0_i32_1 : i32, i32, i32
  }
  func.func @transform_4(%arg0: i32) -> (i32, i32) {
    %c0_i32 = arith.constant 0 : i32
    %c0_i32_0 = arith.constant 0 : i32
    %c0_i32_1 = arith.constant 0 : i32
    return %c0_i32, %c0_i32_0 : i32, i32
  }
  func.func @transform_5(%arg0: i32) -> (i32, i32, i32) {
    %c0_i32 = arith.constant 0 : i32
    %c0_i32_0 = arith.constant 0 : i32
    %c0_i32_1 = arith.constant 0 : i32
    %c0_i32_2 = arith.constant 0 : i32
    return %c0_i32, %c0_i32_0, %c0_i32_1 : i32, i32, i32
  }
  func.func @transform_6(%arg0: i32) -> (i32, i32) {
    %c0_i32 = arith.constant 0 : i32
    %c0_i32_0 = arith.constant 0 : i32
    %c0_i32_1 = arith.constant 0 : i32
    return %c0_i32, %c0_i32_0 : i32, i32
  }
  func.func @transform_7(%arg0: i32) -> (i32, i32, i32) {
    %c0_i32 = arith.constant 0 : i32
    %c0_i32_0 = arith.constant 0 : i32
    %c0_i32_1 = arith.constant 0 : i32
    %c0_i32_2 = arith.constant 0 : i32
    return %c0_i32, %c0_i32_0, %c0_i32_1 : i32, i32, i32
  }
  func.func @transform_8(%arg0: i32) -> (i32, i32) {
    %c0_i32 = arith.constant 0 : i32
    %c0_i32_0 = arith.constant 0 : i32
    %c0_i32_1 = arith.constant 0 : i32
    return %c0_i32, %c0_i32_0 : i32, i32
  }
  func.func @transform_9(%arg0: i32) -> (i32, i32, i32) {
    %c0_i32 = arith.constant 0 : i32
    %c0_i32_0 = arith.constant 0 : i32
    %c0_i32_1 = arith.constant 0 : i32
    %c0_i32_2 = arith.constant 0 : i32
    return %c0_i32, %c0_i32_0, %c0_i32_1 : i32, i32, i32
  }
  func.func @transform_10(%arg0: i32) -> (i32, i32) {
    %c0_i32 = arith.constant 0 : i32
    %c0_i32_0 = arith.constant 0 : i32
    %c0_i32_1 = arith.constant 0 : i32
    return %c0_i32, %c0_i32_0 : i32, i32
  }
  func.func @transform_11(%arg0: i32) -> (i32, i32, i32) {
    %c0_i32 = arith.constant 0 : i32
    %c0_i32_0 = arith.constant 0 : i32
    %c0_i32_1 = arith.constant 0 : i32
    %c0_i32_2 = arith.constant 0 : i32
    return %c0_i32, %c0_i32_0, %c0_i32_1 : i32, i32, i32
  }
  func.func @transform_12(%arg0: i32) -> (i32, i32) {
    %c0_i32 = arith.constant 0 : i32
    %c0_i32_0 = arith.constant 0 : i32
    %c0_i32_1 = arith.constant 0 : i32
    return %c0_i32, %c0_i32_0 : i32, i32
  }
  func.func @transform_13(%arg0: i32) -> (i32, i32, i32) {
    %c0_i32 = arith.constant 0 : i32
    %c0_i32_0 = arith.constant 0 : i32
    %c0_i32_1 = arith.constant 0 : i32
    return %arg0, %c0_i32, %c0_i32_0 : i32, i32, i32
  }
  func.func @transform_14(%arg0: i32) -> (i32, i32, i32) {
    %c0_i32 = arith.constant 0 : i32
    %c0_i32_0 = arith.constant 0 : i32
    %c0_i32_1 = arith.constant 0 : i32
    return %arg0, %c0_i32, %c0_i32_0 : i32, i32, i32
  }
  func.func @transform_15(%arg0: i32) -> (i32, i32, i32) {
    %c0_i32 = arith.constant 0 : i32
    %c0_i32_0 = arith.constant 0 : i32
    %c0_i32_1 = arith.constant 0 : i32
    return %arg0, %c0_i32, %c0_i32_0 : i32, i32, i32
  }
}

module attributes {stable_mosaic.version = 11 : i64} {
  func.func @kernel(%arg0: i32, %arg1: memref<1x64x1xf32, #tpu.memory_space<vmem>>, %arg2: memref<3x1x16xf32, #tpu.memory_space<vmem>>, %arg3: memref<1x16xf32, #tpu.memory_space<vmem>>, %arg4: memref<3x16x16xbf16, #tpu.memory_space<vmem>>, %arg5: memref<1x16xf32, #tpu.memory_space<vmem>>, %arg6: memref<3x16x32xbf16, #tpu.memory_space<vmem>>, %arg7: memref<1x32xf32, #tpu.memory_space<vmem>>, %arg8: memref<3x32x32xbf16, #tpu.memory_space<vmem>>, %arg9: memref<1x32xf32, #tpu.memory_space<vmem>>, %arg10: memref<3x32x64xbf16, #tpu.memory_space<vmem>>, %arg11: memref<1x64xf32, #tpu.memory_space<vmem>>, %arg12: memref<3x64x64xbf16, #tpu.memory_space<vmem>>, %arg13: memref<1x64xf32, #tpu.memory_space<vmem>>, %arg14: memref<1x60x16xf32, #tpu.memory_space<vmem>>, %arg15: memref<1x26x32xf32, #tpu.memory_space<vmem>>, %arg16: memref<1x9x64xf32, #tpu.memory_space<vmem>>, %arg17: memref<60x16xf32, #tpu.memory_space<vmem>>, %arg18: memref<26x32xf32, #tpu.memory_space<vmem>>) attributes {dimension_semantics = [#tpu.dimension_semantics<parallel>], iteration_bounds = array<i64: 2>, scalar_prefetch = 0 : i64, scratch_operands = 2 : i64, tpu.core_type = #tpu.core_type<tc>, window_params = [{transform_indices = @transform_0, window_bounds = array<i64: 1, 64, 1>}, {pipeline_mode = #tpu.pipeline_mode<synchronous>, transform_indices = @transform_1, window_bounds = array<i64: 3, 1, 16>}, {pipeline_mode = #tpu.pipeline_mode<synchronous>, transform_indices = @transform_2, window_bounds = array<i64: 1, 16>}, {pipeline_mode = #tpu.pipeline_mode<synchronous>, transform_indices = @transform_3, window_bounds = array<i64: 3, 16, 16>}, {pipeline_mode = #tpu.pipeline_mode<synchronous>, transform_indices = @transform_4, window_bounds = array<i64: 1, 16>}, {pipeline_mode = #tpu.pipeline_mode<synchronous>, transform_indices = @transform_5, window_bounds = array<i64: 3, 16, 32>}, {pipeline_mode = #tpu.pipeline_mode<synchronous>, transform_indices = @transform_6, window_bounds = array<i64: 1, 32>}, {pipeline_mode = #tpu.pipeline_mode<synchronous>, transform_indices = @transform_7, window_bounds = array<i64: 3, 32, 32>}, {pipeline_mode = #tpu.pipeline_mode<synchronous>, transform_indices = @transform_8, window_bounds = array<i64: 1, 32>}, {pipeline_mode = #tpu.pipeline_mode<synchronous>, transform_indices = @transform_9, window_bounds = array<i64: 3, 32, 64>}, {pipeline_mode = #tpu.pipeline_mode<synchronous>, transform_indices = @transform_10, window_bounds = array<i64: 1, 64>}, {pipeline_mode = #tpu.pipeline_mode<synchronous>, transform_indices = @transform_11, window_bounds = array<i64: 3, 64, 64>}, {pipeline_mode = #tpu.pipeline_mode<synchronous>, transform_indices = @transform_12, window_bounds = array<i64: 1, 64>}, {transform_indices = @transform_13, window_bounds = array<i64: 1, 60, 16>}, {transform_indices = @transform_14, window_bounds = array<i64: 1, 26, 32>}, {transform_indices = @transform_15, window_bounds = array<i64: 1, 9, 64>}]} {
    %c0 = arith.constant 0 : index
    %c0_0 = arith.constant 0 : index
    %c0_1 = arith.constant 0 : index
    %0 = vector.load %arg1[%c0, %c0_0, %c0_1] : memref<1x64x1xf32, #tpu.memory_space<vmem>>, vector<1x64x1xf32>
    %1 = vector.shape_cast %0 : vector<1x64x1xf32> to vector<64x1xf32>
    %c0_2 = arith.constant 0 : index
    %c0_3 = arith.constant 0 : index
    %2 = vector.load %arg3[%c0_2, %c0_3] : memref<1x16xf32, #tpu.memory_space<vmem>>, vector<1x16xf32>
    %3 = vector.shape_cast %1 : vector<64x1xf32> to vector<64x1xf32>
    %4 = vector.broadcast %3 : vector<64x1xf32> to vector<64x16xf32>
    %c0_4 = arith.constant 0 : index
    %c0_5 = arith.constant 0 : index
    %c0_6 = arith.constant 0 : index
    %5 = vector.load %arg2[%c0_4, %c0_5, %c0_6] : memref<3x1x16xf32, #tpu.memory_space<vmem>>, vector<1x1x16xf32>
    %6 = vector.shape_cast %5 : vector<1x1x16xf32> to vector<1x16xf32>
    %7 = vector.broadcast %6 : vector<1x16xf32> to vector<64x16xf32>
    %8 = arith.mulf %4, %7 : vector<64x16xf32>
    %c63_i32 = arith.constant 63 : i32
    %9 = tpu.dynamic_rotate %4 by %c63_i32 dim 0 : vector<64x16xf32>, i32 -> vector<64x16xf32>
    %c1 = arith.constant 1 : index
    %c0_7 = arith.constant 0 : index
    %c0_8 = arith.constant 0 : index
    %10 = vector.load %arg2[%c1, %c0_7, %c0_8] : memref<3x1x16xf32, #tpu.memory_space<vmem>>, vector<1x1x16xf32>
    %11 = vector.shape_cast %10 : vector<1x1x16xf32> to vector<1x16xf32>
    %12 = vector.broadcast %11 : vector<1x16xf32> to vector<64x16xf32>
    %13 = arith.mulf %9, %12 : vector<64x16xf32>
    %14 = arith.addf %8, %13 : vector<64x16xf32>
    %c62_i32 = arith.constant 62 : i32
    %15 = tpu.dynamic_rotate %4 by %c62_i32 dim 0 : vector<64x16xf32>, i32 -> vector<64x16xf32>
    %c2 = arith.constant 2 : index
    %c0_9 = arith.constant 0 : index
    %c0_10 = arith.constant 0 : index
    %16 = vector.load %arg2[%c2, %c0_9, %c0_10] : memref<3x1x16xf32, #tpu.memory_space<vmem>>, vector<1x1x16xf32>
    %17 = vector.shape_cast %16 : vector<1x1x16xf32> to vector<1x16xf32>
    %18 = vector.broadcast %17 : vector<1x16xf32> to vector<64x16xf32>
    %19 = arith.mulf %15, %18 : vector<64x16xf32>
    %20 = arith.addf %14, %19 : vector<64x16xf32>
    %21 = vector.extract_strided_slice %20 {offsets = [0, 0], sizes = [62, 16], strides = [1, 1]} : vector<64x16xf32> to vector<62x16xf32>
    %22 = vector.broadcast %2 : vector<1x16xf32> to vector<62x16xf32>
    %23 = arith.addf %21, %22 : vector<62x16xf32>
    %cst = arith.constant 2.000000e-01 : f32
    %24 = vector.broadcast %cst : f32 to vector<62x16xf32>
    %25 = arith.mulf %24, %23 : vector<62x16xf32>
    %26 = arith.maximumf %23, %25 : vector<62x16xf32>
    %c0_11 = arith.constant 0 : index
    %c0_12 = arith.constant 0 : index
    %27 = vector.load %arg5[%c0_11, %c0_12] : memref<1x16xf32, #tpu.memory_space<vmem>>, vector<1x16xf32>
    %28 = arith.truncf %26 : vector<62x16xf32> to vector<62x16xbf16>
    %c0_13 = arith.constant 0 : index
    %c0_14 = arith.constant 0 : index
    %c0_15 = arith.constant 0 : index
    %29 = vector.load %arg4[%c0_13, %c0_14, %c0_15] : memref<3x16x16xbf16, #tpu.memory_space<vmem>>, vector<1x16x16xbf16>
    %30 = vector.shape_cast %29 : vector<1x16x16xbf16> to vector<16x16xbf16>
    %cst_16 = arith.constant dense<0.000000e+00> : vector<62x16xf32>
    %31 = tpu.matmul %28, %30, %cst_16 {dimension_numbers = #tpu.dot_dimension_numbers<[1], [0], [0], [1], [0, 0, 1, 1], [], []>} : vector<62x16xbf16>, vector<16x16xbf16>, vector<62x16xf32> -> vector<62x16xf32>
    %c1_17 = arith.constant 1 : index
    %c0_18 = arith.constant 0 : index
    %c0_19 = arith.constant 0 : index
    %32 = vector.load %arg4[%c1_17, %c0_18, %c0_19] : memref<3x16x16xbf16, #tpu.memory_space<vmem>>, vector<1x16x16xbf16>
    %33 = vector.shape_cast %32 : vector<1x16x16xbf16> to vector<16x16xbf16>
    %cst_20 = arith.constant dense<0.000000e+00> : vector<62x16xf32>
    %34 = tpu.matmul %28, %33, %cst_20 {dimension_numbers = #tpu.dot_dimension_numbers<[1], [0], [0], [1], [0, 0, 1, 1], [], []>} : vector<62x16xbf16>, vector<16x16xbf16>, vector<62x16xf32> -> vector<62x16xf32>
    %c61_i32 = arith.constant 61 : i32
    %35 = tpu.dynamic_rotate %34 by %c61_i32 dim 0 : vector<62x16xf32>, i32 -> vector<62x16xf32>
    %36 = arith.addf %31, %35 : vector<62x16xf32>
    %c2_21 = arith.constant 2 : index
    %c0_22 = arith.constant 0 : index
    %c0_23 = arith.constant 0 : index
    %37 = vector.load %arg4[%c2_21, %c0_22, %c0_23] : memref<3x16x16xbf16, #tpu.memory_space<vmem>>, vector<1x16x16xbf16>
    %38 = vector.shape_cast %37 : vector<1x16x16xbf16> to vector<16x16xbf16>
    %cst_24 = arith.constant dense<0.000000e+00> : vector<62x16xf32>
    %39 = tpu.matmul %28, %38, %cst_24 {dimension_numbers = #tpu.dot_dimension_numbers<[1], [0], [0], [1], [0, 0, 1, 1], [], []>} : vector<62x16xbf16>, vector<16x16xbf16>, vector<62x16xf32> -> vector<62x16xf32>
    %c60_i32 = arith.constant 60 : i32
    %40 = tpu.dynamic_rotate %39 by %c60_i32 dim 0 : vector<62x16xf32>, i32 -> vector<62x16xf32>
    %41 = arith.addf %36, %40 : vector<62x16xf32>
    %42 = vector.extract_strided_slice %41 {offsets = [0, 0], sizes = [60, 16], strides = [1, 1]} : vector<62x16xf32> to vector<60x16xf32>
    %43 = vector.broadcast %27 : vector<1x16xf32> to vector<60x16xf32>
    %44 = arith.addf %42, %43 : vector<60x16xf32>
    %cst_25 = arith.constant 2.000000e-01 : f32
    %45 = vector.broadcast %cst_25 : f32 to vector<60x16xf32>
    %46 = arith.mulf %45, %44 : vector<60x16xf32>
    %47 = arith.maximumf %44, %46 : vector<60x16xf32>
    %c0_26 = arith.constant 0 : index
    %c0_27 = arith.constant 0 : index
    %c0_28 = arith.constant 0 : index
    %48 = vector.load %arg14[%c0_26, %c0_27, %c0_28] : memref<1x60x16xf32, #tpu.memory_space<vmem>>, vector<1x60x16xf32>
    %49 = vector.shape_cast %48 : vector<1x60x16xf32> to vector<60x16xf32>
    %50 = vector.shape_cast %47 : vector<60x16xf32> to vector<1x60x16xf32>
    tpu.vector_store %arg14[%c0_26, %c0_27, %c0_28], %50 {strides = array<i32>} : memref<1x60x16xf32, #tpu.memory_space<vmem>>, vector<1x60x16xf32>,
    %c59_i32 = arith.constant 59 : i32
    %51 = tpu.dynamic_rotate %47 by %c59_i32 dim 0 : vector<60x16xf32>, i32 -> vector<60x16xf32>
    %52 = arith.maximumf %47, %51 : vector<60x16xf32>
    %c0_29 = arith.constant 0 : index
    %c0_30 = arith.constant 0 : index
    %53 = vector.load %arg17[%c0_29, %c0_30] : memref<60x16xf32, #tpu.memory_space<vmem>>, vector<60x16xf32>
    tpu.vector_store %arg17[%c0_29, %c0_30], %52 {strides = array<i32>} : memref<60x16xf32, #tpu.memory_space<vmem>>, vector<60x16xf32>,
    %c0_31 = arith.constant 0 : index
    %c0_32 = arith.constant 0 : index
    %54 = tpu.strided_load %arg17[%c0_31, %c0_32] {strides = array<i32: 2, 1>} : memref<60x16xf32, #tpu.memory_space<vmem>>, vector<30x16xf32>
    %c0_33 = arith.constant 0 : index
    %c0_34 = arith.constant 0 : index
    %55 = vector.load %arg7[%c0_33, %c0_34] : memref<1x32xf32, #tpu.memory_space<vmem>>, vector<1x32xf32>
    %56 = arith.truncf %54 : vector<30x16xf32> to vector<30x16xbf16>
    %c0_35 = arith.constant 0 : index
    %c0_36 = arith.constant 0 : index
    %c0_37 = arith.constant 0 : index
    %57 = vector.load %arg6[%c0_35, %c0_36, %c0_37] : memref<3x16x32xbf16, #tpu.memory_space<vmem>>, vector<1x16x32xbf16>
    %58 = vector.shape_cast %57 : vector<1x16x32xbf16> to vector<16x32xbf16>
    %cst_38 = arith.constant dense<0.000000e+00> : vector<30x32xf32>
    %59 = tpu.matmul %56, %58, %cst_38 {dimension_numbers = #tpu.dot_dimension_numbers<[1], [0], [0], [1], [0, 0, 1, 1], [], []>} : vector<30x16xbf16>, vector<16x32xbf16>, vector<30x32xf32> -> vector<30x32xf32>
    %c1_39 = arith.constant 1 : index
    %c0_40 = arith.constant 0 : index
    %c0_41 = arith.constant 0 : index
    %60 = vector.load %arg6[%c1_39, %c0_40, %c0_41] : memref<3x16x32xbf16, #tpu.memory_space<vmem>>, vector<1x16x32xbf16>
    %61 = vector.shape_cast %60 : vector<1x16x32xbf16> to vector<16x32xbf16>
    %cst_42 = arith.constant dense<0.000000e+00> : vector<30x32xf32>
    %62 = tpu.matmul %56, %61, %cst_42 {dimension_numbers = #tpu.dot_dimension_numbers<[1], [0], [0], [1], [0, 0, 1, 1], [], []>} : vector<30x16xbf16>, vector<16x32xbf16>, vector<30x32xf32> -> vector<30x32xf32>
    %c29_i32 = arith.constant 29 : i32
    %63 = tpu.dynamic_rotate %62 by %c29_i32 dim 0 : vector<30x32xf32>, i32 -> vector<30x32xf32>
    %64 = arith.addf %59, %63 : vector<30x32xf32>
    %c2_43 = arith.constant 2 : index
    %c0_44 = arith.constant 0 : index
    %c0_45 = arith.constant 0 : index
    %65 = vector.load %arg6[%c2_43, %c0_44, %c0_45] : memref<3x16x32xbf16, #tpu.memory_space<vmem>>, vector<1x16x32xbf16>
    %66 = vector.shape_cast %65 : vector<1x16x32xbf16> to vector<16x32xbf16>
    %cst_46 = arith.constant dense<0.000000e+00> : vector<30x32xf32>
    %67 = tpu.matmul %56, %66, %cst_46 {dimension_numbers = #tpu.dot_dimension_numbers<[1], [0], [0], [1], [0, 0, 1, 1], [], []>} : vector<30x16xbf16>, vector<16x32xbf16>, vector<30x32xf32> -> vector<30x32xf32>
    %c28_i32 = arith.constant 28 : i32
    %68 = tpu.dynamic_rotate %67 by %c28_i32 dim 0 : vector<30x32xf32>, i32 -> vector<30x32xf32>
    %69 = arith.addf %64, %68 : vector<30x32xf32>
    %70 = vector.extract_strided_slice %69 {offsets = [0, 0], sizes = [28, 32], strides = [1, 1]} : vector<30x32xf32> to vector<28x32xf32>
    %71 = vector.broadcast %55 : vector<1x32xf32> to vector<28x32xf32>
    %72 = arith.addf %70, %71 : vector<28x32xf32>
    %cst_47 = arith.constant 2.000000e-01 : f32
    %73 = vector.broadcast %cst_47 : f32 to vector<28x32xf32>
    %74 = arith.mulf %73, %72 : vector<28x32xf32>
    %75 = arith.maximumf %72, %74 : vector<28x32xf32>
    %c0_48 = arith.constant 0 : index
    %c0_49 = arith.constant 0 : index
    %76 = vector.load %arg9[%c0_48, %c0_49] : memref<1x32xf32, #tpu.memory_space<vmem>>, vector<1x32xf32>
    %77 = arith.truncf %75 : vector<28x32xf32> to vector<28x32xbf16>
    %c0_50 = arith.constant 0 : index
    %c0_51 = arith.constant 0 : index
    %c0_52 = arith.constant 0 : index
    %78 = vector.load %arg8[%c0_50, %c0_51, %c0_52] : memref<3x32x32xbf16, #tpu.memory_space<vmem>>, vector<1x32x32xbf16>
    %79 = vector.shape_cast %78 : vector<1x32x32xbf16> to vector<32x32xbf16>
    %cst_53 = arith.constant dense<0.000000e+00> : vector<28x32xf32>
    %80 = tpu.matmul %77, %79, %cst_53 {dimension_numbers = #tpu.dot_dimension_numbers<[1], [0], [0], [1], [0, 0, 1, 1], [], []>} : vector<28x32xbf16>, vector<32x32xbf16>, vector<28x32xf32> -> vector<28x32xf32>
    %c1_54 = arith.constant 1 : index
    %c0_55 = arith.constant 0 : index
    %c0_56 = arith.constant 0 : index
    %81 = vector.load %arg8[%c1_54, %c0_55, %c0_56] : memref<3x32x32xbf16, #tpu.memory_space<vmem>>, vector<1x32x32xbf16>
    %82 = vector.shape_cast %81 : vector<1x32x32xbf16> to vector<32x32xbf16>
    %cst_57 = arith.constant dense<0.000000e+00> : vector<28x32xf32>
    %83 = tpu.matmul %77, %82, %cst_57 {dimension_numbers = #tpu.dot_dimension_numbers<[1], [0], [0], [1], [0, 0, 1, 1], [], []>} : vector<28x32xbf16>, vector<32x32xbf16>, vector<28x32xf32> -> vector<28x32xf32>
    %c27_i32 = arith.constant 27 : i32
    %84 = tpu.dynamic_rotate %83 by %c27_i32 dim 0 : vector<28x32xf32>, i32 -> vector<28x32xf32>
    %85 = arith.addf %80, %84 : vector<28x32xf32>
    %c2_58 = arith.constant 2 : index
    %c0_59 = arith.constant 0 : index
    %c0_60 = arith.constant 0 : index
    %86 = vector.load %arg8[%c2_58, %c0_59, %c0_60] : memref<3x32x32xbf16, #tpu.memory_space<vmem>>, vector<1x32x32xbf16>
    %87 = vector.shape_cast %86 : vector<1x32x32xbf16> to vector<32x32xbf16>
    %cst_61 = arith.constant dense<0.000000e+00> : vector<28x32xf32>
    %88 = tpu.matmul %77, %87, %cst_61 {dimension_numbers = #tpu.dot_dimension_numbers<[1], [0], [0], [1], [0, 0, 1, 1], [], []>} : vector<28x32xbf16>, vector<32x32xbf16>, vector<28x32xf32> -> vector<28x32xf32>
    %c26_i32 = arith.constant 26 : i32
    %89 = tpu.dynamic_rotate %88 by %c26_i32 dim 0 : vector<28x32xf32>, i32 -> vector<28x32xf32>
    %90 = arith.addf %85, %89 : vector<28x32xf32>
    %91 = vector.extract_strided_slice %90 {offsets = [0, 0], sizes = [26, 32], strides = [1, 1]} : vector<28x32xf32> to vector<26x32xf32>
    %92 = vector.broadcast %76 : vector<1x32xf32> to vector<26x32xf32>
    %93 = arith.addf %91, %92 : vector<26x32xf32>
    %cst_62 = arith.constant 2.000000e-01 : f32
    %94 = vector.broadcast %cst_62 : f32 to vector<26x32xf32>
    %95 = arith.mulf %94, %93 : vector<26x32xf32>
    %96 = arith.maximumf %93, %95 : vector<26x32xf32>
    %c0_63 = arith.constant 0 : index
    %c0_64 = arith.constant 0 : index
    %c0_65 = arith.constant 0 : index
    %97 = vector.load %arg15[%c0_63, %c0_64, %c0_65] : memref<1x26x32xf32, #tpu.memory_space<vmem>>, vector<1x26x32xf32>
    %98 = vector.shape_cast %97 : vector<1x26x32xf32> to vector<26x32xf32>
    %99 = vector.shape_cast %96 : vector<26x32xf32> to vector<1x26x32xf32>
    tpu.vector_store %arg15[%c0_63, %c0_64, %c0_65], %99 {strides = array<i32>} : memref<1x26x32xf32, #tpu.memory_space<vmem>>, vector<1x26x32xf32>,
    %c25_i32 = arith.constant 25 : i32
    %100 = tpu.dynamic_rotate %96 by %c25_i32 dim 0 : vector<26x32xf32>, i32 -> vector<26x32xf32>
    %101 = arith.maximumf %96, %100 : vector<26x32xf32>
    %c0_66 = arith.constant 0 : index
    %c0_67 = arith.constant 0 : index
    %102 = vector.load %arg18[%c0_66, %c0_67] : memref<26x32xf32, #tpu.memory_space<vmem>>, vector<26x32xf32>
    tpu.vector_store %arg18[%c0_66, %c0_67], %101 {strides = array<i32>} : memref<26x32xf32, #tpu.memory_space<vmem>>, vector<26x32xf32>,
    %c0_68 = arith.constant 0 : index
    %c0_69 = arith.constant 0 : index
    %103 = tpu.strided_load %arg18[%c0_68, %c0_69] {strides = array<i32: 2, 1>} : memref<26x32xf32, #tpu.memory_space<vmem>>, vector<13x32xf32>
    %c0_70 = arith.constant 0 : index
    %c0_71 = arith.constant 0 : index
    %104 = vector.load %arg11[%c0_70, %c0_71] : memref<1x64xf32, #tpu.memory_space<vmem>>, vector<1x64xf32>
    %105 = arith.truncf %103 : vector<13x32xf32> to vector<13x32xbf16>
    %c0_72 = arith.constant 0 : index
    %c0_73 = arith.constant 0 : index
    %c0_74 = arith.constant 0 : index
    %106 = vector.load %arg10[%c0_72, %c0_73, %c0_74] : memref<3x32x64xbf16, #tpu.memory_space<vmem>>, vector<1x32x64xbf16>
    %107 = vector.shape_cast %106 : vector<1x32x64xbf16> to vector<32x64xbf16>
    %cst_75 = arith.constant dense<0.000000e+00> : vector<13x64xf32>
    %108 = tpu.matmul %105, %107, %cst_75 {dimension_numbers = #tpu.dot_dimension_numbers<[1], [0], [0], [1], [0, 0, 1, 1], [], []>} : vector<13x32xbf16>, vector<32x64xbf16>, vector<13x64xf32> -> vector<13x64xf32>
    %c1_76 = arith.constant 1 : index
    %c0_77 = arith.constant 0 : index
    %c0_78 = arith.constant 0 : index
    %109 = vector.load %arg10[%c1_76, %c0_77, %c0_78] : memref<3x32x64xbf16, #tpu.memory_space<vmem>>, vector<1x32x64xbf16>
    %110 = vector.shape_cast %109 : vector<1x32x64xbf16> to vector<32x64xbf16>
    %cst_79 = arith.constant dense<0.000000e+00> : vector<13x64xf32>
    %111 = tpu.matmul %105, %110, %cst_79 {dimension_numbers = #tpu.dot_dimension_numbers<[1], [0], [0], [1], [0, 0, 1, 1], [], []>} : vector<13x32xbf16>, vector<32x64xbf16>, vector<13x64xf32> -> vector<13x64xf32>
    %c12_i32 = arith.constant 12 : i32
    %112 = tpu.dynamic_rotate %111 by %c12_i32 dim 0 : vector<13x64xf32>, i32 -> vector<13x64xf32>
    %113 = arith.addf %108, %112 : vector<13x64xf32>
    %c2_80 = arith.constant 2 : index
    %c0_81 = arith.constant 0 : index
    %c0_82 = arith.constant 0 : index
    %114 = vector.load %arg10[%c2_80, %c0_81, %c0_82] : memref<3x32x64xbf16, #tpu.memory_space<vmem>>, vector<1x32x64xbf16>
    %115 = vector.shape_cast %114 : vector<1x32x64xbf16> to vector<32x64xbf16>
    %cst_83 = arith.constant dense<0.000000e+00> : vector<13x64xf32>
    %116 = tpu.matmul %105, %115, %cst_83 {dimension_numbers = #tpu.dot_dimension_numbers<[1], [0], [0], [1], [0, 0, 1, 1], [], []>} : vector<13x32xbf16>, vector<32x64xbf16>, vector<13x64xf32> -> vector<13x64xf32>
    %c11_i32 = arith.constant 11 : i32
    %117 = tpu.dynamic_rotate %116 by %c11_i32 dim 0 : vector<13x64xf32>, i32 -> vector<13x64xf32>
    %118 = arith.addf %113, %117 : vector<13x64xf32>
    %119 = vector.extract_strided_slice %118 {offsets = [0, 0], sizes = [11, 64], strides = [1, 1]} : vector<13x64xf32> to vector<11x64xf32>
    %120 = vector.broadcast %104 : vector<1x64xf32> to vector<11x64xf32>
    %121 = arith.addf %119, %120 : vector<11x64xf32>
    %cst_84 = arith.constant 2.000000e-01 : f32
    %122 = vector.broadcast %cst_84 : f32 to vector<11x64xf32>
    %123 = arith.mulf %122, %121 : vector<11x64xf32>
    %124 = arith.maximumf %121, %123 : vector<11x64xf32>
    %c0_85 = arith.constant 0 : index
    %c0_86 = arith.constant 0 : index
    %125 = vector.load %arg13[%c0_85, %c0_86] : memref<1x64xf32, #tpu.memory_space<vmem>>, vector<1x64xf32>
    %126 = arith.truncf %124 : vector<11x64xf32> to vector<11x64xbf16>
    %c0_87 = arith.constant 0 : index
    %c0_88 = arith.constant 0 : index
    %c0_89 = arith.constant 0 : index
    %127 = vector.load %arg12[%c0_87, %c0_88, %c0_89] : memref<3x64x64xbf16, #tpu.memory_space<vmem>>, vector<1x64x64xbf16>
    %128 = vector.shape_cast %127 : vector<1x64x64xbf16> to vector<64x64xbf16>
    %cst_90 = arith.constant dense<0.000000e+00> : vector<11x64xf32>
    %129 = tpu.matmul %126, %128, %cst_90 {dimension_numbers = #tpu.dot_dimension_numbers<[1], [0], [0], [1], [0, 0, 1, 1], [], []>} : vector<11x64xbf16>, vector<64x64xbf16>, vector<11x64xf32> -> vector<11x64xf32>
    %c1_91 = arith.constant 1 : index
    %c0_92 = arith.constant 0 : index
    %c0_93 = arith.constant 0 : index
    %130 = vector.load %arg12[%c1_91, %c0_92, %c0_93] : memref<3x64x64xbf16, #tpu.memory_space<vmem>>, vector<1x64x64xbf16>
    %131 = vector.shape_cast %130 : vector<1x64x64xbf16> to vector<64x64xbf16>
    %cst_94 = arith.constant dense<0.000000e+00> : vector<11x64xf32>
    %132 = tpu.matmul %126, %131, %cst_94 {dimension_numbers = #tpu.dot_dimension_numbers<[1], [0], [0], [1], [0, 0, 1, 1], [], []>} : vector<11x64xbf16>, vector<64x64xbf16>, vector<11x64xf32> -> vector<11x64xf32>
    %c10_i32 = arith.constant 10 : i32
    %133 = tpu.dynamic_rotate %132 by %c10_i32 dim 0 : vector<11x64xf32>, i32 -> vector<11x64xf32>
    %134 = arith.addf %129, %133 : vector<11x64xf32>
    %c2_95 = arith.constant 2 : index
    %c0_96 = arith.constant 0 : index
    %c0_97 = arith.constant 0 : index
    %135 = vector.load %arg12[%c2_95, %c0_96, %c0_97] : memref<3x64x64xbf16, #tpu.memory_space<vmem>>, vector<1x64x64xbf16>
    %136 = vector.shape_cast %135 : vector<1x64x64xbf16> to vector<64x64xbf16>
    %cst_98 = arith.constant dense<0.000000e+00> : vector<11x64xf32>
    %137 = tpu.matmul %126, %136, %cst_98 {dimension_numbers = #tpu.dot_dimension_numbers<[1], [0], [0], [1], [0, 0, 1, 1], [], []>} : vector<11x64xbf16>, vector<64x64xbf16>, vector<11x64xf32> -> vector<11x64xf32>
    %c9_i32 = arith.constant 9 : i32
    %138 = tpu.dynamic_rotate %137 by %c9_i32 dim 0 : vector<11x64xf32>, i32 -> vector<11x64xf32>
    %139 = arith.addf %134, %138 : vector<11x64xf32>
    %140 = vector.extract_strided_slice %139 {offsets = [0, 0], sizes = [9, 64], strides = [1, 1]} : vector<11x64xf32> to vector<9x64xf32>
    %141 = vector.broadcast %125 : vector<1x64xf32> to vector<9x64xf32>
    %142 = arith.addf %140, %141 : vector<9x64xf32>
    %cst_99 = arith.constant 2.000000e-01 : f32
    %143 = vector.broadcast %cst_99 : f32 to vector<9x64xf32>
    %144 = arith.mulf %143, %142 : vector<9x64xf32>
    %145 = arith.maximumf %142, %144 : vector<9x64xf32>
    %c0_100 = arith.constant 0 : index
    %c0_101 = arith.constant 0 : index
    %c0_102 = arith.constant 0 : index
    %146 = vector.load %arg16[%c0_100, %c0_101, %c0_102] : memref<1x9x64xf32, #tpu.memory_space<vmem>>, vector<1x9x64xf32>
    %147 = vector.shape_cast %146 : vector<1x9x64xf32> to vector<9x64xf32>
    %148 = vector.shape_cast %145 : vector<9x64xf32> to vector<1x9x64xf32>
    tpu.vector_store %arg16[%c0_100, %c0_101, %c0_102], %148 {strides = array<i32>} : memref<1x9x64xf32, #tpu.memory_space<vmem>>, vector<1x9x64xf32>,
    return
  }
  func.func @transform_0(%arg0: i32) -> (i32, i32, i32) {
    %c0_i32 = arith.constant 0 : i32
    %c0_i32_0 = arith.constant 0 : i32
    %c0_i32_1 = arith.constant 0 : i32
    return %arg0, %c0_i32, %c0_i32_0 : i32, i32, i32
  }
  func.func @transform_1(%arg0: i32) -> (i32, i32, i32) {
    %c0_i32 = arith.constant 0 : i32
    %c0_i32_0 = arith.constant 0 : i32
    %c0_i32_1 = arith.constant 0 : i32
    %c0_i32_2 = arith.constant 0 : i32
    return %c0_i32, %c0_i32_0, %c0_i32_1 : i32, i32, i32
  }
  func.func @transform_2(%arg0: i32) -> (i32, i32) {
    %c0_i32 = arith.constant 0 : i32
    %c0_i32_0 = arith.constant 0 : i32
    %c0_i32_1 = arith.constant 0 : i32
    return %c0_i32, %c0_i32_0 : i32, i32
  }
  func.func @transform_3(%arg0: i32) -> (i32, i32, i32) {
    %c0_i32 = arith.constant 0 : i32
    %c0_i32_0 = arith.constant 0 : i32
    %c0_i32_1 = arith.constant 0 : i32
    %c0_i32_2 = arith.constant 0 : i32
    return %c0_i32, %c0_i32_0, %c0_i32_1 : i32, i32, i32
  }
  func.func @transform_4(%arg0: i32) -> (i32, i32) {
    %c0_i32 = arith.constant 0 : i32
    %c0_i32_0 = arith.constant 0 : i32
    %c0_i32_1 = arith.constant 0 : i32
    return %c0_i32, %c0_i32_0 : i32, i32
  }
  func.func @transform_5(%arg0: i32) -> (i32, i32, i32) {
    %c0_i32 = arith.constant 0 : i32
    %c0_i32_0 = arith.constant 0 : i32
    %c0_i32_1 = arith.constant 0 : i32
    %c0_i32_2 = arith.constant 0 : i32
    return %c0_i32, %c0_i32_0, %c0_i32_1 : i32, i32, i32
  }
  func.func @transform_6(%arg0: i32) -> (i32, i32) {
    %c0_i32 = arith.constant 0 : i32
    %c0_i32_0 = arith.constant 0 : i32
    %c0_i32_1 = arith.constant 0 : i32
    return %c0_i32, %c0_i32_0 : i32, i32
  }
  func.func @transform_7(%arg0: i32) -> (i32, i32, i32) {
    %c0_i32 = arith.constant 0 : i32
    %c0_i32_0 = arith.constant 0 : i32
    %c0_i32_1 = arith.constant 0 : i32
    %c0_i32_2 = arith.constant 0 : i32
    return %c0_i32, %c0_i32_0, %c0_i32_1 : i32, i32, i32
  }
  func.func @transform_8(%arg0: i32) -> (i32, i32) {
    %c0_i32 = arith.constant 0 : i32
    %c0_i32_0 = arith.constant 0 : i32
    %c0_i32_1 = arith.constant 0 : i32
    return %c0_i32, %c0_i32_0 : i32, i32
  }
  func.func @transform_9(%arg0: i32) -> (i32, i32, i32) {
    %c0_i32 = arith.constant 0 : i32
    %c0_i32_0 = arith.constant 0 : i32
    %c0_i32_1 = arith.constant 0 : i32
    %c0_i32_2 = arith.constant 0 : i32
    return %c0_i32, %c0_i32_0, %c0_i32_1 : i32, i32, i32
  }
  func.func @transform_10(%arg0: i32) -> (i32, i32) {
    %c0_i32 = arith.constant 0 : i32
    %c0_i32_0 = arith.constant 0 : i32
    %c0_i32_1 = arith.constant 0 : i32
    return %c0_i32, %c0_i32_0 : i32, i32
  }
  func.func @transform_11(%arg0: i32) -> (i32, i32, i32) {
    %c0_i32 = arith.constant 0 : i32
    %c0_i32_0 = arith.constant 0 : i32
    %c0_i32_1 = arith.constant 0 : i32
    %c0_i32_2 = arith.constant 0 : i32
    return %c0_i32, %c0_i32_0, %c0_i32_1 : i32, i32, i32
  }
  func.func @transform_12(%arg0: i32) -> (i32, i32) {
    %c0_i32 = arith.constant 0 : i32
    %c0_i32_0 = arith.constant 0 : i32
    %c0_i32_1 = arith.constant 0 : i32
    return %c0_i32, %c0_i32_0 : i32, i32
  }
  func.func @transform_13(%arg0: i32) -> (i32, i32, i32) {
    %c0_i32 = arith.constant 0 : i32
    %c0_i32_0 = arith.constant 0 : i32
    %c0_i32_1 = arith.constant 0 : i32
    return %arg0, %c0_i32, %c0_i32_0 : i32, i32, i32
  }
  func.func @transform_14(%arg0: i32) -> (i32, i32, i32) {
    %c0_i32 = arith.constant 0 : i32
    %c0_i32_0 = arith.constant 0 : i32
    %c0_i32_1 = arith.constant 0 : i32
    return %arg0, %c0_i32, %c0_i32_0 : i32, i32, i32
  }
  func.func @transform_15(%arg0: i32) -> (i32, i32, i32) {
    %c0_i32 = arith.constant 0 : i32
    %c0_i32_0 = arith.constant 0 : i32
    %c0_i32_1 = arith.constant 0 : i32
    return %arg0, %c0_i32, %c0_i32_0 : i32, i32, i32
  }
}

</mosaic_0001>

<llo_original>
// kernel: tpu_custom_call.1
$region0: #{tpu_custom_call.1}
  #allocation0 [shape = 'u32[]', space=smem, size = 0x4, offset = 0x4, fixed_abs, tag = 'smem constant byte address 0x4 - core index']
  #allocation1 [shape = 'u32[144,128]{1,0:T(1,128)}', space=vmem, size = 0x12000, scoped, tag = 'internal scratch']
  #allocation2 [shape = 'f32[60,16]{1,0:T(8,128)}', space=vmem, size = 0x8000, scoped, tag = 'scratch operand']
  #allocation3 [shape = 'f32[26,32]{1,0:T(8,128)}', space=vmem, size = 0x4000, scoped, tag = 'scratch operand']
  %s0 = inlined_call_operand.vmem [shape: f32[2,64,1], index: 0, kind: input, shape index: {}]
  %s1 = inlined_call_operand.vmem [shape: f32[3,1,16], index: 1, kind: input, shape index: {}]
  %s2 = inlined_call_operand.vmem [shape: f32[1,16], index: 2, kind: input, shape index: {}]
  %s3 = inlined_call_operand.hbm [shape: bf16[3,16,16], index: 3, kind: input, shape index: {}]
  %s4 = inlined_call_operand.vmem [shape: f32[1,16], index: 4, kind: input, shape index: {}]
  %s5 = inlined_call_operand.hbm [shape: bf16[3,16,32], index: 5, kind: input, shape index: {}]
  %s6 = inlined_call_operand.vmem [shape: f32[1,32], index: 6, kind: input, shape index: {}]
  %s7 = inlined_call_operand.vmem [shape: bf16[3,32,32], index: 7, kind: input, shape index: {}]
  %s8 = inlined_call_operand.hbm [shape: f32[1,32], index: 8, kind: input, shape index: {}]
  %s9 = inlined_call_operand.hbm [shape: bf16[3,32,64], index: 9, kind: input, shape index: {}]
  %s10 = inlined_call_operand.hbm [shape: f32[1,64], index: 10, kind: input, shape index: {}]
  %s11 = inlined_call_operand.vmem [shape: bf16[3,64,64], index: 11, kind: input, shape index: {}]
  %s12 = inlined_call_operand.vmem [shape: f32[1,64], index: 12, kind: input, shape index: {}]
  %s13 = inlined_call_operand.vmem [shape: f32[2,60,16], index: 13, kind: output, shape index: {0}]
  %s14 = inlined_call_operand.vmem [shape: f32[2,26,32], index: 14, kind: output, shape index: {1}]
  %s15 = inlined_call_operand.vmem [shape: f32[2,9,64], index: 15, kind: output, shape index: {2}]
  %16 = xla_tuple %s13, %s14, %s15
  %s17 = sld [smem:[#allocation0]]
  $region121: #{tpu_custom_call.1} parent=0
    _
  %s19 = ssub.s32 1, %s17
  %s20 = scalar_select 0, %s19, %s17
  $region1: #{tpu_custom_call.1} parent=0
    #allocation4 [shape = 'u8[12288]{0}', space=vmem, size = 0x3000, scoped, tag = 'input window, operand 3, single buffered']
    #allocation5 [shape = 's32[2]{0}', space=sflag, size = 0x8, scoped, tag = 'scoped memory for tpu_custom_call.1']
    #allocation6 [shape = 'u8[12288]{0}', space=vmem, size = 0x3000, scoped, tag = 'input window, operand 5, single buffered']
    #allocation7 [shape = 's32[1]{0}', space=sflag, size = 0x4, scoped, tag = 'scoped memory for tpu_custom_call.1']
    #allocation8 [shape = 'u8[512]{0}', space=vmem, size = 0x400, scoped, tag = 'input window, operand 8, single buffered']
    #allocation9 [shape = 'u8[24576]{0}', space=vmem, size = 0x6000, scoped, tag = 'input window, operand 9, single buffered']
    #allocation10 [shape = 's32[1]{0}', space=sflag, size = 0x4, scoped, tag = 'scoped memory for tpu_custom_call.1']
    #allocation11 [shape = 'u8[512]{0}', space=vmem, size = 0x400, scoped, tag = 'input window, operand 10, single buffered']
    %21 = vsyncpa [#allocation5], 0
    %22 = vsyncpa [#allocation7], 0
    %23 = vsyncpa [#allocation10], 0
    loop: start=0, step=1, limit=4
    $region2: #{tpu_custom_call.1} parent=1 // loop_pre_header
      _
    $region3: #{tpu_custom_call.1} parent=1 // loop_header
      %s25 = sphi 0, %s29
      %p26 = scmp.ge.s32.totalorder %s25, 4
      %s35 = sphi 0, %s37
      %s38 = sphi 0, %s35
      %s39 = sphi 0, %s38
      %s55 = sphi 0, %s39
      %s59 = sphi 0, %s59
      %s61 = sphi 0, %s59
      %s62 = sphi 0, %s61
      %s76 = sphi 0, %s62
      %s80 = sphi 0, %s80
      %s82 = sphi 0, %s80
      %s83 = sphi 0, %s82
      %s97 = sphi 0, %s83
      %s101 = sphi 0, %s101
      %s103 = sphi 0, %s101
      %s104 = sphi 0, %s103
      %s118 = sphi 0, %s104
      %s122 = sphi 0, %s122
      %s124 = sphi 0, %s122
      %s125 = sphi 0, %s124
      %s139 = sphi 0, %s125
      %s143 = sphi 0, %s143
      %s145 = sphi 0, %s143
      %s146 = sphi 0, %s145
      %s160 = sphi 0, %s146
      %s164 = sphi 0, %s164
      %s166 = sphi 0, %s164
      %s167 = sphi 0, %s166
      %s181 = sphi 0, %s167
      %s185 = sphi 0, %s185
      %s187 = sphi 0, %s185
      %s188 = sphi 0, %s187
      %s202 = sphi 0, %s188
      %s206 = sphi 0, %s206
      %s208 = sphi 0, %s206
      %s209 = sphi 0, %s208
      %s223 = sphi 0, %s209
      %s227 = sphi 0, %s227
      %s229 = sphi 0, %s227
      %s230 = sphi 0, %s229
      %s244 = sphi 0, %s230
      %s248 = sphi 0, %s248
      %s250 = sphi 0, %s248
      %s251 = sphi 0, %s250
      %s265 = sphi 0, %s251
      %s269 = sphi 0, %s269
      %s271 = sphi 0, %s269
      %s272 = sphi 0, %s271
      %s286 = sphi 0, %s272
      %s290 = sphi 0, %s290
      %s292 = sphi 0, %s290
      %s293 = sphi 0, %s292
      %s307 = sphi 0, %s293
      %s313 = sphi 0, %s315
      %s316 = sphi 0, %s313
      %s317 = sphi 0, %s316
      %s333 = sphi 0, %s317
      %s339 = sphi 0, %s341
      %s342 = sphi 0, %s339
      %s343 = sphi 0, %s342
      %s359 = sphi 0, %s343
      %s365 = sphi 0, %s367
      %s368 = sphi 0, %s365
      %s369 = sphi 0, %s368
      %s385 = sphi 0, %s369
    $region4: #{tpu_custom_call.1} parent=1 // loop_header_branch
      %28 = sbr.rel (%p26) target = $region8
    $region5: #{tpu_custom_call.1} parent=1 // loop_body
      %s30 = ssub.s32 %s25, 1
      %s31 = ssub.s32 %s25, 2
      %s32 = sadd.s32 %s25, 1
      %s33 = ssub.s32 %s25, %s32
      %p34 = scmp.eq.s32.totalorder %s33, 0
      %s36 = sadd.s32 %s35, 1
      %s37 = scalar_select %p34, %s35, %s36
      %p40 = pneg %p34
      %p41 = scmp.eq.s32.totalorder %s25, 1
      %p42 = por %p40, %p41
      %p43 = scmp.ne.s32.totalorder %s35, %s38
      %p44 = scmp.eq.s32.totalorder %s25, 0
      %p45 = por %p43, %p44
      %p46 = scmp.ne.s32.totalorder %s35, %s38
      %p47 = scmp.eq.s32.totalorder %s30, 1
      %p48 = por %p46, %p47
      %p49 = scmp.ne.s32.totalorder %s38, %s39
      %p50 = scmp.eq.s32.totalorder %s30, 0
      %p51 = por %p49, %p50
      %p52 = scmp.ne.s32.totalorder %s38, %s39
      %p53 = scmp.eq.s32.totalorder %s31, 1
      %p54 = por %p52, %p53
      %p56 = scmp.ne.s32.totalorder %s39, %s55
      %p57 = scmp.eq.s32.totalorder %s31, 0
      %p58 = por %p56, %p57
      %s60 = sadd.s32 %s59, 1
      %p63 = scmp.eq.s32.totalorder %s25, 1
      %p64 = scmp.ne.s32.totalorder %s59, %s61
      %p65 = scmp.eq.s32.totalorder %s25, 0
      %p66 = por %p64, %p65
      %p67 = scmp.ne.s32.totalorder %s59, %s61
      %p68 = scmp.eq.s32.totalorder %s30, 1
      %p69 = por %p67, %p68
      %p70 = scmp.ne.s32.totalorder %s61, %s62
      %p71 = scmp.eq.s32.totalorder %s30, 0
      %p72 = por %p70, %p71
      %p73 = scmp.ne.s32.totalorder %s61, %s62
      %p74 = scmp.eq.s32.totalorder %s31, 1
      %p75 = por %p73, %p74
      %p77 = scmp.ne.s32.totalorder %s62, %s76
      %p78 = scmp.eq.s32.totalorder %s31, 0
      %p79 = por %p77, %p78
      %s81 = sadd.s32 %s80, 1
      %p84 = scmp.eq.s32.totalorder %s25, 1
      %p85 = scmp.ne.s32.totalorder %s80, %s82
      %p86 = scmp.eq.s32.totalorder %s25, 0
      %p87 = por %p85, %p86
      %p88 = scmp.ne.s32.totalorder %s80, %s82
      %p89 = scmp.eq.s32.totalorder %s30, 1
      %p90 = por %p88, %p89
      %p91 = scmp.ne.s32.totalorder %s82, %s83
      %p92 = scmp.eq.s32.totalorder %s30, 0
      %p93 = por %p91, %p92
      %p94 = scmp.ne.s32.totalorder %s82, %s83
      %p95 = scmp.eq.s32.totalorder %s31, 1
      %p96 = por %p94, %p95
      %p98 = scmp.ne.s32.totalorder %s83, %s97
      %p99 = scmp.eq.s32.totalorder %s31, 0
      %p100 = por %p98, %p99
      %s102 = sadd.s32 %s101, 1
      %p105 = scmp.eq.s32.totalorder %s25, 1
      %p106 = scmp.ne.s32.totalorder %s101, %s103
      %p107 = scmp.eq.s32.totalorder %s25, 0
      %p108 = por %p106, %p107
      %p109 = scmp.ne.s32.totalorder %s101, %s103
      %p110 = scmp.eq.s32.totalorder %s30, 1
      %p111 = por %p109, %p110
      %p112 = scmp.ne.s32.totalorder %s103, %s104
      %p113 = scmp.eq.s32.totalorder %s30, 0
      %p114 = por %p112, %p113
      %p115 = scmp.ne.s32.totalorder %s103, %s104
      %p116 = scmp.eq.s32.totalorder %s31, 1
      %p117 = por %p115, %p116
      %p119 = scmp.ne.s32.totalorder %s104, %s118
      %p120 = scmp.eq.s32.totalorder %s31, 0
      %p121 = por %p119, %p120
      %s123 = sadd.s32 %s122, 1
      %p126 = scmp.eq.s32.totalorder %s25, 1
      %p127 = scmp.ne.s32.totalorder %s122, %s124
      %p128 = scmp.eq.s32.totalorder %s25, 0
      %p129 = por %p127, %p128
      %p130 = scmp.ne.s32.totalorder %s122, %s124
      %p131 = scmp.eq.s32.totalorder %s30, 1
      %p132 = por %p130, %p131
      %p133 = scmp.ne.s32.totalorder %s124, %s125
      %p134 = scmp.eq.s32.totalorder %s30, 0
      %p135 = por %p133, %p134
      %p136 = scmp.ne.s32.totalorder %s124, %s125
      %p137 = scmp.eq.s32.totalorder %s31, 1
      %p138 = por %p136, %p137
      %p140 = scmp.ne.s32.totalorder %s125, %s139
      %p141 = scmp.eq.s32.totalorder %s31, 0
      %p142 = por %p140, %p141
      %s144 = sadd.s32 %s143, 1
      %p147 = scmp.eq.s32.totalorder %s25, 1
      %p148 = scmp.ne.s32.totalorder %s143, %s145
      %p149 = scmp.eq.s32.totalorder %s25, 0
      %p150 = por %p148, %p149
      %p151 = scmp.ne.s32.totalorder %s143, %s145
      %p152 = scmp.eq.s32.totalorder %s30, 1
      %p153 = por %p151, %p152
      %p154 = scmp.ne.s32.totalorder %s145, %s146
      %p155 = scmp.eq.s32.totalorder %s30, 0
      %p156 = por %p154, %p155
      %p157 = scmp.ne.s32.totalorder %s145, %s146
      %p158 = scmp.eq.s32.totalorder %s31, 1
      %p159 = por %p157, %p158
      %p161 = scmp.ne.s32.totalorder %s146, %s160
      %p162 = scmp.eq.s32.totalorder %s31, 0
      %p163 = por %p161, %p162
      %s165 = sadd.s32 %s164, 1
      %p168 = scmp.eq.s32.totalorder %s25, 1
      %p169 = scmp.ne.s32.totalorder %s164, %s166
      %p170 = scmp.eq.s32.totalorder %s25, 0
      %p171 = por %p169, %p170
      %p172 = scmp.ne.s32.totalorder %s164, %s166
      %p173 = scmp.eq.s32.totalorder %s30, 1
      %p174 = por %p172, %p173
      %p175 = scmp.ne.s32.totalorder %s166, %s167
      %p176 = scmp.eq.s32.totalorder %s30, 0
      %p177 = por %p175, %p176
      %p178 = scmp.ne.s32.totalorder %s166, %s167
      %p179 = scmp.eq.s32.totalorder %s31, 1
      %p180 = por %p178, %p179
      %p182 = scmp.ne.s32.totalorder %s167, %s181
      %p183 = scmp.eq.s32.totalorder %s31, 0
      %p184 = por %p182, %p183
      %s186 = sadd.s32 %s185, 1
      %p189 = scmp.eq.s32.totalorder %s25, 1
      %p190 = scmp.ne.s32.totalorder %s185, %s187
      %p191 = scmp.eq.s32.totalorder %s25, 0
      %p192 = por %p190, %p191
      %p193 = scmp.ne.s32.totalorder %s185, %s187
      %p194 = scmp.eq.s32.totalorder %s30, 1
      %p195 = por %p193, %p194
      %p196 = scmp.ne.s32.totalorder %s187, %s188
      %p197 = scmp.eq.s32.totalorder %s30, 0
      %p198 = por %p196, %p197
      %p199 = scmp.ne.s32.totalorder %s187, %s188
      %p200 = scmp.eq.s32.totalorder %s31, 1
      %p201 = por %p199, %p200
      %p203 = scmp.ne.s32.totalorder %s188, %s202
      %p204 = scmp.eq.s32.totalorder %s31, 0
      %p205 = por %p203, %p204
      %s207 = sadd.s32 %s206, 1
      %p210 = scmp.eq.s32.totalorder %s25, 1
      %p211 = scmp.ne.s32.totalorder %s206, %s208
      %p212 = scmp.eq.s32.totalorder %s25, 0
      %p213 = por %p211, %p212
      %p214 = scmp.ne.s32.totalorder %s206, %s208
      %p215 = scmp.eq.s32.totalorder %s30, 1
      %p216 = por %p214, %p215
      %p217 = scmp.ne.s32.totalorder %s208, %s209
      %p218 = scmp.eq.s32.totalorder %s30, 0
      %p219 = por %p217, %p218
      %p220 = scmp.ne.s32.totalorder %s208, %s209
      %p221 = scmp.eq.s32.totalorder %s31, 1
      %p222 = por %p220, %p221
      %p224 = scmp.ne.s32.totalorder %s209, %s223
      %p225 = scmp.eq.s32.totalorder %s31, 0
      %p226 = por %p224, %p225
      %s228 = sadd.s32 %s227, 1
      %p231 = scmp.eq.s32.totalorder %s25, 1
      %p232 = scmp.ne.s32.totalorder %s227, %s229
      %p233 = scmp.eq.s32.totalorder %s25, 0
      %p234 = por %p232, %p233
      %p235 = scmp.ne.s32.totalorder %s227, %s229
      %p236 = scmp.eq.s32.totalorder %s30, 1
      %p237 = por %p235, %p236
      %p238 = scmp.ne.s32.totalorder %s229, %s230
      %p239 = scmp.eq.s32.totalorder %s30, 0
      %p240 = por %p238, %p239
      %p241 = scmp.ne.s32.totalorder %s229, %s230
      %p242 = scmp.eq.s32.totalorder %s31, 1
      %p243 = por %p241, %p242
      %p245 = scmp.ne.s32.totalorder %s230, %s244
      %p246 = scmp.eq.s32.totalorder %s31, 0
      %p247 = por %p245, %p246
      %s249 = sadd.s32 %s248, 1
      %p252 = scmp.eq.s32.totalorder %s25, 1
      %p253 = scmp.ne.s32.totalorder %s248, %s250
      %p254 = scmp.eq.s32.totalorder %s25, 0
      %p255 = por %p253, %p254
      %p256 = scmp.ne.s32.totalorder %s248, %s250
      %p257 = scmp.eq.s32.totalorder %s30, 1
      %p258 = por %p256, %p257
      %p259 = scmp.ne.s32.totalorder %s250, %s251
      %p260 = scmp.eq.s32.totalorder %s30, 0
      %p261 = por %p259, %p260
      %p262 = scmp.ne.s32.totalorder %s250, %s251
      %p263 = scmp.eq.s32.totalorder %s31, 1
      %p264 = por %p262, %p263
      %p266 = scmp.ne.s32.totalorder %s251, %s265
      %p267 = scmp.eq.s32.totalorder %s31, 0
      %p268 = por %p266, %p267
      %s270 = sadd.s32 %s269, 1
      %p273 = scmp.eq.s32.totalorder %s25, 1
      %p274 = scmp.ne.s32.totalorder %s269, %s271
      %p275 = scmp.eq.s32.totalorder %s25, 0
      %p276 = por %p274, %p275
      %p277 = scmp.ne.s32.totalorder %s269, %s271
      %p278 = scmp.eq.s32.totalorder %s30, 1
      %p279 = por %p277, %p278
      %p280 = scmp.ne.s32.totalorder %s271, %s272
      %p281 = scmp.eq.s32.totalorder %s30, 0
      %p282 = por %p280, %p281
      %p283 = scmp.ne.s32.totalorder %s271, %s272
      %p284 = scmp.eq.s32.totalorder %s31, 1
      %p285 = por %p283, %p284
      %p287 = scmp.ne.s32.totalorder %s272, %s286
      %p288 = scmp.eq.s32.totalorder %s31, 0
      %p289 = por %p287, %p288
      %s291 = sadd.s32 %s290, 1
      %p294 = scmp.eq.s32.totalorder %s25, 1
      %p295 = scmp.ne.s32.totalorder %s290, %s292
      %p296 = scmp.eq.s32.totalorder %s25, 0
      %p297 = por %p295, %p296
      %p298 = scmp.ne.s32.totalorder %s290, %s292
      %p299 = scmp.eq.s32.totalorder %s30, 1
      %p300 = por %p298, %p299
      %p301 = scmp.ne.s32.totalorder %s292, %s293
      %p302 = scmp.eq.s32.totalorder %s30, 0
      %p303 = por %p301, %p302
      %p304 = scmp.ne.s32.totalorder %s292, %s293
      %p305 = scmp.eq.s32.totalorder %s31, 1
      %p306 = por %p304, %p305
      %p308 = scmp.ne.s32.totalorder %s293, %s307
      %p309 = scmp.eq.s32.totalorder %s31, 0
      %p310 = por %p308, %p309
      %s311 = ssub.s32 %s25, %s32
      %p312 = scmp.eq.s32.totalorder %s311, 0
      %s314 = sadd.s32 %s313, 1
      %s315 = scalar_select %p312, %s313, %s314
      %p318 = pneg %p312
      %p319 = scmp.eq.s32.totalorder %s25, 1
      %p320 = por %p318, %p319
      %p321 = scmp.ne.s32.totalorder %s313, %s316
      %p322 = scmp.eq.s32.totalorder %s25, 0
      %p323 = por %p321, %p322
      %p324 = scmp.ne.s32.totalorder %s313, %s316
      %p325 = scmp.eq.s32.totalorder %s30, 1
      %p326 = por %p324, %p325
      %p327 = scmp.ne.s32.totalorder %s316, %s317
      %p328 = scmp.eq.s32.totalorder %s30, 0
      %p329 = por %p327, %p328
      %p330 = scmp.ne.s32.totalorder %s316, %s317
      %p331 = scmp.eq.s32.totalorder %s31, 1
      %p332 = por %p330, %p331
      %p334 = scmp.ne.s32.totalorder %s317, %s333
      %p335 = scmp.eq.s32.totalorder %s31, 0
      %p336 = por %p334, %p335
      %s337 = ssub.s32 %s25, %s32
      %p338 = scmp.eq.s32.totalorder %s337, 0
      %s340 = sadd.s32 %s339, 1
      %s341 = scalar_select %p338, %s339, %s340
      %p344 = pneg %p338
      %p345 = scmp.eq.s32.totalorder %s25, 1
      %p346 = por %p344, %p345
      %p347 = scmp.ne.s32.totalorder %s339, %s342
      %p348 = scmp.eq.s32.totalorder %s25, 0
      %p349 = por %p347, %p348
      %p350 = scmp.ne.s32.totalorder %s339, %s342
      %p351 = scmp.eq.s32.totalorder %s30, 1
      %p352 = por %p350, %p351
      %p353 = scmp.ne.s32.totalorder %s342, %s343
      %p354 = scmp.eq.s32.totalorder %s30, 0
      %p355 = por %p353, %p354
      %p356 = scmp.ne.s32.totalorder %s342, %s343
      %p357 = scmp.eq.s32.totalorder %s31, 1
      %p358 = por %p356, %p357
      %p360 = scmp.ne.s32.totalorder %s343, %s359
      %p361 = scmp.eq.s32.totalorder %s31, 0
      %p362 = por %p360, %p361
      %s363 = ssub.s32 %s25, %s32
      %p364 = scmp.eq.s32.totalorder %s363, 0
      %s366 = sadd.s32 %s365, 1
      %s367 = scalar_select %p364, %s365, %s366
      %p370 = pneg %p364
      %p371 = scmp.eq.s32.totalorder %s25, 1
      %p372 = por %p370, %p371
      %p373 = scmp.ne.s32.totalorder %s365, %s368
      %p374 = scmp.eq.s32.totalorder %s25, 0
      %p375 = por %p373, %p374
      %p376 = scmp.ne.s32.totalorder %s365, %s368
      %p377 = scmp.eq.s32.totalorder %s30, 1
      %p378 = por %p376, %p377
      %p379 = scmp.ne.s32.totalorder %s368, %s369
      %p380 = scmp.eq.s32.totalorder %s30, 0
      %p381 = por %p379, %p380
      %p382 = scmp.ne.s32.totalorder %s368, %s369
      %p383 = scmp.eq.s32.totalorder %s31, 1
      %p384 = por %p382, %p383
      %p386 = scmp.ne.s32.totalorder %s369, %s385
      %p387 = scmp.eq.s32.totalorder %s31, 0
      %p388 = por %p386, %p387
      %p389 = scmp.le.s32.totalorder 1, %s25
      %p390 = scmp.lt.s32.totalorder %s25, 3
      %p391 = pnand %p389, %p390
      %p392 = pneg %p391
      // Predicated region
      $region9: #{tpu_custom_call.1} parent=5 // pred_check
        _
      $region10: #{tpu_custom_call.1} parent=5 // pred_check_branch
        %394 = sbr.rel (%p391) target = $region12
      $region11: #{tpu_custom_call.1} parent=5 // pred_region
        %s395 = ssub.s32 %s25, 1
        // Predicated region
        $region13: #{tpu_custom_call.1} parent=11 // pred_check
          %p396 = pneg %p72
        $region14: #{tpu_custom_call.1} parent=11 // pred_check_branch
          %398 = sbr.rel (%p396) target = $region16
        $region15: #{tpu_custom_call.1} parent=11 // pred_region
          _
        $region16: #{tpu_custom_call.1} parent=11 // pred_fallthru
          _
        // Predicated region
        $region17: #{tpu_custom_call.1} parent=11 // pred_check
          %p399 = pneg %p93
        $region18: #{tpu_custom_call.1} parent=11 // pred_check_branch
          %401 = sbr.rel (%p399) target = $region20
        $region19: #{tpu_custom_call.1} parent=11 // pred_region
          _
        $region20: #{tpu_custom_call.1} parent=11 // pred_fallthru
          _
        // Predicated region
        $region21: #{tpu_custom_call.1} parent=11 // pred_check
          %p402 = pneg %p114
        $region22: #{tpu_custom_call.1} parent=11 // pred_check_branch
          %404 = sbr.rel (%p402) target = $region24
        $region23: #{tpu_custom_call.1} parent=11 // pred_region
          %s406 = ssub.s32 384, 384
          %407 = vsyncadd [#allocation5], %s406
          %s408 = sshll.u32 [#allocation4], 4
          %s409 = int_to_ptr.vmem [resolvable:$true] %s408
          %414 = dma.hbm_to_vmem [thread:$0]  %s3, 384, %s409, [#allocation5], 64, 64, 4
        $region24: #{tpu_custom_call.1} parent=11 // pred_fallthru
          _
        // Predicated region
        $region25: #{tpu_custom_call.1} parent=11 // pred_check
          %p415 = pneg %p135
        $region26: #{tpu_custom_call.1} parent=11 // pred_check_branch
          %417 = sbr.rel (%p415) target = $region28
        $region27: #{tpu_custom_call.1} parent=11 // pred_region
          _
        $region28: #{tpu_custom_call.1} parent=11 // pred_fallthru
          _
        // Predicated region
        $region29: #{tpu_custom_call.1} parent=11 // pred_check
          %p418 = pneg %p156
        $region30: #{tpu_custom_call.1} parent=11 // pred_check_branch
          %420 = sbr.rel (%p418) target = $region32
        $region31: #{tpu_custom_call.1} parent=11 // pred_region
          %s422 = ssub.s32 384, 384
          %423 = vsyncadd [#allocation7], %s422
          %s424 = sshll.u32 [#allocation6], 4
          %s425 = int_to_ptr.vmem [resolvable:$true] %s424
          %430 = dma.hbm_to_vmem [thread:$0]  %s5, 384, %s425, [#allocation7], 64, 64, 4
        $region32: #{tpu_custom_call.1} parent=11 // pred_fallthru
          _
        // Predicated region
        $region33: #{tpu_custom_call.1} parent=11 // pred_check
          %p431 = pneg %p177
        $region34: #{tpu_custom_call.1} parent=11 // pred_check_branch
          %433 = sbr.rel (%p431) target = $region36
        $region35: #{tpu_custom_call.1} parent=11 // pred_region
          _
        $region36: #{tpu_custom_call.1} parent=11 // pred_fallthru
          _
        // Predicated region
        $region37: #{tpu_custom_call.1} parent=11 // pred_check
          %p434 = pneg %p198
        $region38: #{tpu_custom_call.1} parent=11 // pred_check_branch
          %436 = sbr.rel (%p434) target = $region40
        $region39: #{tpu_custom_call.1} parent=11 // pred_region
          _
        $region40: #{tpu_custom_call.1} parent=11 // pred_fallthru
          _
        // Predicated region
        $region41: #{tpu_custom_call.1} parent=11 // pred_check
          %p437 = pneg %p219
        $region42: #{tpu_custom_call.1} parent=11 // pred_check_branch
          %439 = sbr.rel (%p437) target = $region44
        $region43: #{tpu_custom_call.1} parent=11 // pred_region
          %s441 = ssub.s32 16, 16
          %442 = vsyncadd [#allocation7], %s441
          %s444 = sshll.u32 [#allocation8], 4
          %s445 = int_to_ptr.vmem [resolvable:$true] %s444
          %447 = dma.hbm_to_vmem [thread:$0]  %s8, 16, %s445, [#allocation7]
        $region44: #{tpu_custom_call.1} parent=11 // pred_fallthru
          _
        // Predicated region
        $region45: #{tpu_custom_call.1} parent=11 // pred_check
          %p448 = pneg %p240
        $region46: #{tpu_custom_call.1} parent=11 // pred_check_branch
          %450 = sbr.rel (%p448) target = $region48
        $region47: #{tpu_custom_call.1} parent=11 // pred_region
          %s452 = ssub.s32 768, 768
          %453 = vsyncadd [#allocation10], %s452
          %s454 = sshll.u32 [#allocation9], 4
          %s455 = int_to_ptr.vmem [resolvable:$true] %s454
          %460 = dma.hbm_to_vmem [thread:$0]  %s9, 768, %s455, [#allocation10], 64, 64, 4
        $region48: #{tpu_custom_call.1} parent=11 // pred_fallthru
          _
        // Predicated region
        $region49: #{tpu_custom_call.1} parent=11 // pred_check
          %p461 = pneg %p261
        $region50: #{tpu_custom_call.1} parent=11 // pred_check_branch
          %463 = sbr.rel (%p461) target = $region52
        $region51: #{tpu_custom_call.1} parent=11 // pred_region
          %s465 = ssub.s32 16, 16
          %466 = vsyncadd [#allocation10], %s465
          %s468 = sshll.u32 [#allocation11], 4
          %s469 = int_to_ptr.vmem [resolvable:$true] %s468
          %471 = dma.hbm_to_vmem [thread:$0]  %s10, 16, %s469, [#allocation10]
        $region52: #{tpu_custom_call.1} parent=11 // pred_fallthru
          _
        // Predicated region
        $region53: #{tpu_custom_call.1} parent=11 // pred_check
          %p472 = pneg %p282
        $region54: #{tpu_custom_call.1} parent=11 // pred_check_branch
          %474 = sbr.rel (%p472) target = $region56
        $region55: #{tpu_custom_call.1} parent=11 // pred_region
          _
        $region56: #{tpu_custom_call.1} parent=11 // pred_fallthru
          _
        // Predicated region
        $region57: #{tpu_custom_call.1} parent=11 // pred_check
          %p475 = pneg %p303
        $region58: #{tpu_custom_call.1} parent=11 // pred_check_branch
          %477 = sbr.rel (%p475) target = $region60
        $region59: #{tpu_custom_call.1} parent=11 // pred_region
          _
        $region60: #{tpu_custom_call.1} parent=11 // pred_fallthru
          _
      $region12: #{tpu_custom_call.1} parent=5 // pred_fallthru
        _
      %p478 = scmp.lt.s32.totalorder %s25, 2
      // Predicated region
      $region61: #{tpu_custom_call.1} parent=5 // pred_check
        %p479 = pneg %p478
      $region62: #{tpu_custom_call.1} parent=5 // pred_check_branch
        %481 = sbr.rel (%p479) target = $region64
      $region63: #{tpu_custom_call.1} parent=5 // pred_region
        // Predicated region
        $region65: #{tpu_custom_call.1} parent=63 // pred_check
          %p482 = pneg %p45
        $region66: #{tpu_custom_call.1} parent=63 // pred_check_branch
          %484 = sbr.rel (%p482) target = $region68
        $region67: #{tpu_custom_call.1} parent=63 // pred_region
          %p485 = scmp.lt.s32.totalorder %s25, 1
          %s486 = scalar_select %p485, %s25, 1
          %s487 = smul.addr %s486, 8
          %s488 = smul.addr %s487, 8
          %s489 = scalar_lea.vmem %s0, %s488
        $region68: #{tpu_custom_call.1} parent=63 // pred_fallthru
          _
      $region64: #{tpu_custom_call.1} parent=5 // pred_fallthru
        _
      %p490 = scmp.le.s32.totalorder 1, %s25
      %p491 = scmp.lt.s32.totalorder %s25, 3
      %p492 = pnand %p490, %p491
      %p493 = pneg %p492
      // Predicated region
      $region69: #{tpu_custom_call.1} parent=5 // pred_check
        _
      $region70: #{tpu_custom_call.1} parent=5 // pred_check_branch
        %495 = sbr.rel (%p492) target = $region72
      $region71: #{tpu_custom_call.1} parent=5 // pred_region
        %s496 = ssub.s32 %s25, 1
        // Predicated region
        $region73: #{tpu_custom_call.1} parent=71 // pred_check
          %p497 = pneg %p114
        $region74: #{tpu_custom_call.1} parent=71 // pred_check_branch
          %499 = sbr.rel (%p497) target = $region76
        $region75: #{tpu_custom_call.1} parent=71 // pred_region
          %500 = dma.done [#allocation5], 384
        $region76: #{tpu_custom_call.1} parent=71 // pred_fallthru
          _
        // Predicated region
        $region77: #{tpu_custom_call.1} parent=71 // pred_check
          %p501 = pneg %p156
        $region78: #{tpu_custom_call.1} parent=71 // pred_check_branch
          %503 = sbr.rel (%p501) target = $region80
        $region79: #{tpu_custom_call.1} parent=71 // pred_region
          %504 = dma.done [#allocation7], 384
        $region80: #{tpu_custom_call.1} parent=71 // pred_fallthru
          _
        // Predicated region
        $region81: #{tpu_custom_call.1} parent=71 // pred_check
          %p505 = pneg %p219
        $region82: #{tpu_custom_call.1} parent=71 // pred_check_branch
          %507 = sbr.rel (%p505) target = $region84
        $region83: #{tpu_custom_call.1} parent=71 // pred_region
          %508 = dma.done [#allocation7], 16
        $region84: #{tpu_custom_call.1} parent=71 // pred_fallthru
          _
        // Predicated region
        $region85: #{tpu_custom_call.1} parent=71 // pred_check
          %p509 = pneg %p240
        $region86: #{tpu_custom_call.1} parent=71 // pred_check_branch
          %511 = sbr.rel (%p509) target = $region88
        $region87: #{tpu_custom_call.1} parent=71 // pred_region
          %512 = dma.done [#allocation10], 768
        $region88: #{tpu_custom_call.1} parent=71 // pred_fallthru
          _
        // Predicated region
        $region89: #{tpu_custom_call.1} parent=71 // pred_check
          %p513 = pneg %p261
        $region90: #{tpu_custom_call.1} parent=71 // pred_check_branch
          %515 = sbr.rel (%p513) target = $region92
        $region91: #{tpu_custom_call.1} parent=71 // pred_region
          %516 = dma.done [#allocation10], 16
        $region92: #{tpu_custom_call.1} parent=71 // pred_fallthru
          _
        %p517 = scmp.lt.s32.totalorder %s30, 1
        %s518 = scalar_select %p517, %s30, 1
        %s519 = smul.addr %s518, 8
        %s520 = smul.addr %s519, 8
        %s521 = scalar_lea.vmem %s0, %s520
        %p522 = pneg %p51
        %p523 = pneg %p48
        %p524 = pneg %p72
        %p525 = pneg %p69
        %p526 = pneg %p93
        %p527 = pneg %p90
        %p528 = pneg %p114
        %p529 = pneg %p111
        %p530 = pneg %p135
        %p531 = pneg %p132
        %p532 = pneg %p156
        %p533 = pneg %p153
        %p534 = pneg %p177
        %p535 = pneg %p174
        %p536 = pneg %p198
        %p537 = pneg %p195
        %p538 = pneg %p219
        %p539 = pneg %p216
        %p540 = pneg %p240
        %p541 = pneg %p237
        %p542 = pneg %p261
        %p543 = pneg %p258
        %p544 = pneg %p282
        %p545 = pneg %p279
        %p546 = pneg %p303
        %p547 = pneg %p300
        %p548 = pneg %p329
        %p549 = pneg %p326
        %p550 = scmp.lt.s32.totalorder %s30, 1
        %s551 = scalar_select %p550, %s30, 1
        %s552 = smul.addr %s551, 8
        %s553 = smul.addr %s552, 8
        %s554 = scalar_lea.vmem %s13, %s553
        %p555 = pneg %p355
        %p556 = pneg %p352
        %p557 = scmp.lt.s32.totalorder %s30, 1
        %s558 = scalar_select %p557, %s30, 1
        %s559 = smul.addr %s558, 4
        %s560 = smul.addr %s559, 8
        %s561 = scalar_lea.vmem %s14, %s560
        %p562 = pneg %p381
        %p563 = pneg %p378
        %p564 = scmp.lt.s32.totalorder %s30, 1
        %s565 = scalar_select %p564, %s30, 1
        %s566 = smul.addr %s565, 2
        %s567 = smul.addr %s566, 8
        %s568 = scalar_lea.vmem %s15, %s567
        %p569 = scmp.lt.s32.totalorder %s30, 1
        %s570 = scalar_select %p569, %s30, 1
        %s571 = smul.addr %s570, 8
        %s572 = smul.addr %s571, 8
        %s573 = scalar_lea.vmem %s0, %s572
        %p574 = scmp.lt.s32.totalorder %s30, 1
        %s575 = scalar_select %p574, %s30, 1
        %s576 = smul.addr %s575, 8
        %s577 = smul.addr %s576, 8
        %s578 = scalar_lea.vmem %s13, %s577
        %p579 = scmp.lt.s32.totalorder %s30, 1
        %s580 = scalar_select %p579, %s30, 1
        %s581 = smul.addr %s580, 4
        %s582 = smul.addr %s581, 8
        %s583 = scalar_lea.vmem %s14, %s582
        %p584 = scmp.lt.s32.totalorder %s30, 1
        %s585 = scalar_select %p584, %s30, 1
        %s586 = smul.addr %s585, 2
        %s587 = smul.addr %s586, 8
        %s588 = scalar_lea.vmem %s15, %s587
        %v590 = vld [vmem:[%s573] sm:$0xff]
        %v591 = vld [vmem:[%s573 + $0x8] sm:$0xff]
        %v592 = vld [vmem:[%s573 + $0x10] sm:$0xff]
        %v593 = vld [vmem:[%s573 + $0x18] sm:$0xff]
        %v594 = vld [vmem:[%s573 + $0x20] sm:$0xff]
        %v595 = vld [vmem:[%s573 + $0x28] sm:$0xff]
        %v596 = vld [vmem:[%s573 + $0x30] sm:$0xff]
        %v597 = vld [vmem:[%s573 + $0x38] sm:$0xff]
        %v598 = vld [vmem:[%s2] sm:$0x1]
        %600 = vset.pattern.permute.xlu0 0
        %601 = vperm.xlu0 %600, %v590
        %v602 = vpop.permute.xlu0 %601
        %605 = vset.pattern.permute.xlu0 0
        %606 = vperm.xlu0 %605, %v591
        %v607 = vpop.permute.xlu0 %606
        %610 = vset.pattern.permute.xlu0 0
        %611 = vperm.xlu0 %610, %v592
        %v612 = vpop.permute.xlu0 %611
        %615 = vset.pattern.permute.xlu0 0
        %616 = vperm.xlu0 %615, %v593
        %v617 = vpop.permute.xlu0 %616
        %620 = vset.pattern.permute.xlu0 0
        %621 = vperm.xlu0 %620, %v594
        %v622 = vpop.permute.xlu0 %621
        %625 = vset.pattern.permute.xlu0 0
        %626 = vperm.xlu0 %625, %v595
        %v627 = vpop.permute.xlu0 %626
        %630 = vset.pattern.permute.xlu0 0
        %631 = vperm.xlu0 %630, %v596
        %v632 = vpop.permute.xlu0 %631
        %635 = vset.pattern.permute.xlu0 0
        %636 = vperm.xlu0 %635, %v597
        %v637 = vpop.permute.xlu0 %636
        %v639 = vld [vmem:[%s1] sm:$0x1]
        %v641 = vlaneseq
        %v642 = vshrl.u32 %v641, 7
        %v643 = vsub.s32 0, %v642
        %v644 = vrot.slane %v639, %v643
        %v646 = vmul.f32 %v602, %v644
        %v647 = vmul.f32 %v607, %v644
        %v648 = vmul.f32 %v612, %v644
        %v649 = vmul.f32 %v617, %v644
        %v650 = vmul.f32 %v622, %v644
        %v651 = vmul.f32 %v627, %v644
        %v652 = vmul.f32 %v632, %v644
        %v653 = vmul.f32 %v637, %v644
        %v654 = vrot.slane %v602, 1
        %v655 = vrot.slane %v607, 1
        %v656 = vrot.slane %v612, 1
        %v657 = vrot.slane %v617, 1
        %v658 = vrot.slane %v622, 1
        %v659 = vrot.slane %v627, 1
        %v660 = vrot.slane %v632, 1
        %v661 = vrot.slane %v637, 1
        %v662 = vlaneseq
        %v663 = vshrl.u32 %v662, 7
        %vm664 = vcmp.lt.s32.totalorder %v663, 7
        %v665 = vsel %vm664, %v660, %v661
        %v666 = vsel %vm664, %v659, %v660
        %v667 = vsel %vm664, %v658, %v659
        %v668 = vsel %vm664, %v657, %v658
        %v669 = vsel %vm664, %v656, %v657
        %v670 = vsel %vm664, %v655, %v656
        %v671 = vsel %vm664, %v654, %v655
        %v672 = vsel %vm664, %v661, %v654
        %s673 = scalar_lea.vmem %s1, 1
        %v674 = vld [vmem:[%s673] sm:$0x1]
        %v676 = vlaneseq
        %v677 = vshrl.u32 %v676, 7
        %v678 = vsub.s32 0, %v677
        %v679 = vrot.slane %v674, %v678
        %v681 = vmul.f32 %v671, %v679
        %v682 = vmul.f32 %v670, %v679
        %v683 = vmul.f32 %v669, %v679
        %v684 = vmul.f32 %v668, %v679
        %v685 = vmul.f32 %v667, %v679
        %v686 = vmul.f32 %v666, %v679
        %v687 = vmul.f32 %v665, %v679
        %v688 = vmul.f32 %v672, %v679
        %v689 = vadd.f32 %v646, %v681
        %v690 = vadd.f32 %v647, %v682
        %v691 = vadd.f32 %v648, %v683
        %v692 = vadd.f32 %v649, %v684
        %v693 = vadd.f32 %v650, %v685
        %v694 = vadd.f32 %v651, %v686
        %v695 = vadd.f32 %v652, %v687
        %v696 = vadd.f32 %v653, %v688
        %v697 = vrot.slane %v602, 2
        %v698 = vrot.slane %v607, 2
        %v699 = vrot.slane %v612, 2
        %v700 = vrot.slane %v617, 2
        %v701 = vrot.slane %v622, 2
        %v702 = vrot.slane %v627, 2
        %v703 = vrot.slane %v632, 2
        %v704 = vrot.slane %v637, 2
        %vm705 = vcmp.lt.s32.totalorder %v663, 6
        %v706 = vsel %vm705, %v703, %v704
        %v707 = vsel %vm705, %v702, %v703
        %v708 = vsel %vm705, %v701, %v702
        %v709 = vsel %vm705, %v700, %v701
        %v710 = vsel %vm705, %v699, %v700
        %v711 = vsel %vm705, %v698, %v699
        %v712 = vsel %vm705, %v697, %v698
        %v713 = vsel %vm705, %v704, %v697
        %s714 = scalar_lea.vmem %s1, 2
        %v715 = vld [vmem:[%s714] sm:$0x1]
        %v717 = vlaneseq
        %v718 = vshrl.u32 %v717, 7
        %v719 = vsub.s32 0, %v718
        %v720 = vrot.slane %v715, %v719
        %v722 = vmul.f32 %v712, %v720
        %v723 = vmul.f32 %v711, %v720
        %v724 = vmul.f32 %v710, %v720
        %v725 = vmul.f32 %v709, %v720
        %v726 = vmul.f32 %v708, %v720
        %v727 = vmul.f32 %v707, %v720
        %v728 = vmul.f32 %v706, %v720
        %v729 = vmul.f32 %v713, %v720
        %v730 = vadd.f32 %v689, %v722
        %v731 = vadd.f32 %v690, %v723
        %v732 = vadd.f32 %v691, %v724
        %v733 = vadd.f32 %v692, %v725
        %v734 = vadd.f32 %v693, %v726
        %v735 = vadd.f32 %v694, %v727
        %v736 = vadd.f32 %v695, %v728
        %v737 = vadd.f32 %v696, %v729
        %v739 = vlaneseq
        %v740 = vshrl.u32 %v739, 7
        %v741 = vsub.s32 0, %v740
        %v742 = vrot.slane %v598, %v741
        %v744 = vadd.f32 %v730, %v742
        %v745 = vadd.f32 %v731, %v742
        %v746 = vadd.f32 %v732, %v742
        %v747 = vadd.f32 %v733, %v742
        %v748 = vadd.f32 %v734, %v742
        %v749 = vadd.f32 %v735, %v742
        %v750 = vadd.f32 %v736, %v742
        %v751 = vadd.f32 %v737, %v742
        %v752 = vmul.f32 %v744, 0.2
        %v753 = vmul.f32 %v745, 0.2
        %v754 = vmul.f32 %v746, 0.2
        %v755 = vmul.f32 %v747, 0.2
        %v756 = vmul.f32 %v748, 0.2
        %v757 = vmul.f32 %v749, 0.2
        %v758 = vmul.f32 %v750, 0.2
        %v759 = vmul.f32 %v751, 0.2
        %v760 = vmax.f32 %v744, %v752
        %v761 = vmax.f32 %v745, %v753
        %v762 = vmax.f32 %v746, %v754
        %v763 = vmax.f32 %v747, %v755
        %v764 = vmax.f32 %v748, %v756
        %v765 = vmax.f32 %v749, %v757
        %v766 = vmax.f32 %v750, %v758
        %v767 = vmax.f32 %v751, %v759
        %v768 = vld [vmem:[%s4] sm:$0x1]
        %v769 = vpack.c.bf16 %v761, %v760
        %v770 = vpack.c.bf16 %v763, %v762
        %v771 = vpack.c.bf16 %v765, %v764
        %v772 = vpack.c.bf16 %v767, %v766
        %v773 = vld [vmem:[#allocation4] sm:$0xf]
        %v774 = vld [vmem:[#allocation4 + $0x4] sm:$0xf]
        %s775 = scalar_lea.vmem [#allocation4], 8
        %v776 = vld [vmem:[%s775] sm:$0xf]
        %v777 = vld [vmem:[%s775 + $0x4] sm:$0xf]
        %v780 = vunpack.c.l.b16 %v776
        %v781 = vunpack.c.l.b16 %v777
        %v782 = vpack.c.b16 %v781, %v780
        %vm784 = vcmask 130048
        %v786 = vsel %vm784, %v769, 0
        %v789 = vsel %vm784, %v770, 0
        %v792 = vsel %vm784, %v771, 0
        %v795 = vsel %vm784, %v772, 0
        %797 = vmatprep.subr.bf16.mxu0 0
        %798 = vmatpush1.bf16.msra.mxu0 0
        %799 = vmatprep.subr.bf16.mxu0 0
        %800 = vmatpush1.bf16.msra.mxu0 0
        %801 = vmatprep.subr.bf16.mxu0 0
        %802 = vmatpush1.bf16.msra.mxu0 0
        %803 = vmatprep.subr.bf16.mxu0 0
        %804 = vmatpush1.bf16.msra.mxu0 0
        %805 = vmatprep.subr.bf16.mxu0 0
        %806 = vmatpush1.bf16.msra.mxu0 0
        %807 = vmatprep.subr.bf16.mxu0 0
        %808 = vmatpush1.bf16.msra.mxu0 0
        %809 = vmatprep.subr.bf16.mxu0 0
        %810 = vmatpush1.bf16.msra.mxu0 0
        %811 = vmatprep.subr.bf16.mxu0 0
        %812 = vmatpush1.bf16.msra.mxu0 %v782
        %813 = vmatprep.subr.bf16.mxu0 0
        %814 = vmatpush2.bf16.msra.mxu0 0
        %815 = vmatprep.subr.bf16.mxu0 0
        %816 = vmatpush2.bf16.msra.mxu0 0
        %817 = vmatprep.subr.bf16.mxu0 0
        %818 = vmatpush2.bf16.msra.mxu0 0
        %819 = vmatprep.subr.bf16.mxu0 0
        %820 = vmatpush2.bf16.msra.mxu0 0
        %821 = vmatprep.subr.bf16.mxu0 0
        %822 = vmatpush2.bf16.msra.mxu0 0
        %823 = vmatprep.subr.bf16.mxu0 0
        %824 = vmatpush2.bf16.msra.mxu0 0
        %825 = vmatprep.subr.bf16.mxu0 0
        %826 = vmatpush2.bf16.msra.mxu0 0
        %827 = vmatprep.subr.bf16.mxu0 0
        %828 = vmatpush2.bf16.msra.mxu0 0
        %829 = vmatprep.mubr.bf16.mxu0 0
        %830 = vmatmul.mubr.bf16.gmra.mxu0 %v786
        %v831 = vpop.f32.mrf.mxu0
        %v832 = vadd.f32 0.0, %v831
        %v833 = vpop.f32.mrf.mxu0
        %v834 = vpop.f32.mrf.mxu0
        %v835 = vadd.f32 0.0, %v834
        %v836 = vpop.f32.mrf.mxu0
        %837 = vmatprep.mubr.bf16.mxu0 0
        %838 = vmatmul.mubr.bf16.gmra.mxu0 %v789
        %v839 = vpop.f32.mrf.mxu0
        %v840 = vadd.f32 0.0, %v839
        %v841 = vpop.f32.mrf.mxu0
        %v842 = vpop.f32.mrf.mxu0
        %v843 = vadd.f32 0.0, %v842
        %v844 = vpop.f32.mrf.mxu0
        %845 = vmatprep.mubr.bf16.mxu0 0
        %846 = vmatmul.mubr.bf16.gmra.mxu0 %v792
        %v847 = vpop.f32.mrf.mxu0
        %v848 = vadd.f32 0.0, %v847
        %v849 = vpop.f32.mrf.mxu0
        %v850 = vpop.f32.mrf.mxu0
        %v851 = vadd.f32 0.0, %v850
        %v852 = vpop.f32.mrf.mxu0
        %853 = vmatprep.mubr.bf16.mxu0 0
        %854 = vmatmul.mubr.bf16.gmra.mxu0 %v795
        %v855 = vpop.f32.mrf.mxu0
        %v856 = vadd.f32 0.0, %v855
        %v857 = vpop.f32.mrf.mxu0
        %v858 = vpop.f32.mrf.mxu0
        %v859 = vadd.f32 0.0, %v858
        %v860 = vpop.f32.mrf.mxu0
        %861 = vdwg.mxu0
        %vm862 = vcmask 1047558
        %v863 = vrot.slane %v832, 2
        %v864 = vsel %vm862, %v863, %v859
        %v867 = vunpack.c.l.b16 %v773
        %v868 = vunpack.c.l.b16 %v774
        %v869 = vpack.c.b16 %v868, %v867
        %vm879 = vcmask 1046528
        %v880 = vrot.slane %v832, 1
        %v881 = vrot.slane %v835, 1
        %v882 = vsel %vm879, %v880, %v881
        %v883 = vrot.slane %v840, 1
        %v884 = vsel %vm879, %v881, %v883
        %v885 = vrot.slane %v843, 1
        %v886 = vsel %vm879, %v883, %v885
        %v887 = vrot.slane %v848, 1
        %v888 = vsel %vm879, %v885, %v887
        %v889 = vrot.slane %v851, 1
        %v890 = vsel %vm879, %v887, %v889
        %v891 = vrot.slane %v856, 1
        %v892 = vsel %vm879, %v889, %v891
        %v893 = vrot.slane %v864, 1
        %v894 = vsel %vm879, %v891, %v893
        %903 = vmatprep.subr.bf16.mxu0 0
        %904 = vmatpush1.bf16.msra.mxu0 0
        %905 = vmatprep.subr.bf16.mxu0 0
        %906 = vmatpush1.bf16.msra.mxu0 0
        %907 = vmatprep.subr.bf16.mxu0 0
        %908 = vmatpush1.bf16.msra.mxu0 0
        %909 = vmatprep.subr.bf16.mxu0 0
        %910 = vmatpush1.bf16.msra.mxu0 0
        %911 = vmatprep.subr.bf16.mxu0 0
        %912 = vmatpush1.bf16.msra.mxu0 0
        %913 = vmatprep.subr.bf16.mxu0 0
        %914 = vmatpush1.bf16.msra.mxu0 0
        %915 = vmatprep.subr.bf16.mxu0 0
        %916 = vmatpush1.bf16.msra.mxu0 0
        %917 = vmatprep.subr.bf16.mxu0 0
        %918 = vmatpush1.bf16.msra.mxu0 %v869
        %919 = vmatprep.subr.bf16.mxu0 0
        %920 = vmatpush2.bf16.msra.mxu0 0
        %921 = vmatprep.subr.bf16.mxu0 0
        %922 = vmatpush2.bf16.msra.mxu0 0
        %923 = vmatprep.subr.bf16.mxu0 0
        %924 = vmatpush2.bf16.msra.mxu0 0
        %925 = vmatprep.subr.bf16.mxu0 0
        %926 = vmatpush2.bf16.msra.mxu0 0
        %927 = vmatprep.subr.bf16.mxu0 0
        %928 = vmatpush2.bf16.msra.mxu0 0
        %929 = vmatprep.subr.bf16.mxu0 0
        %930 = vmatpush2.bf16.msra.mxu0 0
        %931 = vmatprep.subr.bf16.mxu0 0
        %932 = vmatpush2.bf16.msra.mxu0 0
        %933 = vmatprep.subr.bf16.mxu0 0
        %934 = vmatpush2.bf16.msra.mxu0 0
        %935 = vmatprep.mubr.bf16.mxu0 0
        %936 = vmatmul.mubr.bf16.gmra.mxu0 %v786
        %v937 = vpop.f32.mrf.mxu0
        %v938 = vadd.f32 %v882, %v937
        %v939 = vpop.f32.mrf.mxu0
        %v940 = vpop.f32.mrf.mxu0
        %v941 = vadd.f32 %v884, %v940
        %v942 = vpop.f32.mrf.mxu0
        %943 = vmatprep.mubr.bf16.mxu0 0
        %944 = vmatmul.mubr.bf16.gmra.mxu0 %v789
        %v945 = vpop.f32.mrf.mxu0
        %v946 = vadd.f32 %v886, %v945
        %v947 = vpop.f32.mrf.mxu0
        %v948 = vpop.f32.mrf.mxu0
        %v949 = vadd.f32 %v888, %v948
        %v950 = vpop.f32.mrf.mxu0
        %951 = vmatprep.mubr.bf16.mxu0 0
        %952 = vmatmul.mubr.bf16.gmra.mxu0 %v792
        %v953 = vpop.f32.mrf.mxu0
        %v954 = vadd.f32 %v890, %v953
        %v955 = vpop.f32.mrf.mxu0
        %v956 = vpop.f32.mrf.mxu0
        %v957 = vadd.f32 %v892, %v956
        %v958 = vpop.f32.mrf.mxu0
        %959 = vmatprep.mubr.bf16.mxu0 0
        %960 = vmatmul.mubr.bf16.gmra.mxu0 %v795
        %v961 = vpop.f32.mrf.mxu0
        %v962 = vadd.f32 %v894, %v961
        %v963 = vpop.f32.mrf.mxu0
        %v964 = vpop.f32.mrf.mxu0
        %v965 = vadd.f32 %v893, %v964
        %v966 = vpop.f32.mrf.mxu0
        %967 = vdwg.mxu0
        %s968 = scalar_lea.vmem [#allocation4], 16
        %v969 = vld [vmem:[%s968] sm:$0xf]
        %v970 = vld [vmem:[%s968 + $0x4] sm:$0xf]
        %v973 = vunpack.c.l.b16 %v969
        %v974 = vunpack.c.l.b16 %v970
        %v975 = vpack.c.b16 %v974, %v973
        %977 = vmatprep.subr.bf16.mxu0 0
        %978 = vmatpush1.bf16.msra.mxu0 0
        %979 = vmatprep.subr.bf16.mxu0 0
        %980 = vmatpush1.bf16.msra.mxu0 0
        %981 = vmatprep.subr.bf16.mxu0 0
        %982 = vmatpush1.bf16.msra.mxu0 0
        %983 = vmatprep.subr.bf16.mxu0 0
        %984 = vmatpush1.bf16.msra.mxu0 0
        %985 = vmatprep.subr.bf16.mxu0 0
        %986 = vmatpush1.bf16.msra.mxu0 0
        %987 = vmatprep.subr.bf16.mxu0 0
        %988 = vmatpush1.bf16.msra.mxu0 0
        %989 = vmatprep.subr.bf16.mxu0 0
        %990 = vmatpush1.bf16.msra.mxu0 0
        %991 = vmatprep.subr.bf16.mxu0 0
        %992 = vmatpush1.bf16.msra.mxu0 %v975
        %993 = vmatprep.subr.bf16.mxu0 0
        %994 = vmatpush2.bf16.msra.mxu0 0
        %995 = vmatprep.subr.bf16.mxu0 0
        %996 = vmatpush2.bf16.msra.mxu0 0
        %997 = vmatprep.subr.bf16.mxu0 0
        %998 = vmatpush2.bf16.msra.mxu0 0
        %999 = vmatprep.subr.bf16.mxu0 0
        %1000 = vmatpush2.bf16.msra.mxu0 0
        %1001 = vmatprep.subr.bf16.mxu0 0
        %1002 = vmatpush2.bf16.msra.mxu0 0
        %1003 = vmatprep.subr.bf16.mxu0 0
        %1004 = vmatpush2.bf16.msra.mxu0 0
        %1005 = vmatprep.subr.bf16.mxu0 0
        %1006 = vmatpush2.bf16.msra.mxu0 0
        %1007 = vmatprep.subr.bf16.mxu0 0
        %1008 = vmatpush2.bf16.msra.mxu0 0
        %1009 = vmatprep.mubr.bf16.mxu0 0
        %1010 = vmatmul.mubr.bf16.gmra.mxu0 %v786
        %v1011 = vpop.f32.mrf.mxu0
        %v1012 = vadd.f32 0.0, %v1011
        %v1013 = vpop.f32.mrf.mxu0
        %v1014 = vpop.f32.mrf.mxu0
        %v1015 = vadd.f32 0.0, %v1014
        %v1016 = vpop.f32.mrf.mxu0
        %1017 = vmatprep.mubr.bf16.mxu0 0
        %1018 = vmatmul.mubr.bf16.gmra.mxu0 %v789
        %v1019 = vpop.f32.mrf.mxu0
        %v1020 = vadd.f32 0.0, %v1019
        %v1021 = vpop.f32.mrf.mxu0
        %v1022 = vpop.f32.mrf.mxu0
        %v1023 = vadd.f32 0.0, %v1022
        %v1024 = vpop.f32.mrf.mxu0
        %1025 = vmatprep.mubr.bf16.mxu0 0
        %1026 = vmatmul.mubr.bf16.gmra.mxu0 %v792
        %v1027 = vpop.f32.mrf.mxu0
        %v1028 = vadd.f32 0.0, %v1027
        %v1029 = vpop.f32.mrf.mxu0
        %v1030 = vpop.f32.mrf.mxu0
        %v1031 = vadd.f32 0.0, %v1030
        %v1032 = vpop.f32.mrf.mxu0
        %1033 = vmatprep.mubr.bf16.mxu0 0
        %1034 = vmatmul.mubr.bf16.gmra.mxu0 %v795
        %v1035 = vpop.f32.mrf.mxu0
        %v1036 = vadd.f32 0.0, %v1035
        %v1037 = vpop.f32.mrf.mxu0
        %v1038 = vpop.f32.mrf.mxu0
        %v1039 = vadd.f32 0.0, %v1038
        %v1040 = vpop.f32.mrf.mxu0
        %1041 = vdwg.mxu0
        %v1042 = vrot.slane %v1012, 2
        %v1043 = vsel %vm862, %v1042, %v1039
        %vm1052 = vcmask 1045504
        %v1053 = vrot.slane %v1012, 2
        %v1054 = vrot.slane %v1015, 2
        %v1055 = vsel %vm1052, %v1053, %v1054
        %v1056 = vrot.slane %v1020, 2
        %v1057 = vsel %vm1052, %v1054, %v1056
        %v1058 = vrot.slane %v1023, 2
        %v1059 = vsel %vm1052, %v1056, %v1058
        %v1060 = vrot.slane %v1028, 2
        %v1061 = vsel %vm1052, %v1058, %v1060
        %v1062 = vrot.slane %v1031, 2
        %v1063 = vsel %vm1052, %v1060, %v1062
        %v1064 = vrot.slane %v1036, 2
        %v1065 = vsel %vm1052, %v1062, %v1064
        %v1066 = vrot.slane %v1043, 2
        %v1067 = vsel %vm1052, %v1064, %v1066
        %v1076 = vadd.f32 %v938, %v1055
        %v1077 = vadd.f32 %v941, %v1057
        %v1078 = vadd.f32 %v946, %v1059
        %v1079 = vadd.f32 %v949, %v1061
        %v1080 = vadd.f32 %v954, %v1063
        %v1081 = vadd.f32 %v957, %v1065
        %v1082 = vadd.f32 %v962, %v1067
        %v1083 = vadd.f32 %v965, %v1066
        %v1085 = vlaneseq
        %v1086 = vshrl.u32 %v1085, 7
        %v1087 = vsub.s32 0, %v1086
        %v1088 = vrot.slane %v768, %v1087
        %v1090 = vadd.f32 %v1076, %v1088
        %v1091 = vadd.f32 %v1077, %v1088
        %v1092 = vadd.f32 %v1078, %v1088
        %v1093 = vadd.f32 %v1079, %v1088
        %v1094 = vadd.f32 %v1080, %v1088
        %v1095 = vadd.f32 %v1081, %v1088
        %v1096 = vadd.f32 %v1082, %v1088
        %v1097 = vadd.f32 %v1083, %v1088
        %v1098 = vmul.f32 %v1090, 0.2
        %v1099 = vmul.f32 %v1091, 0.2
        %v1100 = vmul.f32 %v1092, 0.2
        %v1101 = vmul.f32 %v1093, 0.2
        %v1102 = vmul.f32 %v1094, 0.2
        %v1103 = vmul.f32 %v1095, 0.2
        %v1104 = vmul.f32 %v1096, 0.2
        %v1105 = vmul.f32 %v1097, 0.2
        %v1106 = vmax.f32 %v1090, %v1098
        %v1107 = vmax.f32 %v1091, %v1099
        %v1108 = vmax.f32 %v1092, %v1100
        %v1109 = vmax.f32 %v1093, %v1101
        %v1110 = vmax.f32 %v1094, %v1102
        %v1111 = vmax.f32 %v1095, %v1103
        %v1112 = vmax.f32 %v1096, %v1104
        %v1113 = vmax.f32 %v1097, %v1105
        %1114 = vst.msk [vmem:[%s578] sm:$0xff] %vm784, %v1106
        %1115 = vst.msk [vmem:[%s578 + $0x8] sm:$0xff] %vm784, %v1107
        %1116 = vst.msk [vmem:[%s578 + $0x10] sm:$0xff] %vm784, %v1108
        %1117 = vst.msk [vmem:[%s578 + $0x18] sm:$0xff] %vm784, %v1109
        %1118 = vst.msk [vmem:[%s578 + $0x20] sm:$0xff] %vm784, %v1110
        %1119 = vst.msk [vmem:[%s578 + $0x28] sm:$0xff] %vm784, %v1111
        %1120 = vst.msk [vmem:[%s578 + $0x30] sm:$0xff] %vm784, %v1112
        %vm1121 = vcmask 125952
        %1122 = vst.msk [vmem:[%s578 + $0x38] sm:$0xf] %vm1121, %v1113
        %vm1123 = vcmask 1047556
        %v1124 = vrot.slane %v1106, 4
        %v1125 = vsel %vm1123, %v1124, %v1113
        %v1134 = vrot.slane %v1106, 1
        %v1135 = vrot.slane %v1107, 1
        %v1136 = vsel %vm879, %v1134, %v1135
        %v1137 = vrot.slane %v1108, 1
        %v1138 = vsel %vm879, %v1135, %v1137
        %v1139 = vrot.slane %v1109, 1
        %v1140 = vsel %vm879, %v1137, %v1139
        %v1141 = vrot.slane %v1110, 1
        %v1142 = vsel %vm879, %v1139, %v1141
        %v1143 = vrot.slane %v1111, 1
        %v1144 = vsel %vm879, %v1141, %v1143
        %v1145 = vrot.slane %v1112, 1
        %v1146 = vsel %vm879, %v1143, %v1145
        %v1147 = vrot.slane %v1125, 1
        %v1148 = vsel %vm879, %v1145, %v1147
        %v1157 = vmax.f32 %v1106, %v1136
        %v1158 = vmax.f32 %v1107, %v1138
        %v1159 = vmax.f32 %v1108, %v1140
        %v1160 = vmax.f32 %v1109, %v1142
        %v1161 = vmax.f32 %v1110, %v1144
        %v1162 = vmax.f32 %v1111, %v1146
        %v1163 = vmax.f32 %v1112, %v1148
        %v1164 = vmax.f32 %v1113, %v1147
        %1165 = vst.msk [vmem:[#allocation2] sm:$0xff] %vm784, %v1157
        %1166 = vst.msk [vmem:[#allocation2 + $0x8] sm:$0xff] %vm784, %v1158
        %1167 = vst.msk [vmem:[#allocation2 + $0x10] sm:$0xff] %vm784, %v1159
        %1168 = vst.msk [vmem:[#allocation2 + $0x18] sm:$0xff] %vm784, %v1160
        %1169 = vst.msk [vmem:[#allocation2 + $0x20] sm:$0xff] %vm784, %v1161
        %1170 = vst.msk [vmem:[#allocation2 + $0x28] sm:$0xff] %vm784, %v1162
        %1171 = vst.msk [vmem:[#allocation2 + $0x30] sm:$0xff] %vm784, %v1163
        %1172 = vst.msk [vmem:[#allocation2 + $0x38] sm:$0xf] %vm1121, %v1164
        %v1173 = vld [vmem:[#allocation2] ss:$2 sm:$0xff]
        %s1174 = scalar_lea.vmem [#allocation2], 16
        %v1175 = vld [vmem:[%s1174] ss:$2 sm:$0xff]
        %s1176 = scalar_lea.vmem [#allocation2], 32
        %v1177 = vld [vmem:[%s1176] ss:$2 sm:$0xff]
        %s1178 = scalar_lea.vmem [#allocation2], 48
        %v1179 = vld [vmem:[%s1178] ss:$2 sm:$0x3f]
        %v1180 = vld [vmem:[%s6] sm:$0x1]
        %v1181 = vpack.c.bf16 %v1175, %v1173
        %v1182 = vpack.c.bf16 %v1179, %v1177
        %v1183 = vld [vmem:[#allocation6] sm:$0xf]
        %v1184 = vld [vmem:[#allocation6 + $0x4] sm:$0xf]
        %s1185 = scalar_lea.vmem [#allocation6], 8
        %v1186 = vld [vmem:[%s1185] sm:$0xf]
        %v1187 = vld [vmem:[%s1185 + $0x4] sm:$0xf]
        %v1190 = vunpack.c.l.b16 %v1186
        %v1191 = vunpack.c.l.b16 %v1187
        %v1192 = vpack.c.b16 %v1191, %v1190
        %v1195 = vsel %vm784, %v1181, 0
        %v1198 = vsel %vm784, %v1182, 0
        %1200 = vmatprep.subr.bf16.mxu0 0
        %1201 = vmatpush1.bf16.msra.mxu0 0
        %1202 = vmatprep.subr.bf16.mxu0 0
        %1203 = vmatpush1.bf16.msra.mxu0 0
        %1204 = vmatprep.subr.bf16.mxu0 0
        %1205 = vmatpush1.bf16.msra.mxu0 0
        %1206 = vmatprep.subr.bf16.mxu0 0
        %1207 = vmatpush1.bf16.msra.mxu0 0
        %1208 = vmatprep.subr.bf16.mxu0 0
        %1209 = vmatpush1.bf16.msra.mxu0 0
        %1210 = vmatprep.subr.bf16.mxu0 0
        %1211 = vmatpush1.bf16.msra.mxu0 0
        %1212 = vmatprep.subr.bf16.mxu0 0
        %1213 = vmatpush1.bf16.msra.mxu0 0
        %1214 = vmatprep.subr.bf16.mxu0 0
        %1215 = vmatpush1.bf16.msra.mxu0 %v1192
        %1216 = vmatprep.subr.bf16.mxu0 0
        %1217 = vmatpush2.bf16.msra.mxu0 0
        %1218 = vmatprep.subr.bf16.mxu0 0
        %1219 = vmatpush2.bf16.msra.mxu0 0
        %1220 = vmatprep.subr.bf16.mxu0 0
        %1221 = vmatpush2.bf16.msra.mxu0 0
        %1222 = vmatprep.subr.bf16.mxu0 0
        %1223 = vmatpush2.bf16.msra.mxu0 0
        %1224 = vmatprep.subr.bf16.mxu0 0
        %1225 = vmatpush2.bf16.msra.mxu0 0
        %1226 = vmatprep.subr.bf16.mxu0 0
        %1227 = vmatpush2.bf16.msra.mxu0 0
        %1228 = vmatprep.subr.bf16.mxu0 0
        %1229 = vmatpush2.bf16.msra.mxu0 0
        %1230 = vmatprep.subr.bf16.mxu0 0
        %1231 = vmatpush2.bf16.msra.mxu0 0
        %1232 = vmatprep.mubr.bf16.mxu0 0
        %1233 = vmatmul.mubr.bf16.gmra.mxu0 %v1195
        %v1234 = vpop.f32.mrf.mxu0
        %v1235 = vadd.f32 0.0, %v1234
        %v1236 = vpop.f32.mrf.mxu0
        %v1237 = vpop.f32.mrf.mxu0
        %v1238 = vadd.f32 0.0, %v1237
        %v1239 = vpop.f32.mrf.mxu0
        %1240 = vmatprep.mubr.bf16.mxu0 0
        %1241 = vmatmul.mubr.bf16.gmra.mxu0 %v1198
        %v1242 = vpop.f32.mrf.mxu0
        %v1243 = vadd.f32 0.0, %v1242
        %v1244 = vpop.f32.mrf.mxu0
        %v1245 = vpop.f32.mrf.mxu0
        %v1246 = vadd.f32 0.0, %v1245
        %v1247 = vpop.f32.mrf.mxu0
        %1248 = vdwg.mxu0
        %v1249 = vrot.slane %v1235, 2
        %v1250 = vsel %vm862, %v1249, %v1246
        %v1253 = vunpack.c.l.b16 %v1183
        %v1254 = vunpack.c.l.b16 %v1184
        %v1255 = vpack.c.b16 %v1254, %v1253
        %v1261 = vrot.slane %v1235, 1
        %v1262 = vrot.slane %v1238, 1
        %v1263 = vsel %vm879, %v1261, %v1262
        %v1264 = vrot.slane %v1243, 1
        %v1265 = vsel %vm879, %v1262, %v1264
        %v1266 = vrot.slane %v1250, 1
        %v1267 = vsel %vm879, %v1264, %v1266
        %1272 = vmatprep.subr.bf16.mxu0 0
        %1273 = vmatpush1.bf16.msra.mxu0 0
        %1274 = vmatprep.subr.bf16.mxu0 0
        %1275 = vmatpush1.bf16.msra.mxu0 0
        %1276 = vmatprep.subr.bf16.mxu0 0
        %1277 = vmatpush1.bf16.msra.mxu0 0
        %1278 = vmatprep.subr.bf16.mxu0 0
        %1279 = vmatpush1.bf16.msra.mxu0 0
        %1280 = vmatprep.subr.bf16.mxu0 0
        %1281 = vmatpush1.bf16.msra.mxu0 0
        %1282 = vmatprep.subr.bf16.mxu0 0
        %1283 = vmatpush1.bf16.msra.mxu0 0
        %1284 = vmatprep.subr.bf16.mxu0 0
        %1285 = vmatpush1.bf16.msra.mxu0 0
        %1286 = vmatprep.subr.bf16.mxu0 0
        %1287 = vmatpush1.bf16.msra.mxu0 %v1255
        %1288 = vmatprep.subr.bf16.mxu0 0
        %1289 = vmatpush2.bf16.msra.mxu0 0
        %1290 = vmatprep.subr.bf16.mxu0 0
        %1291 = vmatpush2.bf16.msra.mxu0 0
        %1292 = vmatprep.subr.bf16.mxu0 0
        %1293 = vmatpush2.bf16.msra.mxu0 0
        %1294 = vmatprep.subr.bf16.mxu0 0
        %1295 = vmatpush2.bf16.msra.mxu0 0
        %1296 = vmatprep.subr.bf16.mxu0 0
        %1297 = vmatpush2.bf16.msra.mxu0 0
        %1298 = vmatprep.subr.bf16.mxu0 0
        %1299 = vmatpush2.bf16.msra.mxu0 0
        %1300 = vmatprep.subr.bf16.mxu0 0
        %1301 = vmatpush2.bf16.msra.mxu0 0
        %1302 = vmatprep.subr.bf16.mxu0 0
        %1303 = vmatpush2.bf16.msra.mxu0 0
        %1304 = vmatprep.mubr.bf16.mxu0 0
        %1305 = vmatmul.mubr.bf16.gmra.mxu0 %v1195
        %v1306 = vpop.f32.mrf.mxu0
        %v1307 = vadd.f32 %v1263, %v1306
        %v1308 = vpop.f32.mrf.mxu0
        %v1309 = vpop.f32.mrf.mxu0
        %v1310 = vadd.f32 %v1265, %v1309
        %v1311 = vpop.f32.mrf.mxu0
        %1312 = vmatprep.mubr.bf16.mxu0 0
        %1313 = vmatmul.mubr.bf16.gmra.mxu0 %v1198
        %v1314 = vpop.f32.mrf.mxu0
        %v1315 = vadd.f32 %v1267, %v1314
        %v1316 = vpop.f32.mrf.mxu0
        %v1317 = vpop.f32.mrf.mxu0
        %v1318 = vadd.f32 %v1266, %v1317
        %v1319 = vpop.f32.mrf.mxu0
        %1320 = vdwg.mxu0
        %s1321 = scalar_lea.vmem [#allocation6], 16
        %v1322 = vld [vmem:[%s1321] sm:$0xf]
        %v1323 = vld [vmem:[%s1321 + $0x4] sm:$0xf]
        %v1326 = vunpack.c.l.b16 %v1322
        %v1327 = vunpack.c.l.b16 %v1323
        %v1328 = vpack.c.b16 %v1327, %v1326
        %1330 = vmatprep.subr.bf16.mxu0 0
        %1331 = vmatpush1.bf16.msra.mxu0 0
        %1332 = vmatprep.subr.bf16.mxu0 0
        %1333 = vmatpush1.bf16.msra.mxu0 0
        %1334 = vmatprep.subr.bf16.mxu0 0
        %1335 = vmatpush1.bf16.msra.mxu0 0
        %1336 = vmatprep.subr.bf16.mxu0 0
        %1337 = vmatpush1.bf16.msra.mxu0 0
        %1338 = vmatprep.subr.bf16.mxu0 0
        %1339 = vmatpush1.bf16.msra.mxu0 0
        %1340 = vmatprep.subr.bf16.mxu0 0
        %1341 = vmatpush1.bf16.msra.mxu0 0
        %1342 = vmatprep.subr.bf16.mxu0 0
        %1343 = vmatpush1.bf16.msra.mxu0 0
        %1344 = vmatprep.subr.bf16.mxu0 0
        %1345 = vmatpush1.bf16.msra.mxu0 %v1328
        %1346 = vmatprep.subr.bf16.mxu0 0
        %1347 = vmatpush2.bf16.msra.mxu0 0
        %1348 = vmatprep.subr.bf16.mxu0 0
        %1349 = vmatpush2.bf16.msra.mxu0 0
        %1350 = vmatprep.subr.bf16.mxu0 0
        %1351 = vmatpush2.bf16.msra.mxu0 0
        %1352 = vmatprep.subr.bf16.mxu0 0
        %1353 = vmatpush2.bf16.msra.mxu0 0
        %1354 = vmatprep.subr.bf16.mxu0 0
        %1355 = vmatpush2.bf16.msra.mxu0 0
        %1356 = vmatprep.subr.bf16.mxu0 0
        %1357 = vmatpush2.bf16.msra.mxu0 0
        %1358 = vmatprep.subr.bf16.mxu0 0
        %1359 = vmatpush2.bf16.msra.mxu0 0
        %1360 = vmatprep.subr.bf16.mxu0 0
        %1361 = vmatpush2.bf16.msra.mxu0 0
        %1362 = vmatprep.mubr.bf16.mxu0 0
        %1363 = vmatmul.mubr.bf16.gmra.mxu0 %v1195
        %v1364 = vpop.f32.mrf.mxu0
        %v1365 = vadd.f32 0.0, %v1364
        %v1366 = vpop.f32.mrf.mxu0
        %v1367 = vpop.f32.mrf.mxu0
        %v1368 = vadd.f32 0.0, %v1367
        %v1369 = vpop.f32.mrf.mxu0
        %1370 = vmatprep.mubr.bf16.mxu0 0
        %1371 = vmatmul.mubr.bf16.gmra.mxu0 %v1198
        %v1372 = vpop.f32.mrf.mxu0
        %v1373 = vadd.f32 0.0, %v1372
        %v1374 = vpop.f32.mrf.mxu0
        %v1375 = vpop.f32.mrf.mxu0
        %v1376 = vadd.f32 0.0, %v1375
        %v1377 = vpop.f32.mrf.mxu0
        %1378 = vdwg.mxu0
        %v1379 = vrot.slane %v1365, 2
        %v1380 = vsel %vm862, %v1379, %v1376
        %v1385 = vrot.slane %v1365, 2
        %v1386 = vrot.slane %v1368, 2
        %v1387 = vsel %vm1052, %v1385, %v1386
        %v1388 = vrot.slane %v1373, 2
        %v1389 = vsel %vm1052, %v1386, %v1388
        %v1390 = vrot.slane %v1380, 2
        %v1391 = vsel %vm1052, %v1388, %v1390
        %v1396 = vadd.f32 %v1307, %v1387
        %v1397 = vadd.f32 %v1310, %v1389
        %v1398 = vadd.f32 %v1315, %v1391
        %v1399 = vadd.f32 %v1318, %v1390
        %v1401 = vlaneseq
        %v1402 = vshrl.u32 %v1401, 7
        %v1403 = vsub.s32 0, %v1402
        %v1404 = vrot.slane %v1180, %v1403
        %v1406 = vadd.f32 %v1396, %v1404
        %v1407 = vadd.f32 %v1397, %v1404
        %v1408 = vadd.f32 %v1398, %v1404
        %v1409 = vadd.f32 %v1399, %v1404
        %v1410 = vmul.f32 %v1406, 0.2
        %v1411 = vmul.f32 %v1407, 0.2
        %v1412 = vmul.f32 %v1408, 0.2
        %v1413 = vmul.f32 %v1409, 0.2
        %v1414 = vmax.f32 %v1406, %v1410
        %v1415 = vmax.f32 %v1407, %v1411
        %v1416 = vmax.f32 %v1408, %v1412
        %v1417 = vmax.f32 %v1409, %v1413
        %v1418 = vld [vmem:[#allocation8] sm:$0x1]
        %v1419 = vpack.c.bf16 %v1415, %v1414
        %v1420 = vpack.c.bf16 %v1417, %v1416
        %v1421 = vld [vmem:[%s7] sm:$0xf]
        %v1422 = vld [vmem:[%s7 + $0x4] sm:$0xf]
        %v1423 = vld [vmem:[%s7 + $0x8] sm:$0xf]
        %v1424 = vld [vmem:[%s7 + $0xc] sm:$0xf]
        %s1425 = scalar_lea.vmem %s7, 16
        %v1426 = vld [vmem:[%s1425] sm:$0xf]
        %v1427 = vld [vmem:[%s1425 + $0x4] sm:$0xf]
        %v1428 = vld [vmem:[%s1425 + $0x8] sm:$0xf]
        %v1429 = vld [vmem:[%s1425 + $0xc] sm:$0xf]
        %v1434 = vunpack.c.l.b16 %v1426
        %v1435 = vunpack.c.l.b16 %v1427
        %v1436 = vunpack.c.l.b16 %v1428
        %v1437 = vunpack.c.l.b16 %v1429
        %v1438 = vpack.c.b16 %v1435, %v1434
        %v1439 = vpack.c.b16 %v1437, %v1436
        %vm1442 = vcmask 261120
        %v1444 = vsel %vm1442, %v1419, 0
        %v1447 = vsel %vm1442, %v1420, 0
        %1449 = vmatprep.subr.bf16.mxu0 0
        %1450 = vmatpush1.bf16.msra.mxu0 0
        %1451 = vmatprep.subr.bf16.mxu0 0
        %1452 = vmatpush1.bf16.msra.mxu0 0
        %1453 = vmatprep.subr.bf16.mxu0 0
        %1454 = vmatpush1.bf16.msra.mxu0 0
        %1455 = vmatprep.subr.bf16.mxu0 0
        %1456 = vmatpush1.bf16.msra.mxu0 0
        %1457 = vmatprep.subr.bf16.mxu0 0
        %1458 = vmatpush1.bf16.msra.mxu0 0
        %1459 = vmatprep.subr.bf16.mxu0 0
        %1460 = vmatpush1.bf16.msra.mxu0 0
        %1461 = vmatprep.subr.bf16.mxu0 0
        %1462 = vmatpush1.bf16.msra.mxu0 %v1439
        %1463 = vmatprep.subr.bf16.mxu0 0
        %1464 = vmatpush1.bf16.msra.mxu0 %v1438
        %1465 = vmatprep.subr.bf16.mxu0 0
        %1466 = vmatpush2.bf16.msra.mxu0 0
        %1467 = vmatprep.subr.bf16.mxu0 0
        %1468 = vmatpush2.bf16.msra.mxu0 0
        %1469 = vmatprep.subr.bf16.mxu0 0
        %1470 = vmatpush2.bf16.msra.mxu0 0
        %1471 = vmatprep.subr.bf16.mxu0 0
        %1472 = vmatpush2.bf16.msra.mxu0 0
        %1473 = vmatprep.subr.bf16.mxu0 0
        %1474 = vmatpush2.bf16.msra.mxu0 0
        %1475 = vmatprep.subr.bf16.mxu0 0
        %1476 = vmatpush2.bf16.msra.mxu0 0
        %1477 = vmatprep.subr.bf16.mxu0 0
        %1478 = vmatpush2.bf16.msra.mxu0 0
        %1479 = vmatprep.subr.bf16.mxu0 0
        %1480 = vmatpush2.bf16.msra.mxu0 0
        %1481 = vmatprep.mubr.bf16.mxu0 0
        %1482 = vmatmul.mubr.bf16.gmra.mxu0 %v1444
        %v1483 = vpop.f32.mrf.mxu0
        %v1484 = vadd.f32 0.0, %v1483
        %v1485 = vpop.f32.mrf.mxu0
        %v1486 = vpop.f32.mrf.mxu0
        %v1487 = vadd.f32 0.0, %v1486
        %v1488 = vpop.f32.mrf.mxu0
        %1489 = vmatprep.mubr.bf16.mxu0 0
        %1490 = vmatmul.mubr.bf16.gmra.mxu0 %v1447
        %v1491 = vpop.f32.mrf.mxu0
        %v1492 = vadd.f32 0.0, %v1491
        %v1493 = vpop.f32.mrf.mxu0
        %v1494 = vpop.f32.mrf.mxu0
        %v1495 = vadd.f32 0.0, %v1494
        %v1496 = vpop.f32.mrf.mxu0
        %1497 = vdwg.mxu0
        %v1498 = vrot.slane %v1484, 4
        %v1499 = vsel %vm1123, %v1498, %v1495
        %v1504 = vunpack.c.l.b16 %v1421
        %v1505 = vunpack.c.l.b16 %v1422
        %v1506 = vunpack.c.l.b16 %v1423
        %v1507 = vunpack.c.l.b16 %v1424
        %v1508 = vpack.c.b16 %v1505, %v1504
        %v1509 = vpack.c.b16 %v1507, %v1506
        %v1516 = vrot.slane %v1484, 1
        %v1517 = vrot.slane %v1487, 1
        %v1518 = vsel %vm879, %v1516, %v1517
        %v1519 = vrot.slane %v1492, 1
        %v1520 = vsel %vm879, %v1517, %v1519
        %v1521 = vrot.slane %v1499, 1
        %v1522 = vsel %vm879, %v1519, %v1521
        %1527 = vmatprep.subr.bf16.mxu0 0
        %1528 = vmatpush1.bf16.msra.mxu0 0
        %1529 = vmatprep.subr.bf16.mxu0 0
        %1530 = vmatpush1.bf16.msra.mxu0 0
        %1531 = vmatprep.subr.bf16.mxu0 0
        %1532 = vmatpush1.bf16.msra.mxu0 0
        %1533 = vmatprep.subr.bf16.mxu0 0
        %1534 = vmatpush1.bf16.msra.mxu0 0
        %1535 = vmatprep.subr.bf16.mxu0 0
        %1536 = vmatpush1.bf16.msra.mxu0 0
        %1537 = vmatprep.subr.bf16.mxu0 0
        %1538 = vmatpush1.bf16.msra.mxu0 0
        %1539 = vmatprep.subr.bf16.mxu0 0
        %1540 = vmatpush1.bf16.msra.mxu0 %v1509
        %1541 = vmatprep.subr.bf16.mxu0 0
        %1542 = vmatpush1.bf16.msra.mxu0 %v1508
        %1543 = vmatprep.subr.bf16.mxu0 0
        %1544 = vmatpush2.bf16.msra.mxu0 0
        %1545 = vmatprep.subr.bf16.mxu0 0
        %1546 = vmatpush2.bf16.msra.mxu0 0
        %1547 = vmatprep.subr.bf16.mxu0 0
        %1548 = vmatpush2.bf16.msra.mxu0 0
        %1549 = vmatprep.subr.bf16.mxu0 0
        %1550 = vmatpush2.bf16.msra.mxu0 0
        %1551 = vmatprep.subr.bf16.mxu0 0
        %1552 = vmatpush2.bf16.msra.mxu0 0
        %1553 = vmatprep.subr.bf16.mxu0 0
        %1554 = vmatpush2.bf16.msra.mxu0 0
        %1555 = vmatprep.subr.bf16.mxu0 0
        %1556 = vmatpush2.bf16.msra.mxu0 0
        %1557 = vmatprep.subr.bf16.mxu0 0
        %1558 = vmatpush2.bf16.msra.mxu0 0
        %1559 = vmatprep.mubr.bf16.mxu0 0
        %1560 = vmatmul.mubr.bf16.gmra.mxu0 %v1444
        %v1561 = vpop.f32.mrf.mxu0
        %v1562 = vadd.f32 %v1518, %v1561
        %v1563 = vpop.f32.mrf.mxu0
        %v1564 = vpop.f32.mrf.mxu0
        %v1565 = vadd.f32 %v1520, %v1564
        %v1566 = vpop.f32.mrf.mxu0
        %1567 = vmatprep.mubr.bf16.mxu0 0
        %1568 = vmatmul.mubr.bf16.gmra.mxu0 %v1447
        %v1569 = vpop.f32.mrf.mxu0
        %v1570 = vadd.f32 %v1522, %v1569
        %v1571 = vpop.f32.mrf.mxu0
        %v1572 = vpop.f32.mrf.mxu0
        %v1573 = vadd.f32 %v1521, %v1572
        %v1574 = vpop.f32.mrf.mxu0
        %1575 = vdwg.mxu0
        %s1576 = scalar_lea.vmem %s7, 32
        %v1577 = vld [vmem:[%s1576] sm:$0xf]
        %v1578 = vld [vmem:[%s1576 + $0x4] sm:$0xf]
        %v1579 = vld [vmem:[%s1576 + $0x8] sm:$0xf]
        %v1580 = vld [vmem:[%s1576 + $0xc] sm:$0xf]
        %v1585 = vunpack.c.l.b16 %v1577
        %v1586 = vunpack.c.l.b16 %v1578
        %v1587 = vunpack.c.l.b16 %v1579
        %v1588 = vunpack.c.l.b16 %v1580
        %v1589 = vpack.c.b16 %v1586, %v1585
        %v1590 = vpack.c.b16 %v1588, %v1587
        %1593 = vmatprep.subr.bf16.mxu0 0
        %1594 = vmatpush1.bf16.msra.mxu0 0
        %1595 = vmatprep.subr.bf16.mxu0 0
        %1596 = vmatpush1.bf16.msra.mxu0 0
        %1597 = vmatprep.subr.bf16.mxu0 0
        %1598 = vmatpush1.bf16.msra.mxu0 0
        %1599 = vmatprep.subr.bf16.mxu0 0
        %1600 = vmatpush1.bf16.msra.mxu0 0
        %1601 = vmatprep.subr.bf16.mxu0 0
        %1602 = vmatpush1.bf16.msra.mxu0 0
        %1603 = vmatprep.subr.bf16.mxu0 0
        %1604 = vmatpush1.bf16.msra.mxu0 0
        %1605 = vmatprep.subr.bf16.mxu0 0
        %1606 = vmatpush1.bf16.msra.mxu0 %v1590
        %1607 = vmatprep.subr.bf16.mxu0 0
        %1608 = vmatpush1.bf16.msra.mxu0 %v1589
        %1609 = vmatprep.subr.bf16.mxu0 0
        %1610 = vmatpush2.bf16.msra.mxu0 0
        %1611 = vmatprep.subr.bf16.mxu0 0
        %1612 = vmatpush2.bf16.msra.mxu0 0
        %1613 = vmatprep.subr.bf16.mxu0 0
        %1614 = vmatpush2.bf16.msra.mxu0 0
        %1615 = vmatprep.subr.bf16.mxu0 0
        %1616 = vmatpush2.bf16.msra.mxu0 0
        %1617 = vmatprep.subr.bf16.mxu0 0
        %1618 = vmatpush2.bf16.msra.mxu0 0
        %1619 = vmatprep.subr.bf16.mxu0 0
        %1620 = vmatpush2.bf16.msra.mxu0 0
        %1621 = vmatprep.subr.bf16.mxu0 0
        %1622 = vmatpush2.bf16.msra.mxu0 0
        %1623 = vmatprep.subr.bf16.mxu0 0
        %1624 = vmatpush2.bf16.msra.mxu0 0
        %1625 = vmatprep.mubr.bf16.mxu0 0
        %1626 = vmatmul.mubr.bf16.gmra.mxu0 %v1444
        %v1627 = vpop.f32.mrf.mxu0
        %v1628 = vadd.f32 0.0, %v1627
        %v1629 = vpop.f32.mrf.mxu0
        %v1630 = vpop.f32.mrf.mxu0
        %v1631 = vadd.f32 0.0, %v1630
        %v1632 = vpop.f32.mrf.mxu0
        %1633 = vmatprep.mubr.bf16.mxu0 0
        %1634 = vmatmul.mubr.bf16.gmra.mxu0 %v1447
        %v1635 = vpop.f32.mrf.mxu0
        %v1636 = vadd.f32 0.0, %v1635
        %v1637 = vpop.f32.mrf.mxu0
        %v1638 = vpop.f32.mrf.mxu0
        %v1639 = vadd.f32 0.0, %v1638
        %v1640 = vpop.f32.mrf.mxu0
        %1641 = vdwg.mxu0
        %v1642 = vrot.slane %v1628, 4
        %v1643 = vsel %vm1123, %v1642, %v1639
        %v1648 = vrot.slane %v1628, 2
        %v1649 = vrot.slane %v1631, 2
        %v1650 = vsel %vm1052, %v1648, %v1649
        %v1651 = vrot.slane %v1636, 2
        %v1652 = vsel %vm1052, %v1649, %v1651
        %v1653 = vrot.slane %v1643, 2
        %v1654 = vsel %vm1052, %v1651, %v1653
        %v1659 = vadd.f32 %v1562, %v1650
        %v1660 = vadd.f32 %v1565, %v1652
        %v1661 = vadd.f32 %v1570, %v1654
        %v1662 = vadd.f32 %v1573, %v1653
        %v1664 = vlaneseq
        %v1665 = vshrl.u32 %v1664, 7
        %v1666 = vsub.s32 0, %v1665
        %v1667 = vrot.slane %v1418, %v1666
        %v1669 = vadd.f32 %v1659, %v1667
        %v1670 = vadd.f32 %v1660, %v1667
        %v1671 = vadd.f32 %v1661, %v1667
        %v1672 = vadd.f32 %v1662, %v1667
        %v1673 = vmul.f32 %v1669, 0.2
        %v1674 = vmul.f32 %v1670, 0.2
        %v1675 = vmul.f32 %v1671, 0.2
        %v1676 = vmul.f32 %v1672, 0.2
        %v1677 = vmax.f32 %v1669, %v1673
        %v1678 = vmax.f32 %v1670, %v1674
        %v1679 = vmax.f32 %v1671, %v1675
        %v1680 = vmax.f32 %v1672, %v1676
        %1681 = vst.msk [vmem:[%s583] sm:$0xff] %vm1442, %v1677
        %1682 = vst.msk [vmem:[%s583 + $0x8] sm:$0xff] %vm1442, %v1678
        %1683 = vst.msk [vmem:[%s583 + $0x10] sm:$0xff] %vm1442, %v1679
        %vm1684 = vcmask 254976
        %1685 = vst.msk [vmem:[%s583 + $0x18] sm:$0x3] %vm1684, %v1680
        %vm1686 = vcmask 1047554
        %v1687 = vrot.slane %v1677, 6
        %v1688 = vsel %vm1686, %v1687, %v1680
        %v1693 = vrot.slane %v1677, 1
        %v1694 = vrot.slane %v1678, 1
        %v1695 = vsel %vm879, %v1693, %v1694
        %v1696 = vrot.slane %v1679, 1
        %v1697 = vsel %vm879, %v1694, %v1696
        %v1698 = vrot.slane %v1688, 1
        %v1699 = vsel %vm879, %v1696, %v1698
        %v1704 = vmax.f32 %v1677, %v1695
        %v1705 = vmax.f32 %v1678, %v1697
        %v1706 = vmax.f32 %v1679, %v1699
        %v1707 = vmax.f32 %v1680, %v1698
        %1708 = vst.msk [vmem:[#allocation3] sm:$0xff] %vm1442, %v1704
        %1709 = vst.msk [vmem:[#allocation3 + $0x8] sm:$0xff] %vm1442, %v1705
        %1710 = vst.msk [vmem:[#allocation3 + $0x10] sm:$0xff] %vm1442, %v1706
        %1711 = vst.msk [vmem:[#allocation3 + $0x18] sm:$0x3] %vm1684, %v1707
        %v1712 = vld [vmem:[#allocation3] ss:$2 sm:$0xff]
        %s1713 = scalar_lea.vmem [#allocation3], 16
        %v1714 = vld [vmem:[%s1713] ss:$2 sm:$0x1f]
        %v1715 = vld [vmem:[#allocation11] sm:$0x1]
        %v1716 = vpack.c.bf16 %v1714, %v1712
        %v1717 = vld [vmem:[#allocation9] sm:$0xf]
        %v1718 = vld [vmem:[#allocation9 + $0x4] sm:$0xf]
        %v1719 = vld [vmem:[#allocation9 + $0x8] sm:$0xf]
        %v1720 = vld [vmem:[#allocation9 + $0xc] sm:$0xf]
        %s1721 = scalar_lea.vmem [#allocation9], 16
        %v1722 = vld [vmem:[%s1721] sm:$0xf]
        %v1723 = vld [vmem:[%s1721 + $0x4] sm:$0xf]
        %v1724 = vld [vmem:[%s1721 + $0x8] sm:$0xf]
        %v1725 = vld [vmem:[%s1721 + $0xc] sm:$0xf]
        %v1730 = vunpack.c.l.b16 %v1722
        %v1731 = vunpack.c.l.b16 %v1723
        %v1732 = vunpack.c.l.b16 %v1724
        %v1733 = vunpack.c.l.b16 %v1725
        %v1734 = vpack.c.b16 %v1731, %v1730
        %v1735 = vpack.c.b16 %v1733, %v1732
        %v1739 = vsel %vm1442, %v1716, 0
        %1741 = vmatprep.subr.bf16.mxu0 0
        %1742 = vmatpush1.bf16.msra.mxu0 0
        %1743 = vmatprep.subr.bf16.mxu0 0
        %1744 = vmatpush1.bf16.msra.mxu0 0
        %1745 = vmatprep.subr.bf16.mxu0 0
        %1746 = vmatpush1.bf16.msra.mxu0 0
        %1747 = vmatprep.subr.bf16.mxu0 0
        %1748 = vmatpush1.bf16.msra.mxu0 0
        %1749 = vmatprep.subr.bf16.mxu0 0
        %1750 = vmatpush1.bf16.msra.mxu0 0
        %1751 = vmatprep.subr.bf16.mxu0 0
        %1752 = vmatpush1.bf16.msra.mxu0 0
        %1753 = vmatprep.subr.bf16.mxu0 0
        %1754 = vmatpush1.bf16.msra.mxu0 %v1735
        %1755 = vmatprep.subr.bf16.mxu0 0
        %1756 = vmatpush1.bf16.msra.mxu0 %v1734
        %1757 = vmatprep.subr.bf16.mxu0 0
        %1758 = vmatpush2.bf16.msra.mxu0 0
        %1759 = vmatprep.subr.bf16.mxu0 0
        %1760 = vmatpush2.bf16.msra.mxu0 0
        %1761 = vmatprep.subr.bf16.mxu0 0
        %1762 = vmatpush2.bf16.msra.mxu0 0
        %1763 = vmatprep.subr.bf16.mxu0 0
        %1764 = vmatpush2.bf16.msra.mxu0 0
        %1765 = vmatprep.subr.bf16.mxu0 0
        %1766 = vmatpush2.bf16.msra.mxu0 0
        %1767 = vmatprep.subr.bf16.mxu0 0
        %1768 = vmatpush2.bf16.msra.mxu0 0
        %1769 = vmatprep.subr.bf16.mxu0 0
        %1770 = vmatpush2.bf16.msra.mxu0 0
        %1771 = vmatprep.subr.bf16.mxu0 0
        %1772 = vmatpush2.bf16.msra.mxu0 0
        %1773 = vmatprep.mubr.bf16.mxu0 0
        %1774 = vmatmul.mubr.bf16.gmra.mxu0 %v1739
        %v1775 = vpop.f32.mrf.mxu0
        %v1776 = vadd.f32 0.0, %v1775
        %v1777 = vpop.f32.mrf.mxu0
        %v1778 = vpop.f32.mrf.mxu0
        %v1779 = vadd.f32 0.0, %v1778
        %v1780 = vpop.f32.mrf.mxu0
        %1781 = vdwg.mxu0
        %vm1782 = vcmask 1047557
        %v1783 = vrot.slane %v1776, 3
        %v1784 = vsel %vm1782, %v1783, %v1779
        %v1789 = vunpack.c.l.b16 %v1717
        %v1790 = vunpack.c.l.b16 %v1718
        %v1791 = vunpack.c.l.b16 %v1719
        %v1792 = vunpack.c.l.b16 %v1720
        %v1793 = vpack.c.b16 %v1790, %v1789
        %v1794 = vpack.c.b16 %v1792, %v1791
        %v1799 = vrot.slane %v1776, 1
        %v1800 = vrot.slane %v1784, 1
        %v1801 = vsel %vm879, %v1799, %v1800
        %1804 = vmatprep.subr.bf16.mxu0 0
        %1805 = vmatpush1.bf16.msra.mxu0 0
        %1806 = vmatprep.subr.bf16.mxu0 0
        %1807 = vmatpush1.bf16.msra.mxu0 0
        %1808 = vmatprep.subr.bf16.mxu0 0
        %1809 = vmatpush1.bf16.msra.mxu0 0
        %1810 = vmatprep.subr.bf16.mxu0 0
        %1811 = vmatpush1.bf16.msra.mxu0 0
        %1812 = vmatprep.subr.bf16.mxu0 0
        %1813 = vmatpush1.bf16.msra.mxu0 0
        %1814 = vmatprep.subr.bf16.mxu0 0
        %1815 = vmatpush1.bf16.msra.mxu0 0
        %1816 = vmatprep.subr.bf16.mxu0 0
        %1817 = vmatpush1.bf16.msra.mxu0 %v1794
        %1818 = vmatprep.subr.bf16.mxu0 0
        %1819 = vmatpush1.bf16.msra.mxu0 %v1793
        %1820 = vmatprep.subr.bf16.mxu0 0
        %1821 = vmatpush2.bf16.msra.mxu0 0
        %1822 = vmatprep.subr.bf16.mxu0 0
        %1823 = vmatpush2.bf16.msra.mxu0 0
        %1824 = vmatprep.subr.bf16.mxu0 0
        %1825 = vmatpush2.bf16.msra.mxu0 0
        %1826 = vmatprep.subr.bf16.mxu0 0
        %1827 = vmatpush2.bf16.msra.mxu0 0
        %1828 = vmatprep.subr.bf16.mxu0 0
        %1829 = vmatpush2.bf16.msra.mxu0 0
        %1830 = vmatprep.subr.bf16.mxu0 0
        %1831 = vmatpush2.bf16.msra.mxu0 0
        %1832 = vmatprep.subr.bf16.mxu0 0
        %1833 = vmatpush2.bf16.msra.mxu0 0
        %1834 = vmatprep.subr.bf16.mxu0 0
        %1835 = vmatpush2.bf16.msra.mxu0 0
        %1836 = vmatprep.mubr.bf16.mxu0 0
        %1837 = vmatmul.mubr.bf16.gmra.mxu0 %v1739
        %v1838 = vpop.f32.mrf.mxu0
        %v1839 = vadd.f32 %v1801, %v1838
        %v1840 = vpop.f32.mrf.mxu0
        %v1841 = vpop.f32.mrf.mxu0
        %v1842 = vadd.f32 %v1800, %v1841
        %v1843 = vpop.f32.mrf.mxu0
        %1844 = vdwg.mxu0
        %s1845 = scalar_lea.vmem [#allocation9], 32
        %v1846 = vld [vmem:[%s1845] sm:$0xf]
        %v1847 = vld [vmem:[%s1845 + $0x4] sm:$0xf]
        %v1848 = vld [vmem:[%s1845 + $0x8] sm:$0xf]
        %v1849 = vld [vmem:[%s1845 + $0xc] sm:$0xf]
        %v1854 = vunpack.c.l.b16 %v1846
        %v1855 = vunpack.c.l.b16 %v1847
        %v1856 = vunpack.c.l.b16 %v1848
        %v1857 = vunpack.c.l.b16 %v1849
        %v1858 = vpack.c.b16 %v1855, %v1854
        %v1859 = vpack.c.b16 %v1857, %v1856
        %1862 = vmatprep.subr.bf16.mxu0 0
        %1863 = vmatpush1.bf16.msra.mxu0 0
        %1864 = vmatprep.subr.bf16.mxu0 0
        %1865 = vmatpush1.bf16.msra.mxu0 0
        %1866 = vmatprep.subr.bf16.mxu0 0
        %1867 = vmatpush1.bf16.msra.mxu0 0
        %1868 = vmatprep.subr.bf16.mxu0 0
        %1869 = vmatpush1.bf16.msra.mxu0 0
        %1870 = vmatprep.subr.bf16.mxu0 0
        %1871 = vmatpush1.bf16.msra.mxu0 0
        %1872 = vmatprep.subr.bf16.mxu0 0
        %1873 = vmatpush1.bf16.msra.mxu0 0
        %1874 = vmatprep.subr.bf16.mxu0 0
        %1875 = vmatpush1.bf16.msra.mxu0 %v1859
        %1876 = vmatprep.subr.bf16.mxu0 0
        %1877 = vmatpush1.bf16.msra.mxu0 %v1858
        %1878 = vmatprep.subr.bf16.mxu0 0
        %1879 = vmatpush2.bf16.msra.mxu0 0
        %1880 = vmatprep.subr.bf16.mxu0 0
        %1881 = vmatpush2.bf16.msra.mxu0 0
        %1882 = vmatprep.subr.bf16.mxu0 0
        %1883 = vmatpush2.bf16.msra.mxu0 0
        %1884 = vmatprep.subr.bf16.mxu0 0
        %1885 = vmatpush2.bf16.msra.mxu0 0
        %1886 = vmatprep.subr.bf16.mxu0 0
        %1887 = vmatpush2.bf16.msra.mxu0 0
        %1888 = vmatprep.subr.bf16.mxu0 0
        %1889 = vmatpush2.bf16.msra.mxu0 0
        %1890 = vmatprep.subr.bf16.mxu0 0
        %1891 = vmatpush2.bf16.msra.mxu0 0
        %1892 = vmatprep.subr.bf16.mxu0 0
        %1893 = vmatpush2.bf16.msra.mxu0 0
        %1894 = vmatprep.mubr.bf16.mxu0 0
        %1895 = vmatmul.mubr.bf16.gmra.mxu0 %v1739
        %v1896 = vpop.f32.mrf.mxu0
        %v1897 = vadd.f32 0.0, %v1896
        %v1898 = vpop.f32.mrf.mxu0
        %v1899 = vpop.f32.mrf.mxu0
        %v1900 = vadd.f32 0.0, %v1899
        %v1901 = vpop.f32.mrf.mxu0
        %1902 = vdwg.mxu0
        %v1903 = vrot.slane %v1897, 3
        %v1904 = vsel %vm1782, %v1903, %v1900
        %v1907 = vrot.slane %v1897, 2
        %v1908 = vrot.slane %v1904, 2
        %v1909 = vsel %vm1052, %v1907, %v1908
        %v1912 = vadd.f32 %v1839, %v1909
        %v1913 = vadd.f32 %v1842, %v1908
        %v1915 = vlaneseq
        %v1916 = vshrl.u32 %v1915, 7
        %v1917 = vsub.s32 0, %v1916
        %v1918 = vrot.slane %v1715, %v1917
        %v1920 = vadd.f32 %v1912, %v1918
        %v1921 = vadd.f32 %v1913, %v1918
        %v1922 = vmul.f32 %v1920, 0.2
        %v1923 = vmul.f32 %v1921, 0.2
        %v1924 = vmax.f32 %v1920, %v1922
        %v1925 = vmax.f32 %v1921, %v1923
        %v1926 = vld [vmem:[%s12] sm:$0x1]
        %v1927 = vpack.c.bf16 %v1925, %v1924
        %v1928 = vld [vmem:[%s11] sm:$0xf]
        %v1929 = vld [vmem:[%s11 + $0x4] sm:$0xf]
        %v1930 = vld [vmem:[%s11 + $0x8] sm:$0xf]
        %v1931 = vld [vmem:[%s11 + $0xc] sm:$0xf]
        %v1932 = vld [vmem:[%s11 + $0x10] sm:$0xf]
        %v1933 = vld [vmem:[%s11 + $0x14] sm:$0xf]
        %v1934 = vld [vmem:[%s11 + $0x18] sm:$0xf]
        %v1935 = vld [vmem:[%s11 + $0x1c] sm:$0xf]
        %s1936 = scalar_lea.vmem %s11, 32
        %v1937 = vld [vmem:[%s1936] sm:$0xf]
        %v1938 = vld [vmem:[%s1936 + $0x4] sm:$0xf]
        %v1939 = vld [vmem:[%s1936 + $0x8] sm:$0xf]
        %v1940 = vld [vmem:[%s1936 + $0xc] sm:$0xf]
        %v1941 = vld [vmem:[%s1936 + $0x10] sm:$0xf]
        %v1942 = vld [vmem:[%s1936 + $0x14] sm:$0xf]
        %v1943 = vld [vmem:[%s1936 + $0x18] sm:$0xf]
        %v1944 = vld [vmem:[%s1936 + $0x1c] sm:$0xf]
        %v1953 = vunpack.c.l.b16 %v1937
        %v1954 = vunpack.c.l.b16 %v1938
        %v1955 = vunpack.c.l.b16 %v1939
        %v1956 = vunpack.c.l.b16 %v1940
        %v1957 = vunpack.c.l.b16 %v1941
        %v1958 = vunpack.c.l.b16 %v1942
        %v1959 = vunpack.c.l.b16 %v1943
        %v1960 = vunpack.c.l.b16 %v1944
        %v1961 = vpack.c.b16 %v1954, %v1953
        %v1962 = vpack.c.b16 %v1956, %v1955
        %v1963 = vpack.c.b16 %v1958, %v1957
        %v1964 = vpack.c.b16 %v1960, %v1959
        %vm1969 = vcmask 523264
        %v1971 = vsel %vm1969, %v1927, 0
        %1973 = vmatprep.subr.bf16.mxu0 0
        %1974 = vmatpush1.bf16.msra.mxu0 0
        %1975 = vmatprep.subr.bf16.mxu0 0
        %1976 = vmatpush1.bf16.msra.mxu0 0
        %1977 = vmatprep.subr.bf16.mxu0 0
        %1978 = vmatpush1.bf16.msra.mxu0 0
        %1979 = vmatprep.subr.bf16.mxu0 0
        %1980 = vmatpush1.bf16.msra.mxu0 0
        %1981 = vmatprep.subr.bf16.mxu0 0
        %1982 = vmatpush1.bf16.msra.mxu0 %v1964
        %1983 = vmatprep.subr.bf16.mxu0 0
        %1984 = vmatpush1.bf16.msra.mxu0 %v1963
        %1985 = vmatprep.subr.bf16.mxu0 0
        %1986 = vmatpush1.bf16.msra.mxu0 %v1962
        %1987 = vmatprep.subr.bf16.mxu0 0
        %1988 = vmatpush1.bf16.msra.mxu0 %v1961
        %1989 = vmatprep.subr.bf16.mxu0 0
        %1990 = vmatpush2.bf16.msra.mxu0 0
        %1991 = vmatprep.subr.bf16.mxu0 0
        %1992 = vmatpush2.bf16.msra.mxu0 0
        %1993 = vmatprep.subr.bf16.mxu0 0
        %1994 = vmatpush2.bf16.msra.mxu0 0
        %1995 = vmatprep.subr.bf16.mxu0 0
        %1996 = vmatpush2.bf16.msra.mxu0 0
        %1997 = vmatprep.subr.bf16.mxu0 0
        %1998 = vmatpush2.bf16.msra.mxu0 0
        %1999 = vmatprep.subr.bf16.mxu0 0
        %2000 = vmatpush2.bf16.msra.mxu0 0
        %2001 = vmatprep.subr.bf16.mxu0 0
        %2002 = vmatpush2.bf16.msra.mxu0 0
        %2003 = vmatprep.subr.bf16.mxu0 0
        %2004 = vmatpush2.bf16.msra.mxu0 0
        %2005 = vmatprep.mubr.bf16.mxu0 0
        %2006 = vmatmul.mubr.bf16.gmra.mxu0 %v1971
        %v2007 = vpop.f32.mrf.mxu0
        %v2008 = vadd.f32 0.0, %v2007
        %v2009 = vpop.f32.mrf.mxu0
        %v2010 = vpop.f32.mrf.mxu0
        %v2011 = vadd.f32 0.0, %v2010
        %v2012 = vpop.f32.mrf.mxu0
        %2013 = vdwg.mxu0
        %vm2014 = vcmask 1047555
        %v2015 = vrot.slane %v2008, 5
        %v2016 = vsel %vm2014, %v2015, %v2011
        %v2025 = vunpack.c.l.b16 %v1928
        %v2026 = vunpack.c.l.b16 %v1929
        %v2027 = vunpack.c.l.b16 %v1930
        %v2028 = vunpack.c.l.b16 %v1931
        %v2029 = vunpack.c.l.b16 %v1932
        %v2030 = vunpack.c.l.b16 %v1933
        %v2031 = vunpack.c.l.b16 %v1934
        %v2032 = vunpack.c.l.b16 %v1935
        %v2033 = vpack.c.b16 %v2026, %v2025
        %v2034 = vpack.c.b16 %v2028, %v2027
        %v2035 = vpack.c.b16 %v2030, %v2029
        %v2036 = vpack.c.b16 %v2032, %v2031
        %v2043 = vrot.slane %v2008, 1
        %v2044 = vrot.slane %v2016, 1
        %v2045 = vsel %vm879, %v2043, %v2044
        %2048 = vmatprep.subr.bf16.mxu0 0
        %2049 = vmatpush1.bf16.msra.mxu0 0
        %2050 = vmatprep.subr.bf16.mxu0 0
        %2051 = vmatpush1.bf16.msra.mxu0 0
        %2052 = vmatprep.subr.bf16.mxu0 0
        %2053 = vmatpush1.bf16.msra.mxu0 0
        %2054 = vmatprep.subr.bf16.mxu0 0
        %2055 = vmatpush1.bf16.msra.mxu0 0
        %2056 = vmatprep.subr.bf16.mxu0 0
        %2057 = vmatpush1.bf16.msra.mxu0 %v2036
        %2058 = vmatprep.subr.bf16.mxu0 0
        %2059 = vmatpush1.bf16.msra.mxu0 %v2035
        %2060 = vmatprep.subr.bf16.mxu0 0
        %2061 = vmatpush1.bf16.msra.mxu0 %v2034
        %2062 = vmatprep.subr.bf16.mxu0 0
        %2063 = vmatpush1.bf16.msra.mxu0 %v2033
        %2064 = vmatprep.subr.bf16.mxu0 0
        %2065 = vmatpush2.bf16.msra.mxu0 0
        %2066 = vmatprep.subr.bf16.mxu0 0
        %2067 = vmatpush2.bf16.msra.mxu0 0
        %2068 = vmatprep.subr.bf16.mxu0 0
        %2069 = vmatpush2.bf16.msra.mxu0 0
        %2070 = vmatprep.subr.bf16.mxu0 0
        %2071 = vmatpush2.bf16.msra.mxu0 0
        %2072 = vmatprep.subr.bf16.mxu0 0
        %2073 = vmatpush2.bf16.msra.mxu0 0
        %2074 = vmatprep.subr.bf16.mxu0 0
        %2075 = vmatpush2.bf16.msra.mxu0 0
        %2076 = vmatprep.subr.bf16.mxu0 0
        %2077 = vmatpush2.bf16.msra.mxu0 0
        %2078 = vmatprep.subr.bf16.mxu0 0
        %2079 = vmatpush2.bf16.msra.mxu0 0
        %2080 = vmatprep.mubr.bf16.mxu0 0
        %2081 = vmatmul.mubr.bf16.gmra.mxu0 %v1971
        %v2082 = vpop.f32.mrf.mxu0
        %v2083 = vadd.f32 %v2045, %v2082
        %v2084 = vpop.f32.mrf.mxu0
        %v2085 = vpop.f32.mrf.mxu0
        %v2086 = vadd.f32 %v2044, %v2085
        %v2087 = vpop.f32.mrf.mxu0
        %2088 = vdwg.mxu0
        %s2089 = scalar_lea.vmem %s11, 64
        %v2090 = vld [vmem:[%s2089] sm:$0xf]
        %v2091 = vld [vmem:[%s2089 + $0x4] sm:$0xf]
        %v2092 = vld [vmem:[%s2089 + $0x8] sm:$0xf]
        %v2093 = vld [vmem:[%s2089 + $0xc] sm:$0xf]
        %v2094 = vld [vmem:[%s2089 + $0x10] sm:$0xf]
        %v2095 = vld [vmem:[%s2089 + $0x14] sm:$0xf]
        %v2096 = vld [vmem:[%s2089 + $0x18] sm:$0xf]
        %v2097 = vld [vmem:[%s2089 + $0x1c] sm:$0xf]
        %v2106 = vunpack.c.l.b16 %v2090
        %v2107 = vunpack.c.l.b16 %v2091
        %v2108 = vunpack.c.l.b16 %v2092
        %v2109 = vunpack.c.l.b16 %v2093
        %v2110 = vunpack.c.l.b16 %v2094
        %v2111 = vunpack.c.l.b16 %v2095
        %v2112 = vunpack.c.l.b16 %v2096
        %v2113 = vunpack.c.l.b16 %v2097
        %v2114 = vpack.c.b16 %v2107, %v2106
        %v2115 = vpack.c.b16 %v2109, %v2108
        %v2116 = vpack.c.b16 %v2111, %v2110
        %v2117 = vpack.c.b16 %v2113, %v2112
        %2122 = vmatprep.subr.bf16.mxu0 0
        %2123 = vmatpush1.bf16.msra.mxu0 0
        %2124 = vmatprep.subr.bf16.mxu0 0
        %2125 = vmatpush1.bf16.msra.mxu0 0
        %2126 = vmatprep.subr.bf16.mxu0 0
        %2127 = vmatpush1.bf16.msra.mxu0 0
        %2128 = vmatprep.subr.bf16.mxu0 0
        %2129 = vmatpush1.bf16.msra.mxu0 0
        %2130 = vmatprep.subr.bf16.mxu0 0
        %2131 = vmatpush1.bf16.msra.mxu0 %v2117
        %2132 = vmatprep.subr.bf16.mxu0 0
        %2133 = vmatpush1.bf16.msra.mxu0 %v2116
        %2134 = vmatprep.subr.bf16.mxu0 0
        %2135 = vmatpush1.bf16.msra.mxu0 %v2115
        %2136 = vmatprep.subr.bf16.mxu0 0
        %2137 = vmatpush1.bf16.msra.mxu0 %v2114
        %2138 = vmatprep.subr.bf16.mxu0 0
        %2139 = vmatpush2.bf16.msra.mxu0 0
        %2140 = vmatprep.subr.bf16.mxu0 0
        %2141 = vmatpush2.bf16.msra.mxu0 0
        %2142 = vmatprep.subr.bf16.mxu0 0
        %2143 = vmatpush2.bf16.msra.mxu0 0
        %2144 = vmatprep.subr.bf16.mxu0 0
        %2145 = vmatpush2.bf16.msra.mxu0 0
        %2146 = vmatprep.subr.bf16.mxu0 0
        %2147 = vmatpush2.bf16.msra.mxu0 0
        %2148 = vmatprep.subr.bf16.mxu0 0
        %2149 = vmatpush2.bf16.msra.mxu0 0
        %2150 = vmatprep.subr.bf16.mxu0 0
        %2151 = vmatpush2.bf16.msra.mxu0 0
        %2152 = vmatprep.subr.bf16.mxu0 0
        %2153 = vmatpush2.bf16.msra.mxu0 0
        %2154 = vmatprep.mubr.bf16.mxu0 0
        %2155 = vmatmul.mubr.bf16.gmra.mxu0 %v1971
        %v2156 = vpop.f32.mrf.mxu0
        %v2157 = vadd.f32 0.0, %v2156
        %v2158 = vpop.f32.mrf.mxu0
        %v2159 = vpop.f32.mrf.mxu0
        %v2160 = vadd.f32 0.0, %v2159
        %v2161 = vpop.f32.mrf.mxu0
        %2162 = vdwg.mxu0
        %v2163 = vrot.slane %v2157, 5
        %v2164 = vsel %vm2014, %v2163, %v2160
        %v2167 = vrot.slane %v2157, 2
        %v2168 = vrot.slane %v2164, 2
        %v2169 = vsel %vm1052, %v2167, %v2168
        %v2172 = vadd.f32 %v2083, %v2169
        %v2173 = vadd.f32 %v2086, %v2168
        %v2175 = vlaneseq
        %v2176 = vshrl.u32 %v2175, 7
        %v2177 = vsub.s32 0, %v2176
        %v2178 = vrot.slane %v1926, %v2177
        %v2180 = vadd.f32 %v2172, %v2178
        %v2181 = vadd.f32 %v2173, %v2178
        %v2182 = vmul.f32 %v2180, 0.2
        %v2183 = vmul.f32 %v2181, 0.2
        %v2184 = vmax.f32 %v2180, %v2182
        %v2185 = vmax.f32 %v2181, %v2183
        %2186 = vst.msk [vmem:[%s588] sm:$0xff] %vm1969, %v2184
        %vm2187 = vcmask 516096
        %2188 = vst.msk [vmem:[%s588 + $0x8] sm:$0x1] %vm2187, %v2185
        %p2189 = scmp.lt.s32.totalorder %s30, 1
        %s2190 = scalar_select %p2189, %s30, 1
        %s2191 = smul.addr %s2190, 8
        %s2192 = smul.addr %s2191, 8
        %s2193 = scalar_lea.vmem %s13, %s2192
        %p2194 = scmp.lt.s32.totalorder %s30, 1
        %s2195 = scalar_select %p2194, %s30, 1
        %s2196 = smul.addr %s2195, 4
        %s2197 = smul.addr %s2196, 8
        %s2198 = scalar_lea.vmem %s14, %s2197
        %p2199 = scmp.lt.s32.totalorder %s30, 1
        %s2200 = scalar_select %p2199, %s30, 1
        %s2201 = smul.addr %s2200, 2
        %s2202 = smul.addr %s2201, 8
        %s2203 = scalar_lea.vmem %s15, %s2202
        // Predicated region
        $region93: #{tpu_custom_call.1} parent=71 // pred_check
          %p2204 = pneg %p326
        $region94: #{tpu_custom_call.1} parent=71 // pred_check_branch
          %2206 = sbr.rel (%p2204) target = $region96
        $region95: #{tpu_custom_call.1} parent=71 // pred_region
          _
        $region96: #{tpu_custom_call.1} parent=71 // pred_fallthru
          _
        // Predicated region
        $region97: #{tpu_custom_call.1} parent=71 // pred_check
          %p2207 = pneg %p352
        $region98: #{tpu_custom_call.1} parent=71 // pred_check_branch
          %2209 = sbr.rel (%p2207) target = $region100
        $region99: #{tpu_custom_call.1} parent=71 // pred_region
          _
        $region100: #{tpu_custom_call.1} parent=71 // pred_fallthru
          _
        // Predicated region
        $region101: #{tpu_custom_call.1} parent=71 // pred_check
          %p2210 = pneg %p378
        $region102: #{tpu_custom_call.1} parent=71 // pred_check_branch
          %2212 = sbr.rel (%p2210) target = $region104
        $region103: #{tpu_custom_call.1} parent=71 // pred_region
          _
        $region104: #{tpu_custom_call.1} parent=71 // pred_fallthru
          _
      $region72: #{tpu_custom_call.1} parent=5 // pred_fallthru
        _
      %p2213 = scmp.le.s32.totalorder 2, %s25
      // Predicated region
      $region105: #{tpu_custom_call.1} parent=5 // pred_check
        %p2214 = pneg %p2213
      $region106: #{tpu_custom_call.1} parent=5 // pred_check_branch
        %2216 = sbr.rel (%p2214) target = $region108
      $region107: #{tpu_custom_call.1} parent=5 // pred_region
        %s2217 = ssub.s32 %s25, 2
        // Predicated region
        $region109: #{tpu_custom_call.1} parent=107 // pred_check
          %p2218 = pneg %p332
        $region110: #{tpu_custom_call.1} parent=107 // pred_check_branch
          %2220 = sbr.rel (%p2218) target = $region112
        $region111: #{tpu_custom_call.1} parent=107 // pred_region
          %p2221 = scmp.lt.s32.totalorder %s31, 1
          %s2222 = scalar_select %p2221, %s31, 1
          %s2223 = smul.addr %s2222, 8
          %s2224 = smul.addr %s2223, 8
          %s2225 = scalar_lea.vmem %s13, %s2224
        $region112: #{tpu_custom_call.1} parent=107 // pred_fallthru
          _
        // Predicated region
        $region113: #{tpu_custom_call.1} parent=107 // pred_check
          %p2226 = pneg %p358
        $region114: #{tpu_custom_call.1} parent=107 // pred_check_branch
          %2228 = sbr.rel (%p2226) target = $region116
        $region115: #{tpu_custom_call.1} parent=107 // pred_region
          %p2229 = scmp.lt.s32.totalorder %s31, 1
          %s2230 = scalar_select %p2229, %s31, 1
          %s2231 = smul.addr %s2230, 4
          %s2232 = smul.addr %s2231, 8
          %s2233 = scalar_lea.vmem %s14, %s2232
        $region116: #{tpu_custom_call.1} parent=107 // pred_fallthru
          _
        // Predicated region
        $region117: #{tpu_custom_call.1} parent=107 // pred_check
          %p2234 = pneg %p384
        $region118: #{tpu_custom_call.1} parent=107 // pred_check_branch
          %2236 = sbr.rel (%p2234) target = $region120
        $region119: #{tpu_custom_call.1} parent=107 // pred_region
          %p2237 = scmp.lt.s32.totalorder %s31, 1
          %s2238 = scalar_select %p2237, %s31, 1
          %s2239 = smul.addr %s2238, 2
          %s2240 = smul.addr %s2239, 8
          %s2241 = scalar_lea.vmem %s15, %s2240
        $region120: #{tpu_custom_call.1} parent=107 // pred_fallthru
          _
      $region108: #{tpu_custom_call.1} parent=5 // pred_fallthru
        _
    $region6: #{tpu_custom_call.1} parent=1 // loop_footer
      %s29 = sadd.s32 1, %s25
    $region7: #{tpu_custom_call.1} parent=1 // loop_footer_branch
      %24 = sbr.rel target = $region3
    $region8: #{tpu_custom_call.1} parent=1 // loop_exit
      _
    %2242 = vsyncpa [#allocation5], 1
    %s2243 = scalar_lea.sflag [#allocation5], 1
    %2244 = vsyncpa %s2243, 1
    %2245 = vsyncpa [#allocation7], 1
    %2246 = vsyncpa [#allocation10], 1

// kernel: tpu_custom_call.1
$region0: #{tpu_custom_call.1}
  #allocation0 [shape = 'u32[]', space=smem, size = 0x4, offset = 0x4, fixed_abs, tag = 'smem constant byte address 0x4 - core index']
  #allocation1 [shape = 'u32[144,128]{1,0:T(1,128)}', space=vmem, size = 0x12000, scoped, tag = 'internal scratch']
  #allocation2 [shape = 'f32[60,16]{1,0:T(8,128)}', space=vmem, size = 0x8000, scoped, tag = 'scratch operand']
  #allocation3 [shape = 'f32[26,32]{1,0:T(8,128)}', space=vmem, size = 0x4000, scoped, tag = 'scratch operand']
  %s0 = inlined_call_operand.vmem [shape: f32[2,64,1], index: 0, kind: input, shape index: {}]
  %s1 = inlined_call_operand.vmem [shape: f32[3,1,16], index: 1, kind: input, shape index: {}]
  %s2 = inlined_call_operand.vmem [shape: f32[1,16], index: 2, kind: input, shape index: {}]
  %s3 = inlined_call_operand.hbm [shape: bf16[3,16,16], index: 3, kind: input, shape index: {}]
  %s4 = inlined_call_operand.vmem [shape: f32[1,16], index: 4, kind: input, shape index: {}]
  %s5 = inlined_call_operand.hbm [shape: bf16[3,16,32], index: 5, kind: input, shape index: {}]
  %s6 = inlined_call_operand.vmem [shape: f32[1,32], index: 6, kind: input, shape index: {}]
  %s7 = inlined_call_operand.vmem [shape: bf16[3,32,32], index: 7, kind: input, shape index: {}]
  %s8 = inlined_call_operand.hbm [shape: f32[1,32], index: 8, kind: input, shape index: {}]
  %s9 = inlined_call_operand.hbm [shape: bf16[3,32,64], index: 9, kind: input, shape index: {}]
  %s10 = inlined_call_operand.hbm [shape: f32[1,64], index: 10, kind: input, shape index: {}]
  %s11 = inlined_call_operand.vmem [shape: bf16[3,64,64], index: 11, kind: input, shape index: {}]
  %s12 = inlined_call_operand.vmem [shape: f32[1,64], index: 12, kind: input, shape index: {}]
  %s13 = inlined_call_operand.vmem [shape: f32[2,60,16], index: 13, kind: output, shape index: {0}]
  %s14 = inlined_call_operand.vmem [shape: f32[2,26,32], index: 14, kind: output, shape index: {1}]
  %s15 = inlined_call_operand.vmem [shape: f32[2,9,64], index: 15, kind: output, shape index: {2}]
  %16 = xla_tuple %s13, %s14, %s15
  %s17 = sld [smem:[#allocation0]]
  $region121: #{tpu_custom_call.1} parent=0
    _
  %s19 = ssub.s32 1, %s17
  %s20 = scalar_select 0, %s19, %s17
  $region1: #{tpu_custom_call.1} parent=0
    #allocation4 [shape = 'u8[12288]{0}', space=vmem, size = 0x3000, scoped, tag = 'input window, operand 3, single buffered']
    #allocation5 [shape = 's32[2]{0}', space=sflag, size = 0x8, scoped, tag = 'scoped memory for tpu_custom_call.1']
    #allocation6 [shape = 'u8[12288]{0}', space=vmem, size = 0x3000, scoped, tag = 'input window, operand 5, single buffered']
    #allocation7 [shape = 's32[1]{0}', space=sflag, size = 0x4, scoped, tag = 'scoped memory for tpu_custom_call.1']
    #allocation8 [shape = 'u8[512]{0}', space=vmem, size = 0x400, scoped, tag = 'input window, operand 8, single buffered']
    #allocation9 [shape = 'u8[24576]{0}', space=vmem, size = 0x6000, scoped, tag = 'input window, operand 9, single buffered']
    #allocation10 [shape = 's32[1]{0}', space=sflag, size = 0x4, scoped, tag = 'scoped memory for tpu_custom_call.1']
    #allocation11 [shape = 'u8[512]{0}', space=vmem, size = 0x400, scoped, tag = 'input window, operand 10, single buffered']
    %21 = vsyncpa [#allocation5], 0
    %22 = vsyncpa [#allocation7], 0
    %23 = vsyncpa [#allocation10], 0
    loop: start=0, step=1, limit=4
    $region2: #{tpu_custom_call.1} parent=1 // loop_pre_header
      _
    $region3: #{tpu_custom_call.1} parent=1 // loop_header
      %s25 = sphi 0, %s29
      %p26 = scmp.ge.s32.totalorder %s25, 4
      %s35 = sphi 0, %s37
      %s38 = sphi 0, %s35
      %s39 = sphi 0, %s38
      %s55 = sphi 0, %s39
      %s59 = sphi 0, %s59
      %s61 = sphi 0, %s59
      %s62 = sphi 0, %s61
      %s76 = sphi 0, %s62
      %s80 = sphi 0, %s80
      %s82 = sphi 0, %s80
      %s83 = sphi 0, %s82
      %s97 = sphi 0, %s83
      %s101 = sphi 0, %s101
      %s103 = sphi 0, %s101
      %s104 = sphi 0, %s103
      %s118 = sphi 0, %s104
      %s122 = sphi 0, %s122
      %s124 = sphi 0, %s122
      %s125 = sphi 0, %s124
      %s139 = sphi 0, %s125
      %s143 = sphi 0, %s143
      %s145 = sphi 0, %s143
      %s146 = sphi 0, %s145
      %s160 = sphi 0, %s146
      %s164 = sphi 0, %s164
      %s166 = sphi 0, %s164
      %s167 = sphi 0, %s166
      %s181 = sphi 0, %s167
      %s185 = sphi 0, %s185
      %s187 = sphi 0, %s185
      %s188 = sphi 0, %s187
      %s202 = sphi 0, %s188
      %s206 = sphi 0, %s206
      %s208 = sphi 0, %s206
      %s209 = sphi 0, %s208
      %s223 = sphi 0, %s209
      %s227 = sphi 0, %s227
      %s229 = sphi 0, %s227
      %s230 = sphi 0, %s229
      %s244 = sphi 0, %s230
      %s248 = sphi 0, %s248
      %s250 = sphi 0, %s248
      %s251 = sphi 0, %s250
      %s265 = sphi 0, %s251
      %s269 = sphi 0, %s269
      %s271 = sphi 0, %s269
      %s272 = sphi 0, %s271
      %s286 = sphi 0, %s272
      %s290 = sphi 0, %s290
      %s292 = sphi 0, %s290
      %s293 = sphi 0, %s292
      %s307 = sphi 0, %s293
      %s313 = sphi 0, %s315
      %s316 = sphi 0, %s313
      %s317 = sphi 0, %s316
      %s333 = sphi 0, %s317
      %s339 = sphi 0, %s341
      %s342 = sphi 0, %s339
      %s343 = sphi 0, %s342
      %s359 = sphi 0, %s343
      %s365 = sphi 0, %s367
      %s368 = sphi 0, %s365
      %s369 = sphi 0, %s368
      %s385 = sphi 0, %s369
    $region4: #{tpu_custom_call.1} parent=1 // loop_header_branch
      %28 = sbr.rel (%p26) target = $region8
    $region5: #{tpu_custom_call.1} parent=1 // loop_body
      %s30 = ssub.s32 %s25, 1
      %s31 = ssub.s32 %s25, 2
      %s32 = sadd.s32 %s25, 1
      %s33 = ssub.s32 %s25, %s32
      %p34 = scmp.eq.s32.totalorder %s33, 0
      %s36 = sadd.s32 %s35, 1
      %s37 = scalar_select %p34, %s35, %s36
      %p40 = pneg %p34
      %p41 = scmp.eq.s32.totalorder %s25, 1
      %p42 = por %p40, %p41
      %p43 = scmp.ne.s32.totalorder %s35, %s38
      %p44 = scmp.eq.s32.totalorder %s25, 0
      %p45 = por %p43, %p44
      %p46 = scmp.ne.s32.totalorder %s35, %s38
      %p47 = scmp.eq.s32.totalorder %s30, 1
      %p48 = por %p46, %p47
      %p49 = scmp.ne.s32.totalorder %s38, %s39
      %p50 = scmp.eq.s32.totalorder %s30, 0
      %p51 = por %p49, %p50
      %p52 = scmp.ne.s32.totalorder %s38, %s39
      %p53 = scmp.eq.s32.totalorder %s31, 1
      %p54 = por %p52, %p53
      %p56 = scmp.ne.s32.totalorder %s39, %s55
      %p57 = scmp.eq.s32.totalorder %s31, 0
      %p58 = por %p56, %p57
      %s60 = sadd.s32 %s59, 1
      %p63 = scmp.eq.s32.totalorder %s25, 1
      %p64 = scmp.ne.s32.totalorder %s59, %s61
      %p65 = scmp.eq.s32.totalorder %s25, 0
      %p66 = por %p64, %p65
      %p67 = scmp.ne.s32.totalorder %s59, %s61
      %p68 = scmp.eq.s32.totalorder %s30, 1
      %p69 = por %p67, %p68
      %p70 = scmp.ne.s32.totalorder %s61, %s62
      %p71 = scmp.eq.s32.totalorder %s30, 0
      %p72 = por %p70, %p71
      %p73 = scmp.ne.s32.totalorder %s61, %s62
      %p74 = scmp.eq.s32.totalorder %s31, 1
      %p75 = por %p73, %p74
      %p77 = scmp.ne.s32.totalorder %s62, %s76
      %p78 = scmp.eq.s32.totalorder %s31, 0
      %p79 = por %p77, %p78
      %s81 = sadd.s32 %s80, 1
      %p84 = scmp.eq.s32.totalorder %s25, 1
      %p85 = scmp.ne.s32.totalorder %s80, %s82
      %p86 = scmp.eq.s32.totalorder %s25, 0
      %p87 = por %p85, %p86
      %p88 = scmp.ne.s32.totalorder %s80, %s82
      %p89 = scmp.eq.s32.totalorder %s30, 1
      %p90 = por %p88, %p89
      %p91 = scmp.ne.s32.totalorder %s82, %s83
      %p92 = scmp.eq.s32.totalorder %s30, 0
      %p93 = por %p91, %p92
      %p94 = scmp.ne.s32.totalorder %s82, %s83
      %p95 = scmp.eq.s32.totalorder %s31, 1
      %p96 = por %p94, %p95
      %p98 = scmp.ne.s32.totalorder %s83, %s97
      %p99 = scmp.eq.s32.totalorder %s31, 0
      %p100 = por %p98, %p99
      %s102 = sadd.s32 %s101, 1
      %p105 = scmp.eq.s32.totalorder %s25, 1
      %p106 = scmp.ne.s32.totalorder %s101, %s103
      %p107 = scmp.eq.s32.totalorder %s25, 0
      %p108 = por %p106, %p107
      %p109 = scmp.ne.s32.totalorder %s101, %s103
      %p110 = scmp.eq.s32.totalorder %s30, 1
      %p111 = por %p109, %p110
      %p112 = scmp.ne.s32.totalorder %s103, %s104
      %p113 = scmp.eq.s32.totalorder %s30, 0
      %p114 = por %p112, %p113
      %p115 = scmp.ne.s32.totalorder %s103, %s104
      %p116 = scmp.eq.s32.totalorder %s31, 1
      %p117 = por %p115, %p116
      %p119 = scmp.ne.s32.totalorder %s104, %s118
      %p120 = scmp.eq.s32.totalorder %s31, 0
      %p121 = por %p119, %p120
      %s123 = sadd.s32 %s122, 1
      %p126 = scmp.eq.s32.totalorder %s25, 1
      %p127 = scmp.ne.s32.totalorder %s122, %s124
      %p128 = scmp.eq.s32.totalorder %s25, 0
      %p129 = por %p127, %p128
      %p130 = scmp.ne.s32.totalorder %s122, %s124
      %p131 = scmp.eq.s32.totalorder %s30, 1
      %p132 = por %p130, %p131
      %p133 = scmp.ne.s32.totalorder %s124, %s125
      %p134 = scmp.eq.s32.totalorder %s30, 0
      %p135 = por %p133, %p134
      %p136 = scmp.ne.s32.totalorder %s124, %s125
      %p137 = scmp.eq.s32.totalorder %s31, 1
      %p138 = por %p136, %p137
      %p140 = scmp.ne.s32.totalorder %s125, %s139
      %p141 = scmp.eq.s32.totalorder %s31, 0
      %p142 = por %p140, %p141
      %s144 = sadd.s32 %s143, 1
      %p147 = scmp.eq.s32.totalorder %s25, 1
      %p148 = scmp.ne.s32.totalorder %s143, %s145
      %p149 = scmp.eq.s32.totalorder %s25, 0
      %p150 = por %p148, %p149
      %p151 = scmp.ne.s32.totalorder %s143, %s145
      %p152 = scmp.eq.s32.totalorder %s30, 1
      %p153 = por %p151, %p152
      %p154 = scmp.ne.s32.totalorder %s145, %s146
      %p155 = scmp.eq.s32.totalorder %s30, 0
      %p156 = por %p154, %p155
      %p157 = scmp.ne.s32.totalorder %s145, %s146
      %p158 = scmp.eq.s32.totalorder %s31, 1
      %p159 = por %p157, %p158
      %p161 = scmp.ne.s32.totalorder %s146, %s160
      %p162 = scmp.eq.s32.totalorder %s31, 0
      %p163 = por %p161, %p162
      %s165 = sadd.s32 %s164, 1
      %p168 = scmp.eq.s32.totalorder %s25, 1
      %p169 = scmp.ne.s32.totalorder %s164, %s166
      %p170 = scmp.eq.s32.totalorder %s25, 0
      %p171 = por %p169, %p170
      %p172 = scmp.ne.s32.totalorder %s164, %s166
      %p173 = scmp.eq.s32.totalorder %s30, 1
      %p174 = por %p172, %p173
      %p175 = scmp.ne.s32.totalorder %s166, %s167
      %p176 = scmp.eq.s32.totalorder %s30, 0
      %p177 = por %p175, %p176
      %p178 = scmp.ne.s32.totalorder %s166, %s167
      %p179 = scmp.eq.s32.totalorder %s31, 1
      %p180 = por %p178, %p179
      %p182 = scmp.ne.s32.totalorder %s167, %s181
      %p183 = scmp.eq.s32.totalorder %s31, 0
      %p184 = por %p182, %p183
      %s186 = sadd.s32 %s185, 1
      %p189 = scmp.eq.s32.totalorder %s25, 1
      %p190 = scmp.ne.s32.totalorder %s185, %s187
      %p191 = scmp.eq.s32.totalorder %s25, 0
      %p192 = por %p190, %p191
      %p193 = scmp.ne.s32.totalorder %s185, %s187
      %p194 = scmp.eq.s32.totalorder %s30, 1
      %p195 = por %p193, %p194
      %p196 = scmp.ne.s32.totalorder %s187, %s188
      %p197 = scmp.eq.s32.totalorder %s30, 0
      %p198 = por %p196, %p197
      %p199 = scmp.ne.s32.totalorder %s187, %s188
      %p200 = scmp.eq.s32.totalorder %s31, 1
      %p201 = por %p199, %p200
      %p203 = scmp.ne.s32.totalorder %s188, %s202
      %p204 = scmp.eq.s32.totalorder %s31, 0
      %p205 = por %p203, %p204
      %s207 = sadd.s32 %s206, 1
      %p210 = scmp.eq.s32.totalorder %s25, 1
      %p211 = scmp.ne.s32.totalorder %s206, %s208
      %p212 = scmp.eq.s32.totalorder %s25, 0
      %p213 = por %p211, %p212
      %p214 = scmp.ne.s32.totalorder %s206, %s208
      %p215 = scmp.eq.s32.totalorder %s30, 1
      %p216 = por %p214, %p215
      %p217 = scmp.ne.s32.totalorder %s208, %s209
      %p218 = scmp.eq.s32.totalorder %s30, 0
      %p219 = por %p217, %p218
      %p220 = scmp.ne.s32.totalorder %s208, %s209
      %p221 = scmp.eq.s32.totalorder %s31, 1
      %p222 = por %p220, %p221
      %p224 = scmp.ne.s32.totalorder %s209, %s223
      %p225 = scmp.eq.s32.totalorder %s31, 0
      %p226 = por %p224, %p225
      %s228 = sadd.s32 %s227, 1
      %p231 = scmp.eq.s32.totalorder %s25, 1
      %p232 = scmp.ne.s32.totalorder %s227, %s229
      %p233 = scmp.eq.s32.totalorder %s25, 0
      %p234 = por %p232, %p233
      %p235 = scmp.ne.s32.totalorder %s227, %s229
      %p236 = scmp.eq.s32.totalorder %s30, 1
      %p237 = por %p235, %p236
      %p238 = scmp.ne.s32.totalorder %s229, %s230
      %p239 = scmp.eq.s32.totalorder %s30, 0
      %p240 = por %p238, %p239
      %p241 = scmp.ne.s32.totalorder %s229, %s230
      %p242 = scmp.eq.s32.totalorder %s31, 1
      %p243 = por %p241, %p242
      %p245 = scmp.ne.s32.totalorder %s230, %s244
      %p246 = scmp.eq.s32.totalorder %s31, 0
      %p247 = por %p245, %p246
      %s249 = sadd.s32 %s248, 1
      %p252 = scmp.eq.s32.totalorder %s25, 1
      %p253 = scmp.ne.s32.totalorder %s248, %s250
      %p254 = scmp.eq.s32.totalorder %s25, 0
      %p255 = por %p253, %p254
      %p256 = scmp.ne.s32.totalorder %s248, %s250
      %p257 = scmp.eq.s32.totalorder %s30, 1
      %p258 = por %p256, %p257
      %p259 = scmp.ne.s32.totalorder %s250, %s251
      %p260 = scmp.eq.s32.totalorder %s30, 0
      %p261 = por %p259, %p260
      %p262 = scmp.ne.s32.totalorder %s250, %s251
      %p263 = scmp.eq.s32.totalorder %s31, 1
      %p264 = por %p262, %p263
      %p266 = scmp.ne.s32.totalorder %s251, %s265
      %p267 = scmp.eq.s32.totalorder %s31, 0
      %p268 = por %p266, %p267
      %s270 = sadd.s32 %s269, 1
      %p273 = scmp.eq.s32.totalorder %s25, 1
      %p274 = scmp.ne.s32.totalorder %s269, %s271
      %p275 = scmp.eq.s32.totalorder %s25, 0
      %p276 = por %p274, %p275
      %p277 = scmp.ne.s32.totalorder %s269, %s271
      %p278 = scmp.eq.s32.totalorder %s30, 1
      %p279 = por %p277, %p278
      %p280 = scmp.ne.s32.totalorder %s271, %s272
      %p281 = scmp.eq.s32.totalorder %s30, 0
      %p282 = por %p280, %p281
      %p283 = scmp.ne.s32.totalorder %s271, %s272
      %p284 = scmp.eq.s32.totalorder %s31, 1
      %p285 = por %p283, %p284
      %p287 = scmp.ne.s32.totalorder %s272, %s286
      %p288 = scmp.eq.s32.totalorder %s31, 0
      %p289 = por %p287, %p288
      %s291 = sadd.s32 %s290, 1
      %p294 = scmp.eq.s32.totalorder %s25, 1
      %p295 = scmp.ne.s32.totalorder %s290, %s292
      %p296 = scmp.eq.s32.totalorder %s25, 0
      %p297 = por %p295, %p296
      %p298 = scmp.ne.s32.totalorder %s290, %s292
      %p299 = scmp.eq.s32.totalorder %s30, 1
      %p300 = por %p298, %p299
      %p301 = scmp.ne.s32.totalorder %s292, %s293
      %p302 = scmp.eq.s32.totalorder %s30, 0
      %p303 = por %p301, %p302
      %p304 = scmp.ne.s32.totalorder %s292, %s293
      %p305 = scmp.eq.s32.totalorder %s31, 1
      %p306 = por %p304, %p305
      %p308 = scmp.ne.s32.totalorder %s293, %s307
      %p309 = scmp.eq.s32.totalorder %s31, 0
      %p310 = por %p308, %p309
      %s311 = ssub.s32 %s25, %s32
      %p312 = scmp.eq.s32.totalorder %s311, 0
      %s314 = sadd.s32 %s313, 1
      %s315 = scalar_select %p312, %s313, %s314
      %p318 = pneg %p312
      %p319 = scmp.eq.s32.totalorder %s25, 1
      %p320 = por %p318, %p319
      %p321 = scmp.ne.s32.totalorder %s313, %s316
      %p322 = scmp.eq.s32.totalorder %s25, 0
      %p323 = por %p321, %p322
      %p324 = scmp.ne.s32.totalorder %s313, %s316
      %p325 = scmp.eq.s32.totalorder %s30, 1
      %p326 = por %p324, %p325
      %p327 = scmp.ne.s32.totalorder %s316, %s317
      %p328 = scmp.eq.s32.totalorder %s30, 0
      %p329 = por %p327, %p328
      %p330 = scmp.ne.s32.totalorder %s316, %s317
      %p331 = scmp.eq.s32.totalorder %s31, 1
      %p332 = por %p330, %p331
      %p334 = scmp.ne.s32.totalorder %s317, %s333
      %p335 = scmp.eq.s32.totalorder %s31, 0
      %p336 = por %p334, %p335
      %s337 = ssub.s32 %s25, %s32
      %p338 = scmp.eq.s32.totalorder %s337, 0
      %s340 = sadd.s32 %s339, 1
      %s341 = scalar_select %p338, %s339, %s340
      %p344 = pneg %p338
      %p345 = scmp.eq.s32.totalorder %s25, 1
      %p346 = por %p344, %p345
      %p347 = scmp.ne.s32.totalorder %s339, %s342
      %p348 = scmp.eq.s32.totalorder %s25, 0
      %p349 = por %p347, %p348
      %p350 = scmp.ne.s32.totalorder %s339, %s342
      %p351 = scmp.eq.s32.totalorder %s30, 1
      %p352 = por %p350, %p351
      %p353 = scmp.ne.s32.totalorder %s342, %s343
      %p354 = scmp.eq.s32.totalorder %s30, 0
      %p355 = por %p353, %p354
      %p356 = scmp.ne.s32.totalorder %s342, %s343
      %p357 = scmp.eq.s32.totalorder %s31, 1
      %p358 = por %p356, %p357
      %p360 = scmp.ne.s32.totalorder %s343, %s359
      %p361 = scmp.eq.s32.totalorder %s31, 0
      %p362 = por %p360, %p361
      %s363 = ssub.s32 %s25, %s32
      %p364 = scmp.eq.s32.totalorder %s363, 0
      %s366 = sadd.s32 %s365, 1
      %s367 = scalar_select %p364, %s365, %s366
      %p370 = pneg %p364
      %p371 = scmp.eq.s32.totalorder %s25, 1
      %p372 = por %p370, %p371
      %p373 = scmp.ne.s32.totalorder %s365, %s368
      %p374 = scmp.eq.s32.totalorder %s25, 0
      %p375 = por %p373, %p374
      %p376 = scmp.ne.s32.totalorder %s365, %s368
      %p377 = scmp.eq.s32.totalorder %s30, 1
      %p378 = por %p376, %p377
      %p379 = scmp.ne.s32.totalorder %s368, %s369
      %p380 = scmp.eq.s32.totalorder %s30, 0
      %p381 = por %p379, %p380
      %p382 = scmp.ne.s32.totalorder %s368, %s369
      %p383 = scmp.eq.s32.totalorder %s31, 1
      %p384 = por %p382, %p383
      %p386 = scmp.ne.s32.totalorder %s369, %s385
      %p387 = scmp.eq.s32.totalorder %s31, 0
      %p388 = por %p386, %p387
      %p389 = scmp.le.s32.totalorder 1, %s25
      %p390 = scmp.lt.s32.totalorder %s25, 3
      %p391 = pnand %p389, %p390
      %p392 = pneg %p391
      // Predicated region
      $region9: #{tpu_custom_call.1} parent=5 // pred_check
        _
      $region10: #{tpu_custom_call.1} parent=5 // pred_check_branch
        %394 = sbr.rel (%p391) target = $region12
      $region11: #{tpu_custom_call.1} parent=5 // pred_region
        %s395 = ssub.s32 %s25, 1
        // Predicated region
        $region13: #{tpu_custom_call.1} parent=11 // pred_check
          %p396 = pneg %p72
        $region14: #{tpu_custom_call.1} parent=11 // pred_check_branch
          %398 = sbr.rel (%p396) target = $region16
        $region15: #{tpu_custom_call.1} parent=11 // pred_region
          _
        $region16: #{tpu_custom_call.1} parent=11 // pred_fallthru
          _
        // Predicated region
        $region17: #{tpu_custom_call.1} parent=11 // pred_check
          %p399 = pneg %p93
        $region18: #{tpu_custom_call.1} parent=11 // pred_check_branch
          %401 = sbr.rel (%p399) target = $region20
        $region19: #{tpu_custom_call.1} parent=11 // pred_region
          _
        $region20: #{tpu_custom_call.1} parent=11 // pred_fallthru
          _
        // Predicated region
        $region21: #{tpu_custom_call.1} parent=11 // pred_check
          %p402 = pneg %p114
        $region22: #{tpu_custom_call.1} parent=11 // pred_check_branch
          %404 = sbr.rel (%p402) target = $region24
        $region23: #{tpu_custom_call.1} parent=11 // pred_region
          %s406 = ssub.s32 384, 384
          %407 = vsyncadd [#allocation5], %s406
          %s408 = sshll.u32 [#allocation4], 4
          %s409 = int_to_ptr.vmem [resolvable:$true] %s408
          %414 = dma.hbm_to_vmem [thread:$0]  %s3, 384, %s409, [#allocation5], 64, 64, 4
        $region24: #{tpu_custom_call.1} parent=11 // pred_fallthru
          _
        // Predicated region
        $region25: #{tpu_custom_call.1} parent=11 // pred_check
          %p415 = pneg %p135
        $region26: #{tpu_custom_call.1} parent=11 // pred_check_branch
          %417 = sbr.rel (%p415) target = $region28
        $region27: #{tpu_custom_call.1} parent=11 // pred_region
          _
        $region28: #{tpu_custom_call.1} parent=11 // pred_fallthru
          _
        // Predicated region
        $region29: #{tpu_custom_call.1} parent=11 // pred_check
          %p418 = pneg %p156
        $region30: #{tpu_custom_call.1} parent=11 // pred_check_branch
          %420 = sbr.rel (%p418) target = $region32
        $region31: #{tpu_custom_call.1} parent=11 // pred_region
          %s422 = ssub.s32 384, 384
          %423 = vsyncadd [#allocation7], %s422
          %s424 = sshll.u32 [#allocation6], 4
          %s425 = int_to_ptr.vmem [resolvable:$true] %s424
          %430 = dma.hbm_to_vmem [thread:$0]  %s5, 384, %s425, [#allocation7], 64, 64, 4
        $region32: #{tpu_custom_call.1} parent=11 // pred_fallthru
          _
        // Predicated region
        $region33: #{tpu_custom_call.1} parent=11 // pred_check
          %p431 = pneg %p177
        $region34: #{tpu_custom_call.1} parent=11 // pred_check_branch
          %433 = sbr.rel (%p431) target = $region36
        $region35: #{tpu_custom_call.1} parent=11 // pred_region
          _
        $region36: #{tpu_custom_call.1} parent=11 // pred_fallthru
          _
        // Predicated region
        $region37: #{tpu_custom_call.1} parent=11 // pred_check
          %p434 = pneg %p198
        $region38: #{tpu_custom_call.1} parent=11 // pred_check_branch
          %436 = sbr.rel (%p434) target = $region40
        $region39: #{tpu_custom_call.1} parent=11 // pred_region
          _
        $region40: #{tpu_custom_call.1} parent=11 // pred_fallthru
          _
        // Predicated region
        $region41: #{tpu_custom_call.1} parent=11 // pred_check
          %p437 = pneg %p219
        $region42: #{tpu_custom_call.1} parent=11 // pred_check_branch
          %439 = sbr.rel (%p437) target = $region44
        $region43: #{tpu_custom_call.1} parent=11 // pred_region
          %s441 = ssub.s32 16, 16
          %442 = vsyncadd [#allocation7], %s441
          %s444 = sshll.u32 [#allocation8], 4
          %s445 = int_to_ptr.vmem [resolvable:$true] %s444
          %447 = dma.hbm_to_vmem [thread:$0]  %s8, 16, %s445, [#allocation7]
        $region44: #{tpu_custom_call.1} parent=11 // pred_fallthru
          _
        // Predicated region
        $region45: #{tpu_custom_call.1} parent=11 // pred_check
          %p448 = pneg %p240
        $region46: #{tpu_custom_call.1} parent=11 // pred_check_branch
          %450 = sbr.rel (%p448) target = $region48
        $region47: #{tpu_custom_call.1} parent=11 // pred_region
          %s452 = ssub.s32 768, 768
          %453 = vsyncadd [#allocation10], %s452
          %s454 = sshll.u32 [#allocation9], 4
          %s455 = int_to_ptr.vmem [resolvable:$true] %s454
          %460 = dma.hbm_to_vmem [thread:$0]  %s9, 768, %s455, [#allocation10], 64, 64, 4
        $region48: #{tpu_custom_call.1} parent=11 // pred_fallthru
          _
        // Predicated region
        $region49: #{tpu_custom_call.1} parent=11 // pred_check
          %p461 = pneg %p261
        $region50: #{tpu_custom_call.1} parent=11 // pred_check_branch
          %463 = sbr.rel (%p461) target = $region52
        $region51: #{tpu_custom_call.1} parent=11 // pred_region
          %s465 = ssub.s32 16, 16
          %466 = vsyncadd [#allocation10], %s465
          %s468 = sshll.u32 [#allocation11], 4
          %s469 = int_to_ptr.vmem [resolvable:$true] %s468
          %471 = dma.hbm_to_vmem [thread:$0]  %s10, 16, %s469, [#allocation10]
        $region52: #{tpu_custom_call.1} parent=11 // pred_fallthru
          _
        // Predicated region
        $region53: #{tpu_custom_call.1} parent=11 // pred_check
          %p472 = pneg %p282
        $region54: #{tpu_custom_call.1} parent=11 // pred_check_branch
          %474 = sbr.rel (%p472) target = $region56
        $region55: #{tpu_custom_call.1} parent=11 // pred_region
          _
        $region56: #{tpu_custom_call.1} parent=11 // pred_fallthru
          _
        // Predicated region
        $region57: #{tpu_custom_call.1} parent=11 // pred_check
          %p475 = pneg %p303
        $region58: #{tpu_custom_call.1} parent=11 // pred_check_branch
          %477 = sbr.rel (%p475) target = $region60
        $region59: #{tpu_custom_call.1} parent=11 // pred_region
          _
        $region60: #{tpu_custom_call.1} parent=11 // pred_fallthru
          _
      $region12: #{tpu_custom_call.1} parent=5 // pred_fallthru
        _
      %p478 = scmp.lt.s32.totalorder %s25, 2
      // Predicated region
      $region61: #{tpu_custom_call.1} parent=5 // pred_check
        %p479 = pneg %p478
      $region62: #{tpu_custom_call.1} parent=5 // pred_check_branch
        %481 = sbr.rel (%p479) target = $region64
      $region63: #{tpu_custom_call.1} parent=5 // pred_region
        // Predicated region
        $region65: #{tpu_custom_call.1} parent=63 // pred_check
          %p482 = pneg %p45
        $region66: #{tpu_custom_call.1} parent=63 // pred_check_branch
          %484 = sbr.rel (%p482) target = $region68
        $region67: #{tpu_custom_call.1} parent=63 // pred_region
          %p485 = scmp.lt.s32.totalorder %s25, 1
          %s486 = scalar_select %p485, %s25, 1
          %s487 = smul.addr %s486, 8
          %s488 = smul.addr %s487, 8
          %s489 = scalar_lea.vmem %s0, %s488
        $region68: #{tpu_custom_call.1} parent=63 // pred_fallthru
          _
      $region64: #{tpu_custom_call.1} parent=5 // pred_fallthru
        _
      %p490 = scmp.le.s32.totalorder 1, %s25
      %p491 = scmp.lt.s32.totalorder %s25, 3
      %p492 = pnand %p490, %p491
      %p493 = pneg %p492
      // Predicated region
      $region69: #{tpu_custom_call.1} parent=5 // pred_check
        _
      $region70: #{tpu_custom_call.1} parent=5 // pred_check_branch
        %495 = sbr.rel (%p492) target = $region72
      $region71: #{tpu_custom_call.1} parent=5 // pred_region
        %s496 = ssub.s32 %s25, 1
        // Predicated region
        $region73: #{tpu_custom_call.1} parent=71 // pred_check
          %p497 = pneg %p114
        $region74: #{tpu_custom_call.1} parent=71 // pred_check_branch
          %499 = sbr.rel (%p497) target = $region76
        $region75: #{tpu_custom_call.1} parent=71 // pred_region
          %500 = dma.done [#allocation5], 384
        $region76: #{tpu_custom_call.1} parent=71 // pred_fallthru
          _
        // Predicated region
        $region77: #{tpu_custom_call.1} parent=71 // pred_check
          %p501 = pneg %p156
        $region78: #{tpu_custom_call.1} parent=71 // pred_check_branch
          %503 = sbr.rel (%p501) target = $region80
        $region79: #{tpu_custom_call.1} parent=71 // pred_region
          %504 = dma.done [#allocation7], 384
        $region80: #{tpu_custom_call.1} parent=71 // pred_fallthru
          _
        // Predicated region
        $region81: #{tpu_custom_call.1} parent=71 // pred_check
          %p505 = pneg %p219
        $region82: #{tpu_custom_call.1} parent=71 // pred_check_branch
          %507 = sbr.rel (%p505) target = $region84
        $region83: #{tpu_custom_call.1} parent=71 // pred_region
          %508 = dma.done [#allocation7], 16
        $region84: #{tpu_custom_call.1} parent=71 // pred_fallthru
          _
        // Predicated region
        $region85: #{tpu_custom_call.1} parent=71 // pred_check
          %p509 = pneg %p240
        $region86: #{tpu_custom_call.1} parent=71 // pred_check_branch
          %511 = sbr.rel (%p509) target = $region88
        $region87: #{tpu_custom_call.1} parent=71 // pred_region
          %512 = dma.done [#allocation10], 768
        $region88: #{tpu_custom_call.1} parent=71 // pred_fallthru
          _
        // Predicated region
        $region89: #{tpu_custom_call.1} parent=71 // pred_check
          %p513 = pneg %p261
        $region90: #{tpu_custom_call.1} parent=71 // pred_check_branch
          %515 = sbr.rel (%p513) target = $region92
        $region91: #{tpu_custom_call.1} parent=71 // pred_region
          %516 = dma.done [#allocation10], 16
        $region92: #{tpu_custom_call.1} parent=71 // pred_fallthru
          _
        %p517 = scmp.lt.s32.totalorder %s30, 1
        %s518 = scalar_select %p517, %s30, 1
        %s519 = smul.addr %s518, 8
        %s520 = smul.addr %s519, 8
        %s521 = scalar_lea.vmem %s0, %s520
        %p522 = pneg %p51
        %p523 = pneg %p48
        %p524 = pneg %p72
        %p525 = pneg %p69
        %p526 = pneg %p93
        %p527 = pneg %p90
        %p528 = pneg %p114
        %p529 = pneg %p111
        %p530 = pneg %p135
        %p531 = pneg %p132
        %p532 = pneg %p156
        %p533 = pneg %p153
        %p534 = pneg %p177
        %p535 = pneg %p174
        %p536 = pneg %p198
        %p537 = pneg %p195
        %p538 = pneg %p219
        %p539 = pneg %p216
        %p540 = pneg %p240
        %p541 = pneg %p237
        %p542 = pneg %p261
        %p543 = pneg %p258
        %p544 = pneg %p282
        %p545 = pneg %p279
        %p546 = pneg %p303
        %p547 = pneg %p300
        %p548 = pneg %p329
        %p549 = pneg %p326
        %p550 = scmp.lt.s32.totalorder %s30, 1
        %s551 = scalar_select %p550, %s30, 1
        %s552 = smul.addr %s551, 8
        %s553 = smul.addr %s552, 8
        %s554 = scalar_lea.vmem %s13, %s553
        %p555 = pneg %p355
        %p556 = pneg %p352
        %p557 = scmp.lt.s32.totalorder %s30, 1
        %s558 = scalar_select %p557, %s30, 1
        %s559 = smul.addr %s558, 4
        %s560 = smul.addr %s559, 8
        %s561 = scalar_lea.vmem %s14, %s560
        %p562 = pneg %p381
        %p563 = pneg %p378
        %p564 = scmp.lt.s32.totalorder %s30, 1
        %s565 = scalar_select %p564, %s30, 1
        %s566 = smul.addr %s565, 2
        %s567 = smul.addr %s566, 8
        %s568 = scalar_lea.vmem %s15, %s567
        %p569 = scmp.lt.s32.totalorder %s30, 1
        %s570 = scalar_select %p569, %s30, 1
        %s571 = smul.addr %s570, 8
        %s572 = smul.addr %s571, 8
        %s573 = scalar_lea.vmem %s0, %s572
        %p574 = scmp.lt.s32.totalorder %s30, 1
        %s575 = scalar_select %p574, %s30, 1
        %s576 = smul.addr %s575, 8
        %s577 = smul.addr %s576, 8
        %s578 = scalar_lea.vmem %s13, %s577
        %p579 = scmp.lt.s32.totalorder %s30, 1
        %s580 = scalar_select %p579, %s30, 1
        %s581 = smul.addr %s580, 4
        %s582 = smul.addr %s581, 8
        %s583 = scalar_lea.vmem %s14, %s582
        %p584 = scmp.lt.s32.totalorder %s30, 1
        %s585 = scalar_select %p584, %s30, 1
        %s586 = smul.addr %s585, 2
        %s587 = smul.addr %s586, 8
        %s588 = scalar_lea.vmem %s15, %s587
        %v590 = vld [vmem:[%s573] sm:$0xff]
        %v591 = vld [vmem:[%s573 + $0x8] sm:$0xff]
        %v592 = vld [vmem:[%s573 + $0x10] sm:$0xff]
        %v593 = vld [vmem:[%s573 + $0x18] sm:$0xff]
        %v594 = vld [vmem:[%s573 + $0x20] sm:$0xff]
        %v595 = vld [vmem:[%s573 + $0x28] sm:$0xff]
        %v596 = vld [vmem:[%s573 + $0x30] sm:$0xff]
        %v597 = vld [vmem:[%s573 + $0x38] sm:$0xff]
        %v598 = vld [vmem:[%s2] sm:$0x1]
        %600 = vset.pattern.permute.xlu0 0
        %601 = vperm.xlu0 %600, %v590
        %v602 = vpop.permute.xlu0 %601
        %605 = vset.pattern.permute.xlu0 0
        %606 = vperm.xlu0 %605, %v591
        %v607 = vpop.permute.xlu0 %606
        %610 = vset.pattern.permute.xlu0 0
        %611 = vperm.xlu0 %610, %v592
        %v612 = vpop.permute.xlu0 %611
        %615 = vset.pattern.permute.xlu0 0
        %616 = vperm.xlu0 %615, %v593
        %v617 = vpop.permute.xlu0 %616
        %620 = vset.pattern.permute.xlu0 0
        %621 = vperm.xlu0 %620, %v594
        %v622 = vpop.permute.xlu0 %621
        %625 = vset.pattern.permute.xlu0 0
        %626 = vperm.xlu0 %625, %v595
        %v627 = vpop.permute.xlu0 %626
        %630 = vset.pattern.permute.xlu0 0
        %631 = vperm.xlu0 %630, %v596
        %v632 = vpop.permute.xlu0 %631
        %635 = vset.pattern.permute.xlu0 0
        %636 = vperm.xlu0 %635, %v597
        %v637 = vpop.permute.xlu0 %636
        %v639 = vld [vmem:[%s1] sm:$0x1]
        %v641 = vlaneseq
        %v642 = vshrl.u32 %v641, 7
        %v643 = vsub.s32 0, %v642
        %v644 = vrot.slane %v639, %v643
        %v646 = vmul.f32 %v602, %v644
        %v647 = vmul.f32 %v607, %v644
        %v648 = vmul.f32 %v612, %v644
        %v649 = vmul.f32 %v617, %v644
        %v650 = vmul.f32 %v622, %v644
        %v651 = vmul.f32 %v627, %v644
        %v652 = vmul.f32 %v632, %v644
        %v653 = vmul.f32 %v637, %v644
        %v654 = vrot.slane %v602, 1
        %v655 = vrot.slane %v607, 1
        %v656 = vrot.slane %v612, 1
        %v657 = vrot.slane %v617, 1
        %v658 = vrot.slane %v622, 1
        %v659 = vrot.slane %v627, 1
        %v660 = vrot.slane %v632, 1
        %v661 = vrot.slane %v637, 1
        %v662 = vlaneseq
        %v663 = vshrl.u32 %v662, 7
        %vm664 = vcmp.lt.s32.totalorder %v663, 7
        %v665 = vsel %vm664, %v660, %v661
        %v666 = vsel %vm664, %v659, %v660
        %v667 = vsel %vm664, %v658, %v659
        %v668 = vsel %vm664, %v657, %v658
        %v669 = vsel %vm664, %v656, %v657
        %v670 = vsel %vm664, %v655, %v656
        %v671 = vsel %vm664, %v654, %v655
        %v672 = vsel %vm664, %v661, %v654
        %s673 = scalar_lea.vmem %s1, 1
        %v674 = vld [vmem:[%s673] sm:$0x1]
        %v676 = vlaneseq
        %v677 = vshrl.u32 %v676, 7
        %v678 = vsub.s32 0, %v677
        %v679 = vrot.slane %v674, %v678
        %v681 = vmul.f32 %v671, %v679
        %v682 = vmul.f32 %v670, %v679
        %v683 = vmul.f32 %v669, %v679
        %v684 = vmul.f32 %v668, %v679
        %v685 = vmul.f32 %v667, %v679
        %v686 = vmul.f32 %v666, %v679
        %v687 = vmul.f32 %v665, %v679
        %v688 = vmul.f32 %v672, %v679
        %v689 = vadd.f32 %v646, %v681
        %v690 = vadd.f32 %v647, %v682
        %v691 = vadd.f32 %v648, %v683
        %v692 = vadd.f32 %v649, %v684
        %v693 = vadd.f32 %v650, %v685
        %v694 = vadd.f32 %v651, %v686
        %v695 = vadd.f32 %v652, %v687
        %v696 = vadd.f32 %v653, %v688
        %v697 = vrot.slane %v602, 2
        %v698 = vrot.slane %v607, 2
        %v699 = vrot.slane %v612, 2
        %v700 = vrot.slane %v617, 2
        %v701 = vrot.slane %v622, 2
        %v702 = vrot.slane %v627, 2
        %v703 = vrot.slane %v632, 2
        %v704 = vrot.slane %v637, 2
        %vm705 = vcmp.lt.s32.totalorder %v663, 6
        %v706 = vsel %vm705, %v703, %v704
        %v707 = vsel %vm705, %v702, %v703
        %v708 = vsel %vm705, %v701, %v702
        %v709 = vsel %vm705, %v700, %v701
        %v710 = vsel %vm705, %v699, %v700
        %v711 = vsel %vm705, %v698, %v699
        %v712 = vsel %vm705, %v697, %v698
        %v713 = vsel %vm705, %v704, %v697
        %s714 = scalar_lea.vmem %s1, 2
        %v715 = vld [vmem:[%s714] sm:$0x1]
        %v717 = vlaneseq
        %v718 = vshrl.u32 %v717, 7
        %v719 = vsub.s32 0, %v718
        %v720 = vrot.slane %v715, %v719
        %v722 = vmul.f32 %v712, %v720
        %v723 = vmul.f32 %v711, %v720
        %v724 = vmul.f32 %v710, %v720
        %v725 = vmul.f32 %v709, %v720
        %v726 = vmul.f32 %v708, %v720
        %v727 = vmul.f32 %v707, %v720
        %v728 = vmul.f32 %v706, %v720
        %v729 = vmul.f32 %v713, %v720
        %v730 = vadd.f32 %v689, %v722
        %v731 = vadd.f32 %v690, %v723
        %v732 = vadd.f32 %v691, %v724
        %v733 = vadd.f32 %v692, %v725
        %v734 = vadd.f32 %v693, %v726
        %v735 = vadd.f32 %v694, %v727
        %v736 = vadd.f32 %v695, %v728
        %v737 = vadd.f32 %v696, %v729
        %v739 = vlaneseq
        %v740 = vshrl.u32 %v739, 7
        %v741 = vsub.s32 0, %v740
        %v742 = vrot.slane %v598, %v741
        %v744 = vadd.f32 %v730, %v742
        %v745 = vadd.f32 %v731, %v742
        %v746 = vadd.f32 %v732, %v742
        %v747 = vadd.f32 %v733, %v742
        %v748 = vadd.f32 %v734, %v742
        %v749 = vadd.f32 %v735, %v742
        %v750 = vadd.f32 %v736, %v742
        %v751 = vadd.f32 %v737, %v742
        %v752 = vmul.f32 %v744, 0.2
        %v753 = vmul.f32 %v745, 0.2
        %v754 = vmul.f32 %v746, 0.2
        %v755 = vmul.f32 %v747, 0.2
        %v756 = vmul.f32 %v748, 0.2
        %v757 = vmul.f32 %v749, 0.2
        %v758 = vmul.f32 %v750, 0.2
        %v759 = vmul.f32 %v751, 0.2
        %v760 = vmax.f32 %v744, %v752
        %v761 = vmax.f32 %v745, %v753
        %v762 = vmax.f32 %v746, %v754
        %v763 = vmax.f32 %v747, %v755
        %v764 = vmax.f32 %v748, %v756
        %v765 = vmax.f32 %v749, %v757
        %v766 = vmax.f32 %v750, %v758
        %v767 = vmax.f32 %v751, %v759
        %v768 = vld [vmem:[%s4] sm:$0x1]
        %v769 = vpack.c.bf16 %v761, %v760
        %v770 = vpack.c.bf16 %v763, %v762
        %v771 = vpack.c.bf16 %v765, %v764
        %v772 = vpack.c.bf16 %v767, %v766
        %v773 = vld [vmem:[#allocation4] sm:$0xf]
        %v774 = vld [vmem:[#allocation4 + $0x4] sm:$0xf]
        %s775 = scalar_lea.vmem [#allocation4], 8
        %v776 = vld [vmem:[%s775] sm:$0xf]
        %v777 = vld [vmem:[%s775 + $0x4] sm:$0xf]
        %v780 = vunpack.c.l.b16 %v776
        %v781 = vunpack.c.l.b16 %v777
        %v782 = vpack.c.b16 %v781, %v780
        %vm784 = vcmask 130048
        %v786 = vsel %vm784, %v769, 0
        %v789 = vsel %vm784, %v770, 0
        %v792 = vsel %vm784, %v771, 0
        %v795 = vsel %vm784, %v772, 0
        %797 = vmatprep.subr.bf16.mxu0 0
        %798 = vmatpush1.bf16.msra.mxu0 0
        %799 = vmatprep.subr.bf16.mxu0 0
        %800 = vmatpush1.bf16.msra.mxu0 0
        %801 = vmatprep.subr.bf16.mxu0 0
        %802 = vmatpush1.bf16.msra.mxu0 0
        %803 = vmatprep.subr.bf16.mxu0 0
        %804 = vmatpush1.bf16.msra.mxu0 0
        %805 = vmatprep.subr.bf16.mxu0 0
        %806 = vmatpush1.bf16.msra.mxu0 0
        %807 = vmatprep.subr.bf16.mxu0 0
        %808 = vmatpush1.bf16.msra.mxu0 0
        %809 = vmatprep.subr.bf16.mxu0 0
        %810 = vmatpush1.bf16.msra.mxu0 0
        %811 = vmatprep.subr.bf16.mxu0 0
        %812 = vmatpush1.bf16.msra.mxu0 %v782
        %813 = vmatprep.subr.bf16.mxu0 0
        %814 = vmatpush2.bf16.msra.mxu0 0
        %815 = vmatprep.subr.bf16.mxu0 0
        %816 = vmatpush2.bf16.msra.mxu0 0
        %817 = vmatprep.subr.bf16.mxu0 0
        %818 = vmatpush2.bf16.msra.mxu0 0
        %819 = vmatprep.subr.bf16.mxu0 0
        %820 = vmatpush2.bf16.msra.mxu0 0
        %821 = vmatprep.subr.bf16.mxu0 0
        %822 = vmatpush2.bf16.msra.mxu0 0
        %823 = vmatprep.subr.bf16.mxu0 0
        %824 = vmatpush2.bf16.msra.mxu0 0
        %825 = vmatprep.subr.bf16.mxu0 0
        %826 = vmatpush2.bf16.msra.mxu0 0
        %827 = vmatprep.subr.bf16.mxu0 0
        %828 = vmatpush2.bf16.msra.mxu0 0
        %829 = vmatprep.mubr.bf16.mxu0 0
        %830 = vmatmul.mubr.bf16.gmra.mxu0 %v786
        %v831 = vpop.f32.mrf.mxu0
        %v832 = vadd.f32 0.0, %v831
        %v833 = vpop.f32.mrf.mxu0
        %v834 = vpop.f32.mrf.mxu0
        %v835 = vadd.f32 0.0, %v834
        %v836 = vpop.f32.mrf.mxu0
        %837 = vmatprep.mubr.bf16.mxu0 0
        %838 = vmatmul.mubr.bf16.gmra.mxu0 %v789
        %v839 = vpop.f32.mrf.mxu0
        %v840 = vadd.f32 0.0, %v839
        %v841 = vpop.f32.mrf.mxu0
        %v842 = vpop.f32.mrf.mxu0
        %v843 = vadd.f32 0.0, %v842
        %v844 = vpop.f32.mrf.mxu0
        %845 = vmatprep.mubr.bf16.mxu0 0
        %846 = vmatmul.mubr.bf16.gmra.mxu0 %v792
        %v847 = vpop.f32.mrf.mxu0
        %v848 = vadd.f32 0.0, %v847
        %v849 = vpop.f32.mrf.mxu0
        %v850 = vpop.f32.mrf.mxu0
        %v851 = vadd.f32 0.0, %v850
        %v852 = vpop.f32.mrf.mxu0
        %853 = vmatprep.mubr.bf16.mxu0 0
        %854 = vmatmul.mubr.bf16.gmra.mxu0 %v795
        %v855 = vpop.f32.mrf.mxu0
        %v856 = vadd.f32 0.0, %v855
        %v857 = vpop.f32.mrf.mxu0
        %v858 = vpop.f32.mrf.mxu0
        %v859 = vadd.f32 0.0, %v858
        %v860 = vpop.f32.mrf.mxu0
        %861 = vdwg.mxu0
        %vm862 = vcmask 1047558
        %v863 = vrot.slane %v832, 2
        %v864 = vsel %vm862, %v863, %v859
        %v867 = vunpack.c.l.b16 %v773
        %v868 = vunpack.c.l.b16 %v774
        %v869 = vpack.c.b16 %v868, %v867
        %vm879 = vcmask 1046528
        %v880 = vrot.slane %v832, 1
        %v881 = vrot.slane %v835, 1
        %v882 = vsel %vm879, %v880, %v881
        %v883 = vrot.slane %v840, 1
        %v884 = vsel %vm879, %v881, %v883
        %v885 = vrot.slane %v843, 1
        %v886 = vsel %vm879, %v883, %v885
        %v887 = vrot.slane %v848, 1
        %v888 = vsel %vm879, %v885, %v887
        %v889 = vrot.slane %v851, 1
        %v890 = vsel %vm879, %v887, %v889
        %v891 = vrot.slane %v856, 1
        %v892 = vsel %vm879, %v889, %v891
        %v893 = vrot.slane %v864, 1
        %v894 = vsel %vm879, %v891, %v893
        %903 = vmatprep.subr.bf16.mxu0 0
        %904 = vmatpush1.bf16.msra.mxu0 0
        %905 = vmatprep.subr.bf16.mxu0 0
        %906 = vmatpush1.bf16.msra.mxu0 0
        %907 = vmatprep.subr.bf16.mxu0 0
        %908 = vmatpush1.bf16.msra.mxu0 0
        %909 = vmatprep.subr.bf16.mxu0 0
        %910 = vmatpush1.bf16.msra.mxu0 0
        %911 = vmatprep.subr.bf16.mxu0 0
        %912 = vmatpush1.bf16.msra.mxu0 0
        %913 = vmatprep.subr.bf16.mxu0 0
        %914 = vmatpush1.bf16.msra.mxu0 0
        %915 = vmatprep.subr.bf16.mxu0 0
        %916 = vmatpush1.bf16.msra.mxu0 0
        %917 = vmatprep.subr.bf16.mxu0 0
        %918 = vmatpush1.bf16.msra.mxu0 %v869
        %919 = vmatprep.subr.bf16.mxu0 0
        %920 = vmatpush2.bf16.msra.mxu0 0
        %921 = vmatprep.subr.bf16.mxu0 0
        %922 = vmatpush2.bf16.msra.mxu0 0
        %923 = vmatprep.subr.bf16.mxu0 0
        %924 = vmatpush2.bf16.msra.mxu0 0
        %925 = vmatprep.subr.bf16.mxu0 0
        %926 = vmatpush2.bf16.msra.mxu0 0
        %927 = vmatprep.subr.bf16.mxu0 0
        %928 = vmatpush2.bf16.msra.mxu0 0
        %929 = vmatprep.subr.bf16.mxu0 0
        %930 = vmatpush2.bf16.msra.mxu0 0
        %931 = vmatprep.subr.bf16.mxu0 0
        %932 = vmatpush2.bf16.msra.mxu0 0
        %933 = vmatprep.subr.bf16.mxu0 0
        %934 = vmatpush2.bf16.msra.mxu0 0
        %935 = vmatprep.mubr.bf16.mxu0 0
        %936 = vmatmul.mubr.bf16.gmra.mxu0 %v786
        %v937 = vpop.f32.mrf.mxu0
        %v938 = vadd.f32 %v882, %v937
        %v939 = vpop.f32.mrf.mxu0
        %v940 = vpop.f32.mrf.mxu0
        %v941 = vadd.f32 %v884, %v940
        %v942 = vpop.f32.mrf.mxu0
        %943 = vmatprep.mubr.bf16.mxu0 0
        %944 = vmatmul.mubr.bf16.gmra.mxu0 %v789
        %v945 = vpop.f32.mrf.mxu0
        %v946 = vadd.f32 %v886, %v945
        %v947 = vpop.f32.mrf.mxu0
        %v948 = vpop.f32.mrf.mxu0
        %v949 = vadd.f32 %v888, %v948
        %v950 = vpop.f32.mrf.mxu0
        %951 = vmatprep.mubr.bf16.mxu0 0
        %952 = vmatmul.mubr.bf16.gmra.mxu0 %v792
        %v953 = vpop.f32.mrf.mxu0
        %v954 = vadd.f32 %v890, %v953
        %v955 = vpop.f32.mrf.mxu0
        %v956 = vpop.f32.mrf.mxu0
        %v957 = vadd.f32 %v892, %v956
        %v958 = vpop.f32.mrf.mxu0
        %959 = vmatprep.mubr.bf16.mxu0 0
        %960 = vmatmul.mubr.bf16.gmra.mxu0 %v795
        %v961 = vpop.f32.mrf.mxu0
        %v962 = vadd.f32 %v894, %v961
        %v963 = vpop.f32.mrf.mxu0
        %v964 = vpop.f32.mrf.mxu0
        %v965 = vadd.f32 %v893, %v964
        %v966 = vpop.f32.mrf.mxu0
        %967 = vdwg.mxu0
        %s968 = scalar_lea.vmem [#allocation4], 16
        %v969 = vld [vmem:[%s968] sm:$0xf]
        %v970 = vld [vmem:[%s968 + $0x4] sm:$0xf]
        %v973 = vunpack.c.l.b16 %v969
        %v974 = vunpack.c.l.b16 %v970
        %v975 = vpack.c.b16 %v974, %v973
        %977 = vmatprep.subr.bf16.mxu0 0
        %978 = vmatpush1.bf16.msra.mxu0 0
        %979 = vmatprep.subr.bf16.mxu0 0
        %980 = vmatpush1.bf16.msra.mxu0 0
        %981 = vmatprep.subr.bf16.mxu0 0
        %982 = vmatpush1.bf16.msra.mxu0 0
        %983 = vmatprep.subr.bf16.mxu0 0
        %984 = vmatpush1.bf16.msra.mxu0 0
        %985 = vmatprep.subr.bf16.mxu0 0
        %986 = vmatpush1.bf16.msra.mxu0 0
        %987 = vmatprep.subr.bf16.mxu0 0
        %988 = vmatpush1.bf16.msra.mxu0 0
        %989 = vmatprep.subr.bf16.mxu0 0
        %990 = vmatpush1.bf16.msra.mxu0 0
        %991 = vmatprep.subr.bf16.mxu0 0
        %992 = vmatpush1.bf16.msra.mxu0 %v975
        %993 = vmatprep.subr.bf16.mxu0 0
        %994 = vmatpush2.bf16.msra.mxu0 0
        %995 = vmatprep.subr.bf16.mxu0 0
        %996 = vmatpush2.bf16.msra.mxu0 0
        %997 = vmatprep.subr.bf16.mxu0 0
        %998 = vmatpush2.bf16.msra.mxu0 0
        %999 = vmatprep.subr.bf16.mxu0 0
        %1000 = vmatpush2.bf16.msra.mxu0 0
        %1001 = vmatprep.subr.bf16.mxu0 0
        %1002 = vmatpush2.bf16.msra.mxu0 0
        %1003 = vmatprep.subr.bf16.mxu0 0
        %1004 = vmatpush2.bf16.msra.mxu0 0
        %1005 = vmatprep.subr.bf16.mxu0 0
        %1006 = vmatpush2.bf16.msra.mxu0 0
        %1007 = vmatprep.subr.bf16.mxu0 0
        %1008 = vmatpush2.bf16.msra.mxu0 0
        %1009 = vmatprep.mubr.bf16.mxu0 0
        %1010 = vmatmul.mubr.bf16.gmra.mxu0 %v786
        %v1011 = vpop.f32.mrf.mxu0
        %v1012 = vadd.f32 0.0, %v1011
        %v1013 = vpop.f32.mrf.mxu0
        %v1014 = vpop.f32.mrf.mxu0
        %v1015 = vadd.f32 0.0, %v1014
        %v1016 = vpop.f32.mrf.mxu0
        %1017 = vmatprep.mubr.bf16.mxu0 0
        %1018 = vmatmul.mubr.bf16.gmra.mxu0 %v789
        %v1019 = vpop.f32.mrf.mxu0
        %v1020 = vadd.f32 0.0, %v1019
        %v1021 = vpop.f32.mrf.mxu0
        %v1022 = vpop.f32.mrf.mxu0
        %v1023 = vadd.f32 0.0, %v1022
        %v1024 = vpop.f32.mrf.mxu0
        %1025 = vmatprep.mubr.bf16.mxu0 0
        %1026 = vmatmul.mubr.bf16.gmra.mxu0 %v792
        %v1027 = vpop.f32.mrf.mxu0
        %v1028 = vadd.f32 0.0, %v1027
        %v1029 = vpop.f32.mrf.mxu0
        %v1030 = vpop.f32.mrf.mxu0
        %v1031 = vadd.f32 0.0, %v1030
        %v1032 = vpop.f32.mrf.mxu0
        %1033 = vmatprep.mubr.bf16.mxu0 0
        %1034 = vmatmul.mubr.bf16.gmra.mxu0 %v795
        %v1035 = vpop.f32.mrf.mxu0
        %v1036 = vadd.f32 0.0, %v1035
        %v1037 = vpop.f32.mrf.mxu0
        %v1038 = vpop.f32.mrf.mxu0
        %v1039 = vadd.f32 0.0, %v1038
        %v1040 = vpop.f32.mrf.mxu0
        %1041 = vdwg.mxu0
        %v1042 = vrot.slane %v1012, 2
        %v1043 = vsel %vm862, %v1042, %v1039
        %vm1052 = vcmask 1045504
        %v1053 = vrot.slane %v1012, 2
        %v1054 = vrot.slane %v1015, 2
        %v1055 = vsel %vm1052, %v1053, %v1054
        %v1056 = vrot.slane %v1020, 2
        %v1057 = vsel %vm1052, %v1054, %v1056
        %v1058 = vrot.slane %v1023, 2
        %v1059 = vsel %vm1052, %v1056, %v1058
        %v1060 = vrot.slane %v1028, 2
        %v1061 = vsel %vm1052, %v1058, %v1060
        %v1062 = vrot.slane %v1031, 2
        %v1063 = vsel %vm1052, %v1060, %v1062
        %v1064 = vrot.slane %v1036, 2
        %v1065 = vsel %vm1052, %v1062, %v1064
        %v1066 = vrot.slane %v1043, 2
        %v1067 = vsel %vm1052, %v1064, %v1066
        %v1076 = vadd.f32 %v938, %v1055
        %v1077 = vadd.f32 %v941, %v1057
        %v1078 = vadd.f32 %v946, %v1059
        %v1079 = vadd.f32 %v949, %v1061
        %v1080 = vadd.f32 %v954, %v1063
        %v1081 = vadd.f32 %v957, %v1065
        %v1082 = vadd.f32 %v962, %v1067
        %v1083 = vadd.f32 %v965, %v1066
        %v1085 = vlaneseq
        %v1086 = vshrl.u32 %v1085, 7
        %v1087 = vsub.s32 0, %v1086
        %v1088 = vrot.slane %v768, %v1087
        %v1090 = vadd.f32 %v1076, %v1088
        %v1091 = vadd.f32 %v1077, %v1088
        %v1092 = vadd.f32 %v1078, %v1088
        %v1093 = vadd.f32 %v1079, %v1088
        %v1094 = vadd.f32 %v1080, %v1088
        %v1095 = vadd.f32 %v1081, %v1088
        %v1096 = vadd.f32 %v1082, %v1088
        %v1097 = vadd.f32 %v1083, %v1088
        %v1098 = vmul.f32 %v1090, 0.2
        %v1099 = vmul.f32 %v1091, 0.2
        %v1100 = vmul.f32 %v1092, 0.2
        %v1101 = vmul.f32 %v1093, 0.2
        %v1102 = vmul.f32 %v1094, 0.2
        %v1103 = vmul.f32 %v1095, 0.2
        %v1104 = vmul.f32 %v1096, 0.2
        %v1105 = vmul.f32 %v1097, 0.2
        %v1106 = vmax.f32 %v1090, %v1098
        %v1107 = vmax.f32 %v1091, %v1099
        %v1108 = vmax.f32 %v1092, %v1100
        %v1109 = vmax.f32 %v1093, %v1101
        %v1110 = vmax.f32 %v1094, %v1102
        %v1111 = vmax.f32 %v1095, %v1103
        %v1112 = vmax.f32 %v1096, %v1104
        %v1113 = vmax.f32 %v1097, %v1105
        %1114 = vst.msk [vmem:[%s578] sm:$0xff] %vm784, %v1106
        %1115 = vst.msk [vmem:[%s578 + $0x8] sm:$0xff] %vm784, %v1107
        %1116 = vst.msk [vmem:[%s578 + $0x10] sm:$0xff] %vm784, %v1108
        %1117 = vst.msk [vmem:[%s578 + $0x18] sm:$0xff] %vm784, %v1109
        %1118 = vst.msk [vmem:[%s578 + $0x20] sm:$0xff] %vm784, %v1110
        %1119 = vst.msk [vmem:[%s578 + $0x28] sm:$0xff] %vm784, %v1111
        %1120 = vst.msk [vmem:[%s578 + $0x30] sm:$0xff] %vm784, %v1112
        %vm1121 = vcmask 125952
        %1122 = vst.msk [vmem:[%s578 + $0x38] sm:$0xf] %vm1121, %v1113
        %vm1123 = vcmask 1047556
        %v1124 = vrot.slane %v1106, 4
        %v1125 = vsel %vm1123, %v1124, %v1113
        %v1134 = vrot.slane %v1106, 1
        %v1135 = vrot.slane %v1107, 1
        %v1136 = vsel %vm879, %v1134, %v1135
        %v1137 = vrot.slane %v1108, 1
        %v1138 = vsel %vm879, %v1135, %v1137
        %v1139 = vrot.slane %v1109, 1
        %v1140 = vsel %vm879, %v1137, %v1139
        %v1141 = vrot.slane %v1110, 1
        %v1142 = vsel %vm879, %v1139, %v1141
        %v1143 = vrot.slane %v1111, 1
        %v1144 = vsel %vm879, %v1141, %v1143
        %v1145 = vrot.slane %v1112, 1
        %v1146 = vsel %vm879, %v1143, %v1145
        %v1147 = vrot.slane %v1125, 1
        %v1148 = vsel %vm879, %v1145, %v1147
        %v1157 = vmax.f32 %v1106, %v1136
        %v1158 = vmax.f32 %v1107, %v1138
        %v1159 = vmax.f32 %v1108, %v1140
        %v1160 = vmax.f32 %v1109, %v1142
        %v1161 = vmax.f32 %v1110, %v1144
        %v1162 = vmax.f32 %v1111, %v1146
        %v1163 = vmax.f32 %v1112, %v1148
        %v1164 = vmax.f32 %v1113, %v1147
        %1165 = vst.msk [vmem:[#allocation2] sm:$0xff] %vm784, %v1157
        %1166 = vst.msk [vmem:[#allocation2 + $0x8] sm:$0xff] %vm784, %v1158
        %1167 = vst.msk [vmem:[#allocation2 + $0x10] sm:$0xff] %vm784, %v1159
        %1168 = vst.msk [vmem:[#allocation2 + $0x18] sm:$0xff] %vm784, %v1160
        %1169 = vst.msk [vmem:[#allocation2 + $0x20] sm:$0xff] %vm784, %v1161
        %1170 = vst.msk [vmem:[#allocation2 + $0x28] sm:$0xff] %vm784, %v1162
        %1171 = vst.msk [vmem:[#allocation2 + $0x30] sm:$0xff] %vm784, %v1163
        %1172 = vst.msk [vmem:[#allocation2 + $0x38] sm:$0xf] %vm1121, %v1164
        %v1173 = vld [vmem:[#allocation2] ss:$2 sm:$0xff]
        %s1174 = scalar_lea.vmem [#allocation2], 16
        %v1175 = vld [vmem:[%s1174] ss:$2 sm:$0xff]
        %s1176 = scalar_lea.vmem [#allocation2], 32
        %v1177 = vld [vmem:[%s1176] ss:$2 sm:$0xff]
        %s1178 = scalar_lea.vmem [#allocation2], 48
        %v1179 = vld [vmem:[%s1178] ss:$2 sm:$0x3f]
        %v1180 = vld [vmem:[%s6] sm:$0x1]
        %v1181 = vpack.c.bf16 %v1175, %v1173
        %v1182 = vpack.c.bf16 %v1179, %v1177
        %v1183 = vld [vmem:[#allocation6] sm:$0xf]
        %v1184 = vld [vmem:[#allocation6 + $0x4] sm:$0xf]
        %s1185 = scalar_lea.vmem [#allocation6], 8
        %v1186 = vld [vmem:[%s1185] sm:$0xf]
        %v1187 = vld [vmem:[%s1185 + $0x4] sm:$0xf]
        %v1190 = vunpack.c.l.b16 %v1186
        %v1191 = vunpack.c.l.b16 %v1187
        %v1192 = vpack.c.b16 %v1191, %v1190
        %v1195 = vsel %vm784, %v1181, 0
        %v1198 = vsel %vm784, %v1182, 0
        %1200 = vmatprep.subr.bf16.mxu0 0
        %1201 = vmatpush1.bf16.msra.mxu0 0
        %1202 = vmatprep.subr.bf16.mxu0 0
        %1203 = vmatpush1.bf16.msra.mxu0 0
        %1204 = vmatprep.subr.bf16.mxu0 0
        %1205 = vmatpush1.bf16.msra.mxu0 0
        %1206 = vmatprep.subr.bf16.mxu0 0
        %1207 = vmatpush1.bf16.msra.mxu0 0
        %1208 = vmatprep.subr.bf16.mxu0 0
        %1209 = vmatpush1.bf16.msra.mxu0 0
        %1210 = vmatprep.subr.bf16.mxu0 0
        %1211 = vmatpush1.bf16.msra.mxu0 0
        %1212 = vmatprep.subr.bf16.mxu0 0
        %1213 = vmatpush1.bf16.msra.mxu0 0
        %1214 = vmatprep.subr.bf16.mxu0 0
        %1215 = vmatpush1.bf16.msra.mxu0 %v1192
        %1216 = vmatprep.subr.bf16.mxu0 0
        %1217 = vmatpush2.bf16.msra.mxu0 0
        %1218 = vmatprep.subr.bf16.mxu0 0
        %1219 = vmatpush2.bf16.msra.mxu0 0
        %1220 = vmatprep.subr.bf16.mxu0 0
        %1221 = vmatpush2.bf16.msra.mxu0 0
        %1222 = vmatprep.subr.bf16.mxu0 0
        %1223 = vmatpush2.bf16.msra.mxu0 0
        %1224 = vmatprep.subr.bf16.mxu0 0
        %1225 = vmatpush2.bf16.msra.mxu0 0
        %1226 = vmatprep.subr.bf16.mxu0 0
        %1227 = vmatpush2.bf16.msra.mxu0 0
        %1228 = vmatprep.subr.bf16.mxu0 0
        %1229 = vmatpush2.bf16.msra.mxu0 0
        %1230 = vmatprep.subr.bf16.mxu0 0
        %1231 = vmatpush2.bf16.msra.mxu0 0
        %1232 = vmatprep.mubr.bf16.mxu0 0
        %1233 = vmatmul.mubr.bf16.gmra.mxu0 %v1195
        %v1234 = vpop.f32.mrf.mxu0
        %v1235 = vadd.f32 0.0, %v1234
        %v1236 = vpop.f32.mrf.mxu0
        %v1237 = vpop.f32.mrf.mxu0
        %v1238 = vadd.f32 0.0, %v1237
        %v1239 = vpop.f32.mrf.mxu0
        %1240 = vmatprep.mubr.bf16.mxu0 0
        %1241 = vmatmul.mubr.bf16.gmra.mxu0 %v1198
        %v1242 = vpop.f32.mrf.mxu0
        %v1243 = vadd.f32 0.0, %v1242
        %v1244 = vpop.f32.mrf.mxu0
        %v1245 = vpop.f32.mrf.mxu0
        %v1246 = vadd.f32 0.0, %v1245
        %v1247 = vpop.f32.mrf.mxu0
        %1248 = vdwg.mxu0
        %v1249 = vrot.slane %v1235, 2
        %v1250 = vsel %vm862, %v1249, %v1246
        %v1253 = vunpack.c.l.b16 %v1183
        %v1254 = vunpack.c.l.b16 %v1184
        %v1255 = vpack.c.b16 %v1254, %v1253
        %v1261 = vrot.slane %v1235, 1
        %v1262 = vrot.slane %v1238, 1
        %v1263 = vsel %vm879, %v1261, %v1262
        %v1264 = vrot.slane %v1243, 1
        %v1265 = vsel %vm879, %v1262, %v1264
        %v1266 = vrot.slane %v1250, 1
        %v1267 = vsel %vm879, %v1264, %v1266
        %1272 = vmatprep.subr.bf16.mxu0 0
        %1273 = vmatpush1.bf16.msra.mxu0 0
        %1274 = vmatprep.subr.bf16.mxu0 0
        %1275 = vmatpush1.bf16.msra.mxu0 0
        %1276 = vmatprep.subr.bf16.mxu0 0
        %1277 = vmatpush1.bf16.msra.mxu0 0
        %1278 = vmatprep.subr.bf16.mxu0 0
        %1279 = vmatpush1.bf16.msra.mxu0 0
        %1280 = vmatprep.subr.bf16.mxu0 0
        %1281 = vmatpush1.bf16.msra.mxu0 0
        %1282 = vmatprep.subr.bf16.mxu0 0
        %1283 = vmatpush1.bf16.msra.mxu0 0
        %1284 = vmatprep.subr.bf16.mxu0 0
        %1285 = vmatpush1.bf16.msra.mxu0 0
        %1286 = vmatprep.subr.bf16.mxu0 0
        %1287 = vmatpush1.bf16.msra.mxu0 %v1255
        %1288 = vmatprep.subr.bf16.mxu0 0
        %1289 = vmatpush2.bf16.msra.mxu0 0
        %1290 = vmatprep.subr.bf16.mxu0 0
        %1291 = vmatpush2.bf16.msra.mxu0 0
        %1292 = vmatprep.subr.bf16.mxu0 0
        %1293 = vmatpush2.bf16.msra.mxu0 0
        %1294 = vmatprep.subr.bf16.mxu0 0
        %1295 = vmatpush2.bf16.msra.mxu0 0
        %1296 = vmatprep.subr.bf16.mxu0 0
        %1297 = vmatpush2.bf16.msra.mxu0 0
        %1298 = vmatprep.subr.bf16.mxu0 0
        %1299 = vmatpush2.bf16.msra.mxu0 0
        %1300 = vmatprep.subr.bf16.mxu0 0
        %1301 = vmatpush2.bf16.msra.mxu0 0
        %1302 = vmatprep.subr.bf16.mxu0 0
        %1303 = vmatpush2.bf16.msra.mxu0 0
        %1304 = vmatprep.mubr.bf16.mxu0 0
        %1305 = vmatmul.mubr.bf16.gmra.mxu0 %v1195
        %v1306 = vpop.f32.mrf.mxu0
        %v1307 = vadd.f32 %v1263, %v1306
        %v1308 = vpop.f32.mrf.mxu0
        %v1309 = vpop.f32.mrf.mxu0
        %v1310 = vadd.f32 %v1265, %v1309
        %v1311 = vpop.f32.mrf.mxu0
        %1312 = vmatprep.mubr.bf16.mxu0 0
        %1313 = vmatmul.mubr.bf16.gmra.mxu0 %v1198
        %v1314 = vpop.f32.mrf.mxu0
        %v1315 = vadd.f32 %v1267, %v1314
        %v1316 = vpop.f32.mrf.mxu0
        %v1317 = vpop.f32.mrf.mxu0
        %v1318 = vadd.f32 %v1266, %v1317
        %v1319 = vpop.f32.mrf.mxu0
        %1320 = vdwg.mxu0
        %s1321 = scalar_lea.vmem [#allocation6], 16
        %v1322 = vld [vmem:[%s1321] sm:$0xf]
        %v1323 = vld [vmem:[%s1321 + $0x4] sm:$0xf]
        %v1326 = vunpack.c.l.b16 %v1322
        %v1327 = vunpack.c.l.b16 %v1323
        %v1328 = vpack.c.b16 %v1327, %v1326
        %1330 = vmatprep.subr.bf16.mxu0 0
        %1331 = vmatpush1.bf16.msra.mxu0 0
        %1332 = vmatprep.subr.bf16.mxu0 0
        %1333 = vmatpush1.bf16.msra.mxu0 0
        %1334 = vmatprep.subr.bf16.mxu0 0
        %1335 = vmatpush1.bf16.msra.mxu0 0
        %1336 = vmatprep.subr.bf16.mxu0 0
        %1337 = vmatpush1.bf16.msra.mxu0 0
        %1338 = vmatprep.subr.bf16.mxu0 0
        %1339 = vmatpush1.bf16.msra.mxu0 0
        %1340 = vmatprep.subr.bf16.mxu0 0
        %1341 = vmatpush1.bf16.msra.mxu0 0
        %1342 = vmatprep.subr.bf16.mxu0 0
        %1343 = vmatpush1.bf16.msra.mxu0 0
        %1344 = vmatprep.subr.bf16.mxu0 0
        %1345 = vmatpush1.bf16.msra.mxu0 %v1328
        %1346 = vmatprep.subr.bf16.mxu0 0
        %1347 = vmatpush2.bf16.msra.mxu0 0
        %1348 = vmatprep.subr.bf16.mxu0 0
        %1349 = vmatpush2.bf16.msra.mxu0 0
        %1350 = vmatprep.subr.bf16.mxu0 0
        %1351 = vmatpush2.bf16.msra.mxu0 0
        %1352 = vmatprep.subr.bf16.mxu0 0
        %1353 = vmatpush2.bf16.msra.mxu0 0
        %1354 = vmatprep.subr.bf16.mxu0 0
        %1355 = vmatpush2.bf16.msra.mxu0 0
        %1356 = vmatprep.subr.bf16.mxu0 0
        %1357 = vmatpush2.bf16.msra.mxu0 0
        %1358 = vmatprep.subr.bf16.mxu0 0
        %1359 = vmatpush2.bf16.msra.mxu0 0
        %1360 = vmatprep.subr.bf16.mxu0 0
        %1361 = vmatpush2.bf16.msra.mxu0 0
        %1362 = vmatprep.mubr.bf16.mxu0 0
        %1363 = vmatmul.mubr.bf16.gmra.mxu0 %v1195
        %v1364 = vpop.f32.mrf.mxu0
        %v1365 = vadd.f32 0.0, %v1364
        %v1366 = vpop.f32.mrf.mxu0
        %v1367 = vpop.f32.mrf.mxu0
        %v1368 = vadd.f32 0.0, %v1367
        %v1369 = vpop.f32.mrf.mxu0
        %1370 = vmatprep.mubr.bf16.mxu0 0
        %1371 = vmatmul.mubr.bf16.gmra.mxu0 %v1198
        %v1372 = vpop.f32.mrf.mxu0
        %v1373 = vadd.f32 0.0, %v1372
        %v1374 = vpop.f32.mrf.mxu0
        %v1375 = vpop.f32.mrf.mxu0
        %v1376 = vadd.f32 0.0, %v1375
        %v1377 = vpop.f32.mrf.mxu0
        %1378 = vdwg.mxu0
        %v1379 = vrot.slane %v1365, 2
        %v1380 = vsel %vm862, %v1379, %v1376
        %v1385 = vrot.slane %v1365, 2
        %v1386 = vrot.slane %v1368, 2
        %v1387 = vsel %vm1052, %v1385, %v1386
        %v1388 = vrot.slane %v1373, 2
        %v1389 = vsel %vm1052, %v1386, %v1388
        %v1390 = vrot.slane %v1380, 2
        %v1391 = vsel %vm1052, %v1388, %v1390
        %v1396 = vadd.f32 %v1307, %v1387
        %v1397 = vadd.f32 %v1310, %v1389
        %v1398 = vadd.f32 %v1315, %v1391
        %v1399 = vadd.f32 %v1318, %v1390
        %v1401 = vlaneseq
        %v1402 = vshrl.u32 %v1401, 7
        %v1403 = vsub.s32 0, %v1402
        %v1404 = vrot.slane %v1180, %v1403
        %v1406 = vadd.f32 %v1396, %v1404
        %v1407 = vadd.f32 %v1397, %v1404
        %v1408 = vadd.f32 %v1398, %v1404
        %v1409 = vadd.f32 %v1399, %v1404
        %v1410 = vmul.f32 %v1406, 0.2
        %v1411 = vmul.f32 %v1407, 0.2
        %v1412 = vmul.f32 %v1408, 0.2
        %v1413 = vmul.f32 %v1409, 0.2
        %v1414 = vmax.f32 %v1406, %v1410
        %v1415 = vmax.f32 %v1407, %v1411
        %v1416 = vmax.f32 %v1408, %v1412
        %v1417 = vmax.f32 %v1409, %v1413
        %v1418 = vld [vmem:[#allocation8] sm:$0x1]
        %v1419 = vpack.c.bf16 %v1415, %v1414
        %v1420 = vpack.c.bf16 %v1417, %v1416
        %v1421 = vld [vmem:[%s7] sm:$0xf]
        %v1422 = vld [vmem:[%s7 + $0x4] sm:$0xf]
        %v1423 = vld [vmem:[%s7 + $0x8] sm:$0xf]
        %v1424 = vld [vmem:[%s7 + $0xc] sm:$0xf]
        %s1425 = scalar_lea.vmem %s7, 16
        %v1426 = vld [vmem:[%s1425] sm:$0xf]
        %v1427 = vld [vmem:[%s1425 + $0x4] sm:$0xf]
        %v1428 = vld [vmem:[%s1425 + $0x8] sm:$0xf]
        %v1429 = vld [vmem:[%s1425 + $0xc] sm:$0xf]
        %v1434 = vunpack.c.l.b16 %v1426
        %v1435 = vunpack.c.l.b16 %v1427
        %v1436 = vunpack.c.l.b16 %v1428
        %v1437 = vunpack.c.l.b16 %v1429
        %v1438 = vpack.c.b16 %v1435, %v1434
        %v1439 = vpack.c.b16 %v1437, %v1436
        %vm1442 = vcmask 261120
        %v1444 = vsel %vm1442, %v1419, 0
        %v1447 = vsel %vm1442, %v1420, 0
        %1449 = vmatprep.subr.bf16.mxu0 0
        %1450 = vmatpush1.bf16.msra.mxu0 0
        %1451 = vmatprep.subr.bf16.mxu0 0
        %1452 = vmatpush1.bf16.msra.mxu0 0
        %1453 = vmatprep.subr.bf16.mxu0 0
        %1454 = vmatpush1.bf16.msra.mxu0 0
        %1455 = vmatprep.subr.bf16.mxu0 0
        %1456 = vmatpush1.bf16.msra.mxu0 0
        %1457 = vmatprep.subr.bf16.mxu0 0
        %1458 = vmatpush1.bf16.msra.mxu0 0
        %1459 = vmatprep.subr.bf16.mxu0 0
        %1460 = vmatpush1.bf16.msra.mxu0 0
        %1461 = vmatprep.subr.bf16.mxu0 0
        %1462 = vmatpush1.bf16.msra.mxu0 %v1439
        %1463 = vmatprep.subr.bf16.mxu0 0
        %1464 = vmatpush1.bf16.msra.mxu0 %v1438
        %1465 = vmatprep.subr.bf16.mxu0 0
        %1466 = vmatpush2.bf16.msra.mxu0 0
        %1467 = vmatprep.subr.bf16.mxu0 0
        %1468 = vmatpush2.bf16.msra.mxu0 0
        %1469 = vmatprep.subr.bf16.mxu0 0
        %1470 = vmatpush2.bf16.msra.mxu0 0
        %1471 = vmatprep.subr.bf16.mxu0 0
        %1472 = vmatpush2.bf16.msra.mxu0 0
        %1473 = vmatprep.subr.bf16.mxu0 0
        %1474 = vmatpush2.bf16.msra.mxu0 0
        %1475 = vmatprep.subr.bf16.mxu0 0
        %1476 = vmatpush2.bf16.msra.mxu0 0
        %1477 = vmatprep.subr.bf16.mxu0 0
        %1478 = vmatpush2.bf16.msra.mxu0 0
        %1479 = vmatprep.subr.bf16.mxu0 0
        %1480 = vmatpush2.bf16.msra.mxu0 0
        %1481 = vmatprep.mubr.bf16.mxu0 0
        %1482 = vmatmul.mubr.bf16.gmra.mxu0 %v1444
        %v1483 = vpop.f32.mrf.mxu0
        %v1484 = vadd.f32 0.0, %v1483
        %v1485 = vpop.f32.mrf.mxu0
        %v1486 = vpop.f32.mrf.mxu0
        %v1487 = vadd.f32 0.0, %v1486
        %v1488 = vpop.f32.mrf.mxu0
        %1489 = vmatprep.mubr.bf16.mxu0 0
        %1490 = vmatmul.mubr.bf16.gmra.mxu0 %v1447
        %v1491 = vpop.f32.mrf.mxu0
        %v1492 = vadd.f32 0.0, %v1491
        %v1493 = vpop.f32.mrf.mxu0
        %v1494 = vpop.f32.mrf.mxu0
        %v1495 = vadd.f32 0.0, %v1494
        %v1496 = vpop.f32.mrf.mxu0
        %1497 = vdwg.mxu0
        %v1498 = vrot.slane %v1484, 4
        %v1499 = vsel %vm1123, %v1498, %v1495
        %v1504 = vunpack.c.l.b16 %v1421
        %v1505 = vunpack.c.l.b16 %v1422
        %v1506 = vunpack.c.l.b16 %v1423
        %v1507 = vunpack.c.l.b16 %v1424
        %v1508 = vpack.c.b16 %v1505, %v1504
        %v1509 = vpack.c.b16 %v1507, %v1506
        %v1516 = vrot.slane %v1484, 1
        %v1517 = vrot.slane %v1487, 1
        %v1518 = vsel %vm879, %v1516, %v1517
        %v1519 = vrot.slane %v1492, 1
        %v1520 = vsel %vm879, %v1517, %v1519
        %v1521 = vrot.slane %v1499, 1
        %v1522 = vsel %vm879, %v1519, %v1521
        %1527 = vmatprep.subr.bf16.mxu0 0
        %1528 = vmatpush1.bf16.msra.mxu0 0
        %1529 = vmatprep.subr.bf16.mxu0 0
        %1530 = vmatpush1.bf16.msra.mxu0 0
        %1531 = vmatprep.subr.bf16.mxu0 0
        %1532 = vmatpush1.bf16.msra.mxu0 0
        %1533 = vmatprep.subr.bf16.mxu0 0
        %1534 = vmatpush1.bf16.msra.mxu0 0
        %1535 = vmatprep.subr.bf16.mxu0 0
        %1536 = vmatpush1.bf16.msra.mxu0 0
        %1537 = vmatprep.subr.bf16.mxu0 0
        %1538 = vmatpush1.bf16.msra.mxu0 0
        %1539 = vmatprep.subr.bf16.mxu0 0
        %1540 = vmatpush1.bf16.msra.mxu0 %v1509
        %1541 = vmatprep.subr.bf16.mxu0 0
        %1542 = vmatpush1.bf16.msra.mxu0 %v1508
        %1543 = vmatprep.subr.bf16.mxu0 0
        %1544 = vmatpush2.bf16.msra.mxu0 0
        %1545 = vmatprep.subr.bf16.mxu0 0
        %1546 = vmatpush2.bf16.msra.mxu0 0
        %1547 = vmatprep.subr.bf16.mxu0 0
        %1548 = vmatpush2.bf16.msra.mxu0 0
        %1549 = vmatprep.subr.bf16.mxu0 0
        %1550 = vmatpush2.bf16.msra.mxu0 0
        %1551 = vmatprep.subr.bf16.mxu0 0
        %1552 = vmatpush2.bf16.msra.mxu0 0
        %1553 = vmatprep.subr.bf16.mxu0 0
        %1554 = vmatpush2.bf16.msra.mxu0 0
        %1555 = vmatprep.subr.bf16.mxu0 0
        %1556 = vmatpush2.bf16.msra.mxu0 0
        %1557 = vmatprep.subr.bf16.mxu0 0
        %1558 = vmatpush2.bf16.msra.mxu0 0
        %1559 = vmatprep.mubr.bf16.mxu0 0
        %1560 = vmatmul.mubr.bf16.gmra.mxu0 %v1444
        %v1561 = vpop.f32.mrf.mxu0
        %v1562 = vadd.f32 %v1518, %v1561
        %v1563 = vpop.f32.mrf.mxu0
        %v1564 = vpop.f32.mrf.mxu0
        %v1565 = vadd.f32 %v1520, %v1564
        %v1566 = vpop.f32.mrf.mxu0
        %1567 = vmatprep.mubr.bf16.mxu0 0
        %1568 = vmatmul.mubr.bf16.gmra.mxu0 %v1447
        %v1569 = vpop.f32.mrf.mxu0
        %v1570 = vadd.f32 %v1522, %v1569
        %v1571 = vpop.f32.mrf.mxu0
        %v1572 = vpop.f32.mrf.mxu0
        %v1573 = vadd.f32 %v1521, %v1572
        %v1574 = vpop.f32.mrf.mxu0
        %1575 = vdwg.mxu0
        %s1576 = scalar_lea.vmem %s7, 32
        %v1577 = vld [vmem:[%s1576] sm:$0xf]
        %v1578 = vld [vmem:[%s1576 + $0x4] sm:$0xf]
        %v1579 = vld [vmem:[%s1576 + $0x8] sm:$0xf]
        %v1580 = vld [vmem:[%s1576 + $0xc] sm:$0xf]
        %v1585 = vunpack.c.l.b16 %v1577
        %v1586 = vunpack.c.l.b16 %v1578
        %v1587 = vunpack.c.l.b16 %v1579
        %v1588 = vunpack.c.l.b16 %v1580
        %v1589 = vpack.c.b16 %v1586, %v1585
        %v1590 = vpack.c.b16 %v1588, %v1587
        %1593 = vmatprep.subr.bf16.mxu0 0
        %1594 = vmatpush1.bf16.msra.mxu0 0
        %1595 = vmatprep.subr.bf16.mxu0 0
        %1596 = vmatpush1.bf16.msra.mxu0 0
        %1597 = vmatprep.subr.bf16.mxu0 0
        %1598 = vmatpush1.bf16.msra.mxu0 0
        %1599 = vmatprep.subr.bf16.mxu0 0
        %1600 = vmatpush1.bf16.msra.mxu0 0
        %1601 = vmatprep.subr.bf16.mxu0 0
        %1602 = vmatpush1.bf16.msra.mxu0 0
        %1603 = vmatprep.subr.bf16.mxu0 0
        %1604 = vmatpush1.bf16.msra.mxu0 0
        %1605 = vmatprep.subr.bf16.mxu0 0
        %1606 = vmatpush1.bf16.msra.mxu0 %v1590
        %1607 = vmatprep.subr.bf16.mxu0 0
        %1608 = vmatpush1.bf16.msra.mxu0 %v1589
        %1609 = vmatprep.subr.bf16.mxu0 0
        %1610 = vmatpush2.bf16.msra.mxu0 0
        %1611 = vmatprep.subr.bf16.mxu0 0
        %1612 = vmatpush2.bf16.msra.mxu0 0
        %1613 = vmatprep.subr.bf16.mxu0 0
        %1614 = vmatpush2.bf16.msra.mxu0 0
        %1615 = vmatprep.subr.bf16.mxu0 0
        %1616 = vmatpush2.bf16.msra.mxu0 0
        %1617 = vmatprep.subr.bf16.mxu0 0
        %1618 = vmatpush2.bf16.msra.mxu0 0
        %1619 = vmatprep.subr.bf16.mxu0 0
        %1620 = vmatpush2.bf16.msra.mxu0 0
        %1621 = vmatprep.subr.bf16.mxu0 0
        %1622 = vmatpush2.bf16.msra.mxu0 0
        %1623 = vmatprep.subr.bf16.mxu0 0
        %1624 = vmatpush2.bf16.msra.mxu0 0
        %1625 = vmatprep.mubr.bf16.mxu0 0
        %1626 = vmatmul.mubr.bf16.gmra.mxu0 %v1444
        %v1627 = vpop.f32.mrf.mxu0
        %v1628 = vadd.f32 0.0, %v1627
        %v1629 = vpop.f32.mrf.mxu0
        %v1630 = vpop.f32.mrf.mxu0
        %v1631 = vadd.f32 0.0, %v1630
        %v1632 = vpop.f32.mrf.mxu0
        %1633 = vmatprep.mubr.bf16.mxu0 0
        %1634 = vmatmul.mubr.bf16.gmra.mxu0 %v1447
        %v1635 = vpop.f32.mrf.mxu0
        %v1636 = vadd.f32 0.0, %v1635
        %v1637 = vpop.f32.mrf.mxu0
        %v1638 = vpop.f32.mrf.mxu0
        %v1639 = vadd.f32 0.0, %v1638
        %v1640 = vpop.f32.mrf.mxu0
        %1641 = vdwg.mxu0
        %v1642 = vrot.slane %v1628, 4
        %v1643 = vsel %vm1123, %v1642, %v1639
        %v1648 = vrot.slane %v1628, 2
        %v1649 = vrot.slane %v1631, 2
        %v1650 = vsel %vm1052, %v1648, %v1649
        %v1651 = vrot.slane %v1636, 2
        %v1652 = vsel %vm1052, %v1649, %v1651
        %v1653 = vrot.slane %v1643, 2
        %v1654 = vsel %vm1052, %v1651, %v1653
        %v1659 = vadd.f32 %v1562, %v1650
        %v1660 = vadd.f32 %v1565, %v1652
        %v1661 = vadd.f32 %v1570, %v1654
        %v1662 = vadd.f32 %v1573, %v1653
        %v1664 = vlaneseq
        %v1665 = vshrl.u32 %v1664, 7
        %v1666 = vsub.s32 0, %v1665
        %v1667 = vrot.slane %v1418, %v1666
        %v1669 = vadd.f32 %v1659, %v1667
        %v1670 = vadd.f32 %v1660, %v1667
        %v1671 = vadd.f32 %v1661, %v1667
        %v1672 = vadd.f32 %v1662, %v1667
        %v1673 = vmul.f32 %v1669, 0.2
        %v1674 = vmul.f32 %v1670, 0.2
        %v1675 = vmul.f32 %v1671, 0.2
        %v1676 = vmul.f32 %v1672, 0.2
        %v1677 = vmax.f32 %v1669, %v1673
        %v1678 = vmax.f32 %v1670, %v1674
        %v1679 = vmax.f32 %v1671, %v1675
        %v1680 = vmax.f32 %v1672, %v1676
        %1681 = vst.msk [vmem:[%s583] sm:$0xff] %vm1442, %v1677
        %1682 = vst.msk [vmem:[%s583 + $0x8] sm:$0xff] %vm1442, %v1678
        %1683 = vst.msk [vmem:[%s583 + $0x10] sm:$0xff] %vm1442, %v1679
        %vm1684 = vcmask 254976
        %1685 = vst.msk [vmem:[%s583 + $0x18] sm:$0x3] %vm1684, %v1680
        %vm1686 = vcmask 1047554
        %v1687 = vrot.slane %v1677, 6
        %v1688 = vsel %vm1686, %v1687, %v1680
        %v1693 = vrot.slane %v1677, 1
        %v1694 = vrot.slane %v1678, 1
        %v1695 = vsel %vm879, %v1693, %v1694
        %v1696 = vrot.slane %v1679, 1
        %v1697 = vsel %vm879, %v1694, %v1696
        %v1698 = vrot.slane %v1688, 1
        %v1699 = vsel %vm879, %v1696, %v1698
        %v1704 = vmax.f32 %v1677, %v1695
        %v1705 = vmax.f32 %v1678, %v1697
        %v1706 = vmax.f32 %v1679, %v1699
        %v1707 = vmax.f32 %v1680, %v1698
        %1708 = vst.msk [vmem:[#allocation3] sm:$0xff] %vm1442, %v1704
        %1709 = vst.msk [vmem:[#allocation3 + $0x8] sm:$0xff] %vm1442, %v1705
        %1710 = vst.msk [vmem:[#allocation3 + $0x10] sm:$0xff] %vm1442, %v1706
        %1711 = vst.msk [vmem:[#allocation3 + $0x18] sm:$0x3] %vm1684, %v1707
        %v1712 = vld [vmem:[#allocation3] ss:$2 sm:$0xff]
        %s1713 = scalar_lea.vmem [#allocation3], 16
        %v1714 = vld [vmem:[%s1713] ss:$2 sm:$0x1f]
        %v1715 = vld [vmem:[#allocation11] sm:$0x1]
        %v1716 = vpack.c.bf16 %v1714, %v1712
        %v1717 = vld [vmem:[#allocation9] sm:$0xf]
        %v1718 = vld [vmem:[#allocation9 + $0x4] sm:$0xf]
        %v1719 = vld [vmem:[#allocation9 + $0x8] sm:$0xf]
        %v1720 = vld [vmem:[#allocation9 + $0xc] sm:$0xf]
        %s1721 = scalar_lea.vmem [#allocation9], 16
        %v1722 = vld [vmem:[%s1721] sm:$0xf]
        %v1723 = vld [vmem:[%s1721 + $0x4] sm:$0xf]
        %v1724 = vld [vmem:[%s1721 + $0x8] sm:$0xf]
        %v1725 = vld [vmem:[%s1721 + $0xc] sm:$0xf]
        %v1730 = vunpack.c.l.b16 %v1722
        %v1731 = vunpack.c.l.b16 %v1723
        %v1732 = vunpack.c.l.b16 %v1724
        %v1733 = vunpack.c.l.b16 %v1725
        %v1734 = vpack.c.b16 %v1731, %v1730
        %v1735 = vpack.c.b16 %v1733, %v1732
        %v1739 = vsel %vm1442, %v1716, 0
        %1741 = vmatprep.subr.bf16.mxu0 0
        %1742 = vmatpush1.bf16.msra.mxu0 0
        %1743 = vmatprep.subr.bf16.mxu0 0
        %1744 = vmatpush1.bf16.msra.mxu0 0
        %1745 = vmatprep.subr.bf16.mxu0 0
        %1746 = vmatpush1.bf16.msra.mxu0 0
        %1747 = vmatprep.subr.bf16.mxu0 0
        %1748 = vmatpush1.bf16.msra.mxu0 0
        %1749 = vmatprep.subr.bf16.mxu0 0
        %1750 = vmatpush1.bf16.msra.mxu0 0
        %1751 = vmatprep.subr.bf16.mxu0 0
        %1752 = vmatpush1.bf16.msra.mxu0 0
        %1753 = vmatprep.subr.bf16.mxu0 0
        %1754 = vmatpush1.bf16.msra.mxu0 %v1735
        %1755 = vmatprep.subr.bf16.mxu0 0
        %1756 = vmatpush1.bf16.msra.mxu0 %v1734
        %1757 = vmatprep.subr.bf16.mxu0 0
        %1758 = vmatpush2.bf16.msra.mxu0 0
        %1759 = vmatprep.subr.bf16.mxu0 0
        %1760 = vmatpush2.bf16.msra.mxu0 0
        %1761 = vmatprep.subr.bf16.mxu0 0
        %1762 = vmatpush2.bf16.msra.mxu0 0
        %1763 = vmatprep.subr.bf16.mxu0 0
        %1764 = vmatpush2.bf16.msra.mxu0 0
        %1765 = vmatprep.subr.bf16.mxu0 0
        %1766 = vmatpush2.bf16.msra.mxu0 0
        %1767 = vmatprep.subr.bf16.mxu0 0
        %1768 = vmatpush2.bf16.msra.mxu0 0
        %1769 = vmatprep.subr.bf16.mxu0 0
        %1770 = vmatpush2.bf16.msra.mxu0 0
        %1771 = vmatprep.subr.bf16.mxu0 0
        %1772 = vmatpush2.bf16.msra.mxu0 0
        %1773 = vmatprep.mubr.bf16.mxu0 0
        %1774 = vmatmul.mubr.bf16.gmra.mxu0 %v1739
        %v1775 = vpop.f32.mrf.mxu0
        %v1776 = vadd.f32 0.0, %v1775
        %v1777 = vpop.f32.mrf.mxu0
        %v1778 = vpop.f32.mrf.mxu0
        %v1779 = vadd.f32 0.0, %v1778
        %v1780 = vpop.f32.mrf.mxu0
        %1781 = vdwg.mxu0
        %vm1782 = vcmask 1047557
        %v1783 = vrot.slane %v1776, 3
        %v1784 = vsel %vm1782, %v1783, %v1779
        %v1789 = vunpack.c.l.b16 %v1717
        %v1790 = vunpack.c.l.b16 %v1718
        %v1791 = vunpack.c.l.b16 %v1719
        %v1792 = vunpack.c.l.b16 %v1720
        %v1793 = vpack.c.b16 %v1790, %v1789
        %v1794 = vpack.c.b16 %v1792, %v1791
        %v1799 = vrot.slane %v1776, 1
        %v1800 = vrot.slane %v1784, 1
        %v1801 = vsel %vm879, %v1799, %v1800
        %1804 = vmatprep.subr.bf16.mxu0 0
        %1805 = vmatpush1.bf16.msra.mxu0 0
        %1806 = vmatprep.subr.bf16.mxu0 0
        %1807 = vmatpush1.bf16.msra.mxu0 0
        %1808 = vmatprep.subr.bf16.mxu0 0
        %1809 = vmatpush1.bf16.msra.mxu0 0
        %1810 = vmatprep.subr.bf16.mxu0 0
        %1811 = vmatpush1.bf16.msra.mxu0 0
        %1812 = vmatprep.subr.bf16.mxu0 0
        %1813 = vmatpush1.bf16.msra.mxu0 0
        %1814 = vmatprep.subr.bf16.mxu0 0
        %1815 = vmatpush1.bf16.msra.mxu0 0
        %1816 = vmatprep.subr.bf16.mxu0 0
        %1817 = vmatpush1.bf16.msra.mxu0 %v1794
        %1818 = vmatprep.subr.bf16.mxu0 0
        %1819 = vmatpush1.bf16.msra.mxu0 %v1793
        %1820 = vmatprep.subr.bf16.mxu0 0
        %1821 = vmatpush2.bf16.msra.mxu0 0
        %1822 = vmatprep.subr.bf16.mxu0 0
        %1823 = vmatpush2.bf16.msra.mxu0 0
        %1824 = vmatprep.subr.bf16.mxu0 0
        %1825 = vmatpush2.bf16.msra.mxu0 0
        %1826 = vmatprep.subr.bf16.mxu0 0
        %1827 = vmatpush2.bf16.msra.mxu0 0
        %1828 = vmatprep.subr.bf16.mxu0 0
        %1829 = vmatpush2.bf16.msra.mxu0 0
        %1830 = vmatprep.subr.bf16.mxu0 0
        %1831 = vmatpush2.bf16.msra.mxu0 0
        %1832 = vmatprep.subr.bf16.mxu0 0
        %1833 = vmatpush2.bf16.msra.mxu0 0
        %1834 = vmatprep.subr.bf16.mxu0 0
        %1835 = vmatpush2.bf16.msra.mxu0 0
        %1836 = vmatprep.mubr.bf16.mxu0 0
        %1837 = vmatmul.mubr.bf16.gmra.mxu0 %v1739
        %v1838 = vpop.f32.mrf.mxu0
        %v1839 = vadd.f32 %v1801, %v1838
        %v1840 = vpop.f32.mrf.mxu0
        %v1841 = vpop.f32.mrf.mxu0
        %v1842 = vadd.f32 %v1800, %v1841
        %v1843 = vpop.f32.mrf.mxu0
        %1844 = vdwg.mxu0
        %s1845 = scalar_lea.vmem [#allocation9], 32
        %v1846 = vld [vmem:[%s1845] sm:$0xf]
        %v1847 = vld [vmem:[%s1845 + $0x4] sm:$0xf]
        %v1848 = vld [vmem:[%s1845 + $0x8] sm:$0xf]
        %v1849 = vld [vmem:[%s1845 + $0xc] sm:$0xf]
        %v1854 = vunpack.c.l.b16 %v1846
        %v1855 = vunpack.c.l.b16 %v1847
        %v1856 = vunpack.c.l.b16 %v1848
        %v1857 = vunpack.c.l.b16 %v1849
        %v1858 = vpack.c.b16 %v1855, %v1854
        %v1859 = vpack.c.b16 %v1857, %v1856
        %1862 = vmatprep.subr.bf16.mxu0 0
        %1863 = vmatpush1.bf16.msra.mxu0 0
        %1864 = vmatprep.subr.bf16.mxu0 0
        %1865 = vmatpush1.bf16.msra.mxu0 0
        %1866 = vmatprep.subr.bf16.mxu0 0
        %1867 = vmatpush1.bf16.msra.mxu0 0
        %1868 = vmatprep.subr.bf16.mxu0 0
        %1869 = vmatpush1.bf16.msra.mxu0 0
        %1870 = vmatprep.subr.bf16.mxu0 0
        %1871 = vmatpush1.bf16.msra.mxu0 0
        %1872 = vmatprep.subr.bf16.mxu0 0
        %1873 = vmatpush1.bf16.msra.mxu0 0
        %1874 = vmatprep.subr.bf16.mxu0 0
        %1875 = vmatpush1.bf16.msra.mxu0 %v1859
        %1876 = vmatprep.subr.bf16.mxu0 0
        %1877 = vmatpush1.bf16.msra.mxu0 %v1858
        %1878 = vmatprep.subr.bf16.mxu0 0
        %1879 = vmatpush2.bf16.msra.mxu0 0
        %1880 = vmatprep.subr.bf16.mxu0 0
        %1881 = vmatpush2.bf16.msra.mxu0 0
        %1882 = vmatprep.subr.bf16.mxu0 0
        %1883 = vmatpush2.bf16.msra.mxu0 0
        %1884 = vmatprep.subr.bf16.mxu0 0
        %1885 = vmatpush2.bf16.msra.mxu0 0
        %1886 = vmatprep.subr.bf16.mxu0 0
        %1887 = vmatpush2.bf16.msra.mxu0 0
        %1888 = vmatprep.subr.bf16.mxu0 0
        %1889 = vmatpush2.bf16.msra.mxu0 0
        %1890 = vmatprep.subr.bf16.mxu0 0
        %1891 = vmatpush2.bf16.msra.mxu0 0
        %1892 = vmatprep.subr.bf16.mxu0 0
        %1893 = vmatpush2.bf16.msra.mxu0 0
        %1894 = vmatprep.mubr.bf16.mxu0 0
        %1895 = vmatmul.mubr.bf16.gmra.mxu0 %v1739
        %v1896 = vpop.f32.mrf.mxu0
        %v1897 = vadd.f32 0.0, %v1896
        %v1898 = vpop.f32.mrf.mxu0
        %v1899 = vpop.f32.mrf.mxu0
        %v1900 = vadd.f32 0.0, %v1899
        %v1901 = vpop.f32.mrf.mxu0
        %1902 = vdwg.mxu0
        %v1903 = vrot.slane %v1897, 3
        %v1904 = vsel %vm1782, %v1903, %v1900
        %v1907 = vrot.slane %v1897, 2
        %v1908 = vrot.slane %v1904, 2
        %v1909 = vsel %vm1052, %v1907, %v1908
        %v1912 = vadd.f32 %v1839, %v1909
        %v1913 = vadd.f32 %v1842, %v1908
        %v1915 = vlaneseq
        %v1916 = vshrl.u32 %v1915, 7
        %v1917 = vsub.s32 0, %v1916
        %v1918 = vrot.slane %v1715, %v1917
        %v1920 = vadd.f32 %v1912, %v1918
        %v1921 = vadd.f32 %v1913, %v1918
        %v1922 = vmul.f32 %v1920, 0.2
        %v1923 = vmul.f32 %v1921, 0.2
        %v1924 = vmax.f32 %v1920, %v1922
        %v1925 = vmax.f32 %v1921, %v1923
        %v1926 = vld [vmem:[%s12] sm:$0x1]
        %v1927 = vpack.c.bf16 %v1925, %v1924
        %v1928 = vld [vmem:[%s11] sm:$0xf]
        %v1929 = vld [vmem:[%s11 + $0x4] sm:$0xf]
        %v1930 = vld [vmem:[%s11 + $0x8] sm:$0xf]
        %v1931 = vld [vmem:[%s11 + $0xc] sm:$0xf]
        %v1932 = vld [vmem:[%s11 + $0x10] sm:$0xf]
        %v1933 = vld [vmem:[%s11 + $0x14] sm:$0xf]
        %v1934 = vld [vmem:[%s11 + $0x18] sm:$0xf]
        %v1935 = vld [vmem:[%s11 + $0x1c] sm:$0xf]
        %s1936 = scalar_lea.vmem %s11, 32
        %v1937 = vld [vmem:[%s1936] sm:$0xf]
        %v1938 = vld [vmem:[%s1936 + $0x4] sm:$0xf]
        %v1939 = vld [vmem:[%s1936 + $0x8] sm:$0xf]
        %v1940 = vld [vmem:[%s1936 + $0xc] sm:$0xf]
        %v1941 = vld [vmem:[%s1936 + $0x10] sm:$0xf]
        %v1942 = vld [vmem:[%s1936 + $0x14] sm:$0xf]
        %v1943 = vld [vmem:[%s1936 + $0x18] sm:$0xf]
        %v1944 = vld [vmem:[%s1936 + $0x1c] sm:$0xf]
        %v1953 = vunpack.c.l.b16 %v1937
        %v1954 = vunpack.c.l.b16 %v1938
        %v1955 = vunpack.c.l.b16 %v1939
        %v1956 = vunpack.c.l.b16 %v1940
        %v1957 = vunpack.c.l.b16 %v1941
        %v1958 = vunpack.c.l.b16 %v1942
        %v1959 = vunpack.c.l.b16 %v1943
        %v1960 = vunpack.c.l.b16 %v1944
        %v1961 = vpack.c.b16 %v1954, %v1953
        %v1962 = vpack.c.b16 %v1956, %v1955
        %v1963 = vpack.c.b16 %v1958, %v1957
        %v1964 = vpack.c.b16 %v1960, %v1959
        %vm1969 = vcmask 523264
        %v1971 = vsel %vm1969, %v1927, 0
        %1973 = vmatprep.subr.bf16.mxu0 0
        %1974 = vmatpush1.bf16.msra.mxu0 0
        %1975 = vmatprep.subr.bf16.mxu0 0
        %1976 = vmatpush1.bf16.msra.mxu0 0
        %1977 = vmatprep.subr.bf16.mxu0 0
        %1978 = vmatpush1.bf16.msra.mxu0 0
        %1979 = vmatprep.subr.bf16.mxu0 0
        %1980 = vmatpush1.bf16.msra.mxu0 0
        %1981 = vmatprep.subr.bf16.mxu0 0
        %1982 = vmatpush1.bf16.msra.mxu0 %v1964
        %1983 = vmatprep.subr.bf16.mxu0 0
        %1984 = vmatpush1.bf16.msra.mxu0 %v1963
        %1985 = vmatprep.subr.bf16.mxu0 0
        %1986 = vmatpush1.bf16.msra.mxu0 %v1962
        %1987 = vmatprep.subr.bf16.mxu0 0
        %1988 = vmatpush1.bf16.msra.mxu0 %v1961
        %1989 = vmatprep.subr.bf16.mxu0 0
        %1990 = vmatpush2.bf16.msra.mxu0 0
        %1991 = vmatprep.subr.bf16.mxu0 0
        %1992 = vmatpush2.bf16.msra.mxu0 0
        %1993 = vmatprep.subr.bf16.mxu0 0
        %1994 = vmatpush2.bf16.msra.mxu0 0
        %1995 = vmatprep.subr.bf16.mxu0 0
        %1996 = vmatpush2.bf16.msra.mxu0 0
        %1997 = vmatprep.subr.bf16.mxu0 0
        %1998 = vmatpush2.bf16.msra.mxu0 0
        %1999 = vmatprep.subr.bf16.mxu0 0
        %2000 = vmatpush2.bf16.msra.mxu0 0
        %2001 = vmatprep.subr.bf16.mxu0 0
        %2002 = vmatpush2.bf16.msra.mxu0 0
        %2003 = vmatprep.subr.bf16.mxu0 0
        %2004 = vmatpush2.bf16.msra.mxu0 0
        %2005 = vmatprep.mubr.bf16.mxu0 0
        %2006 = vmatmul.mubr.bf16.gmra.mxu0 %v1971
        %v2007 = vpop.f32.mrf.mxu0
        %v2008 = vadd.f32 0.0, %v2007
        %v2009 = vpop.f32.mrf.mxu0
        %v2010 = vpop.f32.mrf.mxu0
        %v2011 = vadd.f32 0.0, %v2010
        %v2012 = vpop.f32.mrf.mxu0
        %2013 = vdwg.mxu0
        %vm2014 = vcmask 1047555
        %v2015 = vrot.slane %v2008, 5
        %v2016 = vsel %vm2014, %v2015, %v2011
        %v2025 = vunpack.c.l.b16 %v1928
        %v2026 = vunpack.c.l.b16 %v1929
        %v2027 = vunpack.c.l.b16 %v1930
        %v2028 = vunpack.c.l.b16 %v1931
        %v2029 = vunpack.c.l.b16 %v1932
        %v2030 = vunpack.c.l.b16 %v1933
        %v2031 = vunpack.c.l.b16 %v1934
        %v2032 = vunpack.c.l.b16 %v1935
        %v2033 = vpack.c.b16 %v2026, %v2025
        %v2034 = vpack.c.b16 %v2028, %v2027
        %v2035 = vpack.c.b16 %v2030, %v2029
        %v2036 = vpack.c.b16 %v2032, %v2031
        %v2043 = vrot.slane %v2008, 1
        %v2044 = vrot.slane %v2016, 1
        %v2045 = vsel %vm879, %v2043, %v2044
        %2048 = vmatprep.subr.bf16.mxu0 0
        %2049 = vmatpush1.bf16.msra.mxu0 0
        %2050 = vmatprep.subr.bf16.mxu0 0
        %2051 = vmatpush1.bf16.msra.mxu0 0
        %2052 = vmatprep.subr.bf16.mxu0 0
        %2053 = vmatpush1.bf16.msra.mxu0 0
        %2054 = vmatprep.subr.bf16.mxu0 0
        %2055 = vmatpush1.bf16.msra.mxu0 0
        %2056 = vmatprep.subr.bf16.mxu0 0
        %2057 = vmatpush1.bf16.msra.mxu0 %v2036
        %2058 = vmatprep.subr.bf16.mxu0 0
        %2059 = vmatpush1.bf16.msra.mxu0 %v2035
        %2060 = vmatprep.subr.bf16.mxu0 0
        %2061 = vmatpush1.bf16.msra.mxu0 %v2034
        %2062 = vmatprep.subr.bf16.mxu0 0
        %2063 = vmatpush1.bf16.msra.mxu0 %v2033
        %2064 = vmatprep.subr.bf16.mxu0 0
        %2065 = vmatpush2.bf16.msra.mxu0 0
        %2066 = vmatprep.subr.bf16.mxu0 0
        %2067 = vmatpush2.bf16.msra.mxu0 0
        %2068 = vmatprep.subr.bf16.mxu0 0
        %2069 = vmatpush2.bf16.msra.mxu0 0
        %2070 = vmatprep.subr.bf16.mxu0 0
        %2071 = vmatpush2.bf16.msra.mxu0 0
        %2072 = vmatprep.subr.bf16.mxu0 0
        %2073 = vmatpush2.bf16.msra.mxu0 0
        %2074 = vmatprep.subr.bf16.mxu0 0
        %2075 = vmatpush2.bf16.msra.mxu0 0
        %2076 = vmatprep.subr.bf16.mxu0 0
        %2077 = vmatpush2.bf16.msra.mxu0 0
        %2078 = vmatprep.subr.bf16.mxu0 0
        %2079 = vmatpush2.bf16.msra.mxu0 0
        %2080 = vmatprep.mubr.bf16.mxu0 0
        %2081 = vmatmul.mubr.bf16.gmra.mxu0 %v1971
        %v2082 = vpop.f32.mrf.mxu0
        %v2083 = vadd.f32 %v2045, %v2082
        %v2084 = vpop.f32.mrf.mxu0
        %v2085 = vpop.f32.mrf.mxu0
        %v2086 = vadd.f32 %v2044, %v2085
        %v2087 = vpop.f32.mrf.mxu0
        %2088 = vdwg.mxu0
        %s2089 = scalar_lea.vmem %s11, 64
        %v2090 = vld [vmem:[%s2089] sm:$0xf]
        %v2091 = vld [vmem:[%s2089 + $0x4] sm:$0xf]
        %v2092 = vld [vmem:[%s2089 + $0x8] sm:$0xf]
        %v2093 = vld [vmem:[%s2089 + $0xc] sm:$0xf]
        %v2094 = vld [vmem:[%s2089 + $0x10] sm:$0xf]
        %v2095 = vld [vmem:[%s2089 + $0x14] sm:$0xf]
        %v2096 = vld [vmem:[%s2089 + $0x18] sm:$0xf]
        %v2097 = vld [vmem:[%s2089 + $0x1c] sm:$0xf]
        %v2106 = vunpack.c.l.b16 %v2090
        %v2107 = vunpack.c.l.b16 %v2091
        %v2108 = vunpack.c.l.b16 %v2092
        %v2109 = vunpack.c.l.b16 %v2093
        %v2110 = vunpack.c.l.b16 %v2094
        %v2111 = vunpack.c.l.b16 %v2095
        %v2112 = vunpack.c.l.b16 %v2096
        %v2113 = vunpack.c.l.b16 %v2097
        %v2114 = vpack.c.b16 %v2107, %v2106
        %v2115 = vpack.c.b16 %v2109, %v2108
        %v2116 = vpack.c.b16 %v2111, %v2110
        %v2117 = vpack.c.b16 %v2113, %v2112
        %2122 = vmatprep.subr.bf16.mxu0 0
        %2123 = vmatpush1.bf16.msra.mxu0 0
        %2124 = vmatprep.subr.bf16.mxu0 0
        %2125 = vmatpush1.bf16.msra.mxu0 0
        %2126 = vmatprep.subr.bf16.mxu0 0
        %2127 = vmatpush1.bf16.msra.mxu0 0
        %2128 = vmatprep.subr.bf16.mxu0 0
        %2129 = vmatpush1.bf16.msra.mxu0 0
        %2130 = vmatprep.subr.bf16.mxu0 0
        %2131 = vmatpush1.bf16.msra.mxu0 %v2117
        %2132 = vmatprep.subr.bf16.mxu0 0
        %2133 = vmatpush1.bf16.msra.mxu0 %v2116
        %2134 = vmatprep.subr.bf16.mxu0 0
        %2135 = vmatpush1.bf16.msra.mxu0 %v2115
        %2136 = vmatprep.subr.bf16.mxu0 0
        %2137 = vmatpush1.bf16.msra.mxu0 %v2114
        %2138 = vmatprep.subr.bf16.mxu0 0
        %2139 = vmatpush2.bf16.msra.mxu0 0
        %2140 = vmatprep.subr.bf16.mxu0 0
        %2141 = vmatpush2.bf16.msra.mxu0 0
        %2142 = vmatprep.subr.bf16.mxu0 0
        %2143 = vmatpush2.bf16.msra.mxu0 0
        %2144 = vmatprep.subr.bf16.mxu0 0
        %2145 = vmatpush2.bf16.msra.mxu0 0
        %2146 = vmatprep.subr.bf16.mxu0 0
        %2147 = vmatpush2.bf16.msra.mxu0 0
        %2148 = vmatprep.subr.bf16.mxu0 0
        %2149 = vmatpush2.bf16.msra.mxu0 0
        %2150 = vmatprep.subr.bf16.mxu0 0
        %2151 = vmatpush2.bf16.msra.mxu0 0
        %2152 = vmatprep.subr.bf16.mxu0 0
        %2153 = vmatpush2.bf16.msra.mxu0 0
        %2154 = vmatprep.mubr.bf16.mxu0 0
        %2155 = vmatmul.mubr.bf16.gmra.mxu0 %v1971
        %v2156 = vpop.f32.mrf.mxu0
        %v2157 = vadd.f32 0.0, %v2156
        %v2158 = vpop.f32.mrf.mxu0
        %v2159 = vpop.f32.mrf.mxu0
        %v2160 = vadd.f32 0.0, %v2159
        %v2161 = vpop.f32.mrf.mxu0
        %2162 = vdwg.mxu0
        %v2163 = vrot.slane %v2157, 5
        %v2164 = vsel %vm2014, %v2163, %v2160
        %v2167 = vrot.slane %v2157, 2
        %v2168 = vrot.slane %v2164, 2
        %v2169 = vsel %vm1052, %v2167, %v2168
        %v2172 = vadd.f32 %v2083, %v2169
        %v2173 = vadd.f32 %v2086, %v2168
        %v2175 = vlaneseq
        %v2176 = vshrl.u32 %v2175, 7
        %v2177 = vsub.s32 0, %v2176
        %v2178 = vrot.slane %v1926, %v2177
        %v2180 = vadd.f32 %v2172, %v2178
        %v2181 = vadd.f32 %v2173, %v2178
        %v2182 = vmul.f32 %v2180, 0.2
        %v2183 = vmul.f32 %v2181, 0.2
        %v2184 = vmax.f32 %v2180, %v2182
        %v2185 = vmax.f32 %v2181, %v2183
        %2186 = vst.msk [vmem:[%s588] sm:$0xff] %vm1969, %v2184
        %vm2187 = vcmask 516096
        %2188 = vst.msk [vmem:[%s588 + $0x8] sm:$0x1] %vm2187, %v2185
        %p2189 = scmp.lt.s32.totalorder %s30, 1
        %s2190 = scalar_select %p2189, %s30, 1
        %s2191 = smul.addr %s2190, 8
        %s2192 = smul.addr %s2191, 8
        %s2193 = scalar_lea.vmem %s13, %s2192
        %p2194 = scmp.lt.s32.totalorder %s30, 1
        %s2195 = scalar_select %p2194, %s30, 1
        %s2196 = smul.addr %s2195, 4
        %s2197 = smul.addr %s2196, 8
        %s2198 = scalar_lea.vmem %s14, %s2197
        %p2199 = scmp.lt.s32.totalorder %s30, 1
        %s2200 = scalar_select %p2199, %s30, 1
        %s2201 = smul.addr %s2200, 2
        %s2202 = smul.addr %s2201, 8
        %s2203 = scalar_lea.vmem %s15, %s2202
        // Predicated region
        $region93: #{tpu_custom_call.1} parent=71 // pred_check
          %p2204 = pneg %p326
        $region94: #{tpu_custom_call.1} parent=71 // pred_check_branch
          %2206 = sbr.rel (%p2204) target = $region96
        $region95: #{tpu_custom_call.1} parent=71 // pred_region
          _
        $region96: #{tpu_custom_call.1} parent=71 // pred_fallthru
          _
        // Predicated region
        $region97: #{tpu_custom_call.1} parent=71 // pred_check
          %p2207 = pneg %p352
        $region98: #{tpu_custom_call.1} parent=71 // pred_check_branch
          %2209 = sbr.rel (%p2207) target = $region100
        $region99: #{tpu_custom_call.1} parent=71 // pred_region
          _
        $region100: #{tpu_custom_call.1} parent=71 // pred_fallthru
          _
        // Predicated region
        $region101: #{tpu_custom_call.1} parent=71 // pred_check
          %p2210 = pneg %p378
        $region102: #{tpu_custom_call.1} parent=71 // pred_check_branch
          %2212 = sbr.rel (%p2210) target = $region104
        $region103: #{tpu_custom_call.1} parent=71 // pred_region
          _
        $region104: #{tpu_custom_call.1} parent=71 // pred_fallthru
          _
      $region72: #{tpu_custom_call.1} parent=5 // pred_fallthru
        _
      %p2213 = scmp.le.s32.totalorder 2, %s25
      // Predicated region
      $region105: #{tpu_custom_call.1} parent=5 // pred_check
        %p2214 = pneg %p2213
      $region106: #{tpu_custom_call.1} parent=5 // pred_check_branch
        %2216 = sbr.rel (%p2214) target = $region108
      $region107: #{tpu_custom_call.1} parent=5 // pred_region
        %s2217 = ssub.s32 %s25, 2
        // Predicated region
        $region109: #{tpu_custom_call.1} parent=107 // pred_check
          %p2218 = pneg %p332
        $region110: #{tpu_custom_call.1} parent=107 // pred_check_branch
          %2220 = sbr.rel (%p2218) target = $region112
        $region111: #{tpu_custom_call.1} parent=107 // pred_region
          %p2221 = scmp.lt.s32.totalorder %s31, 1
          %s2222 = scalar_select %p2221, %s31, 1
          %s2223 = smul.addr %s2222, 8
          %s2224 = smul.addr %s2223, 8
          %s2225 = scalar_lea.vmem %s13, %s2224
        $region112: #{tpu_custom_call.1} parent=107 // pred_fallthru
          _
        // Predicated region
        $region113: #{tpu_custom_call.1} parent=107 // pred_check
          %p2226 = pneg %p358
        $region114: #{tpu_custom_call.1} parent=107 // pred_check_branch
          %2228 = sbr.rel (%p2226) target = $region116
        $region115: #{tpu_custom_call.1} parent=107 // pred_region
          %p2229 = scmp.lt.s32.totalorder %s31, 1
          %s2230 = scalar_select %p2229, %s31, 1
          %s2231 = smul.addr %s2230, 4
          %s2232 = smul.addr %s2231, 8
          %s2233 = scalar_lea.vmem %s14, %s2232
        $region116: #{tpu_custom_call.1} parent=107 // pred_fallthru
          _
        // Predicated region
        $region117: #{tpu_custom_call.1} parent=107 // pred_check
          %p2234 = pneg %p384
        $region118: #{tpu_custom_call.1} parent=107 // pred_check_branch
          %2236 = sbr.rel (%p2234) target = $region120
        $region119: #{tpu_custom_call.1} parent=107 // pred_region
          %p2237 = scmp.lt.s32.totalorder %s31, 1
          %s2238 = scalar_select %p2237, %s31, 1
          %s2239 = smul.addr %s2238, 2
          %s2240 = smul.addr %s2239, 8
          %s2241 = scalar_lea.vmem %s15, %s2240
        $region120: #{tpu_custom_call.1} parent=107 // pred_fallthru
          _
      $region108: #{tpu_custom_call.1} parent=5 // pred_fallthru
        _
    $region6: #{tpu_custom_call.1} parent=1 // loop_footer
      %s29 = sadd.s32 1, %s25
    $region7: #{tpu_custom_call.1} parent=1 // loop_footer_branch
      %24 = sbr.rel target = $region3
    $region8: #{tpu_custom_call.1} parent=1 // loop_exit
      _
    %2242 = vsyncpa [#allocation5], 1
    %s2243 = scalar_lea.sflag [#allocation5], 1
    %2244 = vsyncpa %s2243, 1
    %2245 = vsyncpa [#allocation7], 1
    %2246 = vsyncpa [#allocation10], 1

</llo_original>
